<compile_context>
chip_gen: v6e
topology: v6e:2x2x1
jax: 0.10.0
libtpu: 0.0.40
codegen_flags: <defaults>
</compile_context>

<pallas_src>
import math

import numpy as np
import jax
import jax.numpy as jnp
from jax.experimental import pallas as pl
from jax.experimental.pallas import tpu as pltpu

DROP_P = 0.3


def _round_up(x, m):
    return ((x + m - 1) // m) * m


# ---------------------------------------------------------------------------
# Fused multi-layer LSTM kernel (one grid step = one time chunk, all layers)
# ---------------------------------------------------------------------------
def _lstm_stack_kernel(maxlen_ref,                       # SMEM (1,) int32
                       x_ref,                            # (T_blk, B, E)
                       len_ref,                          # (B, 1) int32
                       wih0_ref,                         # (E, 4H)  layer 0
                       wihr_ref,                         # (L-1, H, 4H) layers 1..L-1
                       whh_ref,                          # (L, H, 4H)
                       b_ref,                            # (L, 1, 4H) fused b_ih+b_hh
                       h0_ref, c0_ref,                   # (L, B, H)
                       y_ref,                            # out (T_blk, B, H) last layer
                       hN_ref, cN_ref,                   # out (L, B, H)
                       h_scr, c_scr,                     # scratch (L, B, H)
                       gate_scr,                         # scratch (T_blk, B, 4H)
                       act_scr):                         # scratch (T_blk, B, H)
    T_blk, B, Din = x_ref.shape
    L, _, H = h0_ref.shape
    chunk = pl.program_id(0)
    chunk_start = chunk * T_blk

    @pl.when(chunk == 0)
    def _init():
        h_scr[...] = h0_ref[...]
        c_scr[...] = c0_ref[...]

    @pl.when(chunk_start < maxlen_ref[0])
    def _compute():
        # Static Python loop over layers (L is small); layer l consumes the
        # previous layer's chunk of activations held in VMEM scratch.
        for l in range(L):
            if l == 0:
                xin = x_ref[...].reshape(T_blk * B, Din)
                w_in = wih0_ref[...]
            else:
                xin = act_scr[...].reshape(T_blk * B, H)
                w_in = wihr_ref[l - 1]

            # Hoisted input projection for the whole chunk (one big MXU op)
            # with the bias folded in (no per-step broadcast).
            g = jnp.dot(xin, w_in, preferred_element_type=jnp.float32) + b_ref[l]
            gate_scr[...] = g.reshape(T_blk, B, 4 * H)

            whh_l = whh_ref[l]            # hoisted, loaded once per chunk
            last = (l == L - 1)

            def step(t, carry, l=l, whh_l=whh_l, last=last):
                h = h_scr[l]
                c = c_scr[l]
                gates = gate_scr[t] + jnp.dot(
                    h, whh_l, preferred_element_type=jnp.float32)
                # gate order [i, f, g, o]; H is 128-padded so slices are
                # lane-aligned.
                i_g = jax.nn.sigmoid(gates[:, 0:H])
                f_g = jax.nn.sigmoid(gates[:, H:2 * H])
                g_g = jnp.tanh(gates[:, 2 * H:3 * H])
                o_g = jax.nn.sigmoid(gates[:, 3 * H:4 * H])
                c_new = f_g * c + i_g * g_g
                h_new = o_g * jnp.tanh(c_new)

                valid = len_ref[...] > (chunk_start + t)   # (B, 1) packed mask
                h_scr[l] = jnp.where(valid, h_new, h)
                c_scr[l] = jnp.where(valid, c_new, c)
                y_t = jnp.where(valid, h_new, 0.0)
                if last:
                    y_ref[t] = y_t              # pad_packed zeros the padding
                else:
                    act_scr[t] = y_t            # feed next layer
                return carry

            jax.lax.fori_loop(0, T_blk, step, 0, unroll=True)

    @pl.when(chunk_start >= maxlen_ref[0])
    def _skip():
        # Whole chunk beyond every sequence: state untouched, output zeros.
        y_ref[...] = jnp.zeros(y_ref.shape, y_ref.dtype)

    @pl.when(chunk == pl.num_programs(0) - 1)
    def _finalize():
        hN_ref[...] = h_scr[...]
        cN_ref[...] = c_scr[...]


def lstm_stack(max_len, x_tm, len_col, wih0, wih_rest, whh, bias, h0, c0, *, t_blk):
    T_pad, B_pad, E_pad = x_tm.shape
    L, _, H_pad = h0.shape
    G = 4 * H_pad
    n_rest = wih_rest.shape[0]
    grid = (T_pad // t_blk,)

    grid_spec = pltpu.PrefetchScalarGridSpec(
        num_scalar_prefetch=1,                 # max(lengths) -> SMEM
        grid=grid,
        in_specs=[
            pl.BlockSpec((t_blk, B_pad, E_pad), lambda i, ml: (i, 0, 0)),
            pl.BlockSpec((B_pad, 1), lambda i, ml: (0, 0)),
            pl.BlockSpec((E_pad, G), lambda i, ml: (0, 0)),
            pl.BlockSpec((n_rest, H_pad, G), lambda i, ml: (0, 0, 0)),
            pl.BlockSpec((L, H_pad, G), lambda i, ml: (0, 0, 0)),
            pl.BlockSpec((L, 1, G), lambda i, ml: (0, 0, 0)),
            pl.BlockSpec((L, B_pad, H_pad), lambda i, ml: (0, 0, 0)),
            pl.BlockSpec((L, B_pad, H_pad), lambda i, ml: (0, 0, 0)),
        ],
        out_specs=[
            pl.BlockSpec((t_blk, B_pad, H_pad), lambda i, ml: (i, 0, 0)),
            pl.BlockSpec((L, B_pad, H_pad), lambda i, ml: (0, 0, 0)),
            pl.BlockSpec((L, B_pad, H_pad), lambda i, ml: (0, 0, 0)),
        ],
        scratch_shapes=[
            pltpu.VMEM((L, B_pad, H_pad), jnp.float32),     # h state
            pltpu.VMEM((L, B_pad, H_pad), jnp.float32),     # c state
            pltpu.VMEM((t_blk, B_pad, G), jnp.float32),     # precomputed gates
            pltpu.VMEM((t_blk, B_pad, H_pad), jnp.float32), # inter-layer acts
        ],
    )
    out_shape = (
        jax.ShapeDtypeStruct((T_pad, B_pad, H_pad), jnp.float32),
        jax.ShapeDtypeStruct((L, B_pad, H_pad), jnp.float32),
        jax.ShapeDtypeStruct((L, B_pad, H_pad), jnp.float32),
    )
    return pl.pallas_call(
        _lstm_stack_kernel,
        out_shape=out_shape,
        grid_spec=grid_spec,
        compiler_params=pltpu.CompilerParams(
            dimension_semantics=("arbitrary",),       # time is sequential
            vmem_limit_bytes=48 * 1024 * 1024,        # fits v7x 64 MiB too
        ),
    )(max_len, x_tm, len_col, wih0, wih_rest, whh, bias, h0, c0)


# ---------------------------------------------------------------------------
# FC head kernel: fc1 -> relu -> dropout (host-generated mask) -> fc2
# tiled over rows, lane-dense (padded) output.
# ---------------------------------------------------------------------------
def _fc_head_kernel(x_ref, mask_ref, w1_ref, b1_ref, w2_ref, b2_ref, o_ref):
    h = jnp.dot(x_ref[...], w1_ref[...],
                preferred_element_type=jnp.float32) + b1_ref[...]
    h = jnp.maximum(h, 0.0)
    h = h * mask_ref[...]          # keep-mask already scaled by 1/(1-p)
    o_ref[...] = jnp.dot(h, w2_ref[...],
                         preferred_element_type=jnp.float32) + b2_ref[...]


def fc_head(x, mask, w1, b1, w2, b2, *, row_tile):
    N, Hp = x.shape
    Fp = w1.shape[1]
    Cp = w2.shape[1]
    grid = (N // row_tile,)
    grid_spec = pltpu.PrefetchScalarGridSpec(
        num_scalar_prefetch=0,
        grid=grid,
        in_specs=[
            pl.BlockSpec((row_tile, Hp), lambda i: (i, 0)),
            pl.BlockSpec((row_tile, Fp), lambda i: (i, 0)),
            pl.BlockSpec((Hp, Fp), lambda i: (0, 0)),
            pl.BlockSpec((1, Fp), lambda i: (0, 0)),
            pl.BlockSpec((Fp, Cp), lambda i: (0, 0)),
            pl.BlockSpec((1, Cp), lambda i: (0, 0)),
        ],
        out_specs=pl.BlockSpec((row_tile, Cp), lambda i: (i, 0)),
    )
    return pl.pallas_call(
        _fc_head_kernel,
        out_shape=jax.ShapeDtypeStruct((N, Cp), jnp.float32),
        grid_spec=grid_spec,
        compiler_params=pltpu.CompilerParams(
            dimension_semantics=("parallel",)),    # 2 TCs on v7x
    )(x, mask, w1, b1, w2, b2)


# ---------------------------------------------------------------------------
# Parameter preparation (PyTorch layout -> kernel layout, per-gate padding)
# ---------------------------------------------------------------------------
def _prep_gate_weight(w, din_pad, H, H_pad):
    """w: PyTorch (4H, Din), gate order [i,f,g,o] -> (Din_pad, 4*H_pad)."""
    din = w.shape[1]
    w = w.reshape(4, H, din)
    w = jnp.transpose(w, (2, 0, 1))                         # (Din, 4, H)
    w = jnp.pad(w, ((0, din_pad - din), (0, 0), (0, H_pad - H)))
    return w.reshape(din_pad, 4 * H_pad)


def _prep_gate_bias(b_ih, b_hh, H, H_pad):
    b = (b_ih + b_hh).reshape(4, H)
    b = jnp.pad(b, ((0, 0), (0, H_pad - H)))
    return b.reshape(1, 4 * H_pad)


# ---------------------------------------------------------------------------
# DecoderRNN forward (glue in plain JAX, hot path in the two kernels above)
# ---------------------------------------------------------------------------
def decoder_rnn_forward(x, hidden, lengths, params, *, dropout_key=None,
                        training=True, drop_p=DROP_P, t_blk=16,
                        fc_row_tile=512):
    """x: (B, T, E) f32 batch-first; hidden = (h0, c0) each (L, B, H);
    lengths: (B,) int with max(lengths) == T.  Returns (out (B*T, C), (h_n, c_n))."""
    h0, c0 = hidden
    B, T, E = x.shape
    L, _, H = h0.shape
    Fd = params["fc1_w"].shape[0]
    C = params["fc2_w"].shape[0]

    # (8, 128)-aligned padded sizes (exact: zero padding keeps padded units 0).
    B_pad = _round_up(B, 8)
    E_pad = _round_up(E, 128)
    H_pad = _round_up(H, 128)
    Fd_pad = _round_up(Fd, 128)
    C_pad = _round_up(C, 128)
    t_blk = max(1, min(t_blk, T))
    T_pad = _round_up(T, t_blk)

    # Time-major, padded input.
    # TODO(synk): fold this transpose into the BlockSpec index_map to save one
    # HBM pass of the input activations.
    x_tm = jnp.transpose(x.astype(jnp.float32), (1, 0, 2))
    x_tm = jnp.pad(x_tm, ((0, T_pad - T), (0, B_pad - B), (0, E_pad - E)))

    lengths = lengths.astype(jnp.int32)
    len_col = jnp.pad(lengths, (0, B_pad - B)).reshape(B_pad, 1)
    max_len = jnp.max(lengths).reshape(1)

    # LSTM weights: transpose, fuse biases, pad each gate block to H_pad.
    wih_list, whh_list, b_list = [], [], []
    for l in range(L):
        w_ih, w_hh, b_ih, b_hh = params["lstm"][l]
        din_pad = E_pad if l == 0 else H_pad
        wih_list.append(_prep_gate_weight(w_ih, din_pad, H, H_pad))
        whh_list.append(_prep_gate_weight(w_hh, H_pad, H, H_pad))
        b_list.append(_prep_gate_bias(b_ih, b_hh, H, H_pad))
    wih0 = wih_list[0]
    if L > 1:
        wih_rest = jnp.stack(wih_list[1:], axis=0)
    else:
        wih_rest = jnp.zeros((1, H_pad, 4 * H_pad), jnp.float32)  # never read
    whh = jnp.stack(whh_list, axis=0)
    bias = jnp.stack(b_list, axis=0)

    h0_p = jnp.pad(h0.astype(jnp.float32),
                   ((0, 0), (0, B_pad - B), (0, H_pad - H)))
    c0_p = jnp.pad(c0.astype(jnp.float32),
                   ((0, 0), (0, B_pad - B), (0, H_pad - H)))

    y_tm, h_n_p, c_n_p = lstm_stack(max_len, x_tm, len_col, wih0, wih_rest,
                                    whh, bias, h0_p, c0_p, t_blk=t_blk)

    # FC head over flattened rows (row order (t, b); re-ordered afterwards on
    # the small logits instead of the large activations).
    N = T_pad * B_pad
    row_tile = _round_up(max(8, min(fc_row_tile, N)), 8)
    N_pad = _round_up(N, row_tile)
    acts = y_tm.reshape(N, H_pad)
    if N_pad > N:
        acts = jnp.pad(acts, ((0, N_pad - N), (0, 0)))

    w1 = jnp.pad(params["fc1_w"].T, ((0, H_pad - H), (0, Fd_pad - Fd)))
    b1 = jnp.pad(params["fc1_b"], (0, Fd_pad - Fd)).reshape(1, Fd_pad)
    w2 = jnp.pad(params["fc2_w"].T, ((0, Fd_pad - Fd), (0, C_pad - C)))
    b2 = jnp.pad(params["fc2_b"], (0, C_pad - C)).reshape(1, C_pad)

    # Dropout (F.dropout default training=True in the reference module).
    # Mask generated host-side with jax.random: portable to interpret mode.
    if training:
        if dropout_key is None:
            dropout_key = jax.random.PRNGKey(0)
        keep = jax.random.bernoulli(dropout_key, 1.0 - drop_p, (N_pad, Fd_pad))
        mask = keep.astype(jnp.float32) * (1.0 / (1.0 - drop_p))
    else:
        mask = jnp.ones((N_pad, Fd_pad), jnp.float32)

    out_p = fc_head(acts, mask, w1, b1, w2, b2, row_tile=row_tile)

    out = out_p[:N].reshape(T_pad, B_pad, C_pad)
    out = jnp.transpose(out, (1, 0, 2))[:B, :T, :C].reshape(B * T, C)
    h_n = h_n_p[:, :B, :H]
    c_n = c_n_p[:, :B, :H]
    return out, (h_n, c_n)


# ---------------------------------------------------------------------------
# PyTorch-style parameter init (uniform(-1/sqrt(H), 1/sqrt(H)), nn.LSTM layout)
# ---------------------------------------------------------------------------
def init_params(key, E, H, Fd, C, L):
    params = {"lstm": []}
    ks = jax.random.split(key, 4 * L + 4)
    i = 0
    k = 1.0 / math.sqrt(H)
    for l in range(L):
        din = E if l == 0 else H
        w_ih = jax.random.uniform(ks[i], (4 * H, din), jnp.float32, -k, k); i += 1
        w_hh = jax.random.uniform(ks[i], (4 * H, H), jnp.float32, -k, k); i += 1
        b_ih = jax.random.uniform(ks[i], (4 * H,), jnp.float32, -k, k); i += 1
        b_hh = jax.random.uniform(ks[i], (4 * H,), jnp.float32, -k, k); i += 1
        params["lstm"].append((w_ih, w_hh, b_ih, b_hh))
    k1 = 1.0 / math.sqrt(H)
    params["fc1_w"] = jax.random.uniform(ks[i], (Fd, H), jnp.float32, -k1, k1); i += 1
    params["fc1_b"] = jax.random.uniform(ks[i], (Fd,), jnp.float32, -k1, k1); i += 1
    k2 = 1.0 / math.sqrt(Fd)
    params["fc2_w"] = jax.random.uniform(ks[i], (C, Fd), jnp.float32, -k2, k2); i += 1
    params["fc2_b"] = jax.random.uniform(ks[i], (C,), jnp.float32, -k2, k2); i += 1
    return params


# ---------------------------------------------------------------------------
# Pure-JAX reference (PyTorch semantics) for the correctness check
# ---------------------------------------------------------------------------
def decoder_rnn_reference(x, hidden, lengths, params):
    h0, c0 = hidden
    B, T, E = x.shape
    L, _, H = h0.shape
    hs = [h0[l] for l in range(L)]
    cs = [c0[l] for l in range(L)]
    ys = []
    for t in range(T):
        inp = x[:, t, :]
        valid = (lengths > t)[:, None]
        for l in range(L):
            w_ih, w_hh, b_ih, b_hh = params["lstm"][l]
            gates = inp @ w_ih.T + hs[l] @ w_hh.T + b_ih + b_hh
            i_g = jax.nn.sigmoid(gates[:, 0:H])
            f_g = jax.nn.sigmoid(gates[:, H:2 * H])
            g_g = jnp.tanh(gates[:, 2 * H:3 * H])
            o_g = jax.nn.sigmoid(gates[:, 3 * H:4 * H])
            c_new = f_g * cs[l] + i_g * g_g
            h_new = o_g * jnp.tanh(c_new)
            hs[l] = jnp.where(valid, h_new, hs[l])
            cs[l] = jnp.where(valid, c_new, cs[l])
            inp = jnp.where(valid, h_new, 0.0)
        ys.append(inp)
    y = jnp.stack(ys, axis=1).reshape(-1, H)
    a = jnp.maximum(y @ params["fc1_w"].T + params["fc1_b"], 0.0)
    out = a @ params["fc2_w"].T + params["fc2_b"]
    return out, (jnp.stack(hs), jnp.stack(cs))


if __name__ == "__main__":
    # Small shapes consistent with the module (scaled down from defaults
    # embed=300, hidden=256, fc=128, classes=6, layers=3).
    B, T = 2, 10
    E, H, Fd, C, L = 64, 64, 32, 6, 3

    key = jax.random.PRNGKey(0)
    k_par, k_x, k_drop = jax.random.split(key, 3)

    params = init_params(k_par, E, H, Fd, C, L)
    x = jax.random.normal(k_x, (B, T, E), jnp.float32)
    lengths = jnp.array([T, 6], dtype=jnp.int32)     # variable lengths, max == T

    # init_hidden(batch_size): zeros of shape (L, B, H) for h and c
    hidden = (jnp.zeros((L, B, H), jnp.float32),
              jnp.zeros((L, B, H), jnp.float32))

    # 1) Correctness check with dropout disabled (deterministic path).
    out, (h_n, c_n) = decoder_rnn_forward(x, hidden, lengths, params,
                                          training=False, t_blk=4,
                                          fc_row_tile=32)
    jax.block_until_ready(out)
    assert out.shape == (B * T, C)
    assert h_n.shape == (L, B, H) and c_n.shape == (L, B, H)

    ref_out, (ref_h, ref_c) = decoder_rnn_reference(x, hidden, lengths, params)
    np.testing.assert_allclose(np.asarray(out), np.asarray(ref_out),
                               rtol=1e-2, atol=1e-2)
    np.testing.assert_allclose(np.asarray(h_n), np.asarray(ref_h),
                               rtol=1e-2, atol=1e-2)
    np.testing.assert_allclose(np.asarray(c_n), np.asarray(ref_c),
                               rtol=1e-2, atol=1e-2)

    # 2) Forward with dropout active (matches F.dropout's default training=True).
    out_tr, _ = decoder_rnn_forward(x, hidden, lengths, params,
                                    dropout_key=k_drop, training=True,
                                    t_blk=4, fc_row_tile=32)
    jax.block_until_ready(out_tr)
    assert out_tr.shape == (B * T, C)

    print("KERNEL_OK")
</pallas_src>

<mosaic_0001>
module attributes {stable_mosaic.version = 11 : i64} {
  func.func @_lstm_stack_kernel(%arg0: i32, %arg1: memref<1xi32, #tpu.memory_space<smem>>, %arg2: memref<4x8x128xf32, #tpu.memory_space<vmem>>, %arg3: memref<8x1xi32, #tpu.memory_space<vmem>>, %arg4: memref<128x512xf32, #tpu.memory_space<vmem>>, %arg5: memref<2x128x512xf32, #tpu.memory_space<vmem>>, %arg6: memref<3x128x512xf32, #tpu.memory_space<vmem>>, %arg7: memref<3x1x512xf32, #tpu.memory_space<vmem>>, %arg8: memref<3x8x128xf32, #tpu.memory_space<vmem>>, %arg9: memref<3x8x128xf32, #tpu.memory_space<vmem>>, %arg10: memref<4x8x128xf32, #tpu.memory_space<vmem>>, %arg11: memref<3x8x128xf32, #tpu.memory_space<vmem>>, %arg12: memref<3x8x128xf32, #tpu.memory_space<vmem>>, %arg13: memref<3x8x128xf32, #tpu.memory_space<vmem>>, %arg14: memref<3x8x128xf32, #tpu.memory_space<vmem>>, %arg15: memref<4x8x512xf32, #tpu.memory_space<vmem>>, %arg16: memref<4x8x128xf32, #tpu.memory_space<vmem>>) attributes {dimension_semantics = [#tpu.dimension_semantics<arbitrary>], iteration_bounds = array<i64: 3>, scalar_prefetch = 1 : i64, scratch_operands = 4 : i64, tpu.core_type = #tpu.core_type<tc>, window_params = [{transform_indices = @transform_0, window_bounds = array<i64: 4, 8, 128>}, {pipeline_mode = #tpu.pipeline_mode<synchronous>, transform_indices = @transform_1, window_bounds = array<i64: 8, 1>}, {pipeline_mode = #tpu.pipeline_mode<synchronous>, transform_indices = @transform_2, window_bounds = array<i64: 128, 512>}, {pipeline_mode = #tpu.pipeline_mode<synchronous>, transform_indices = @transform_3, window_bounds = array<i64: 2, 128, 512>}, {pipeline_mode = #tpu.pipeline_mode<synchronous>, transform_indices = @transform_4, window_bounds = array<i64: 3, 128, 512>}, {pipeline_mode = #tpu.pipeline_mode<synchronous>, transform_indices = @transform_5, window_bounds = array<i64: 3, 1, 512>}, {pipeline_mode = #tpu.pipeline_mode<synchronous>, transform_indices = @transform_6, window_bounds = array<i64: 3, 8, 128>}, {pipeline_mode = #tpu.pipeline_mode<synchronous>, transform_indices = @transform_7, window_bounds = array<i64: 3, 8, 128>}, {transform_indices = @transform_8, window_bounds = array<i64: 4, 8, 128>}, {pipeline_mode = #tpu.pipeline_mode<synchronous>, transform_indices = @transform_9, window_bounds = array<i64: 3, 8, 128>}, {pipeline_mode = #tpu.pipeline_mode<synchronous>, transform_indices = @transform_10, window_bounds = array<i64: 3, 8, 128>}]} {
    %c4_i32 = arith.constant 4 : i32
    %0 = arith.muli %arg0, %c4_i32 : i32
    %c0_i32 = arith.constant 0 : i32
    %1 = arith.cmpi eq, %arg0, %c0_i32 : i32
    %2 = arith.extui %1 : i1 to i32
    %c0_i32_0 = arith.constant 0 : i32
    %3 = arith.cmpi ne, %2, %c0_i32_0 : i32
    scf.if %3 {
      %c0_5 = arith.constant 0 : index
      %c0_6 = arith.constant 0 : index
      %c0_7 = arith.constant 0 : index
      %15 = vector.load %arg8[%c0_5, %c0_6, %c0_7] : memref<3x8x128xf32, #tpu.memory_space<vmem>>, vector<3x8x128xf32>
      %c0_8 = arith.constant 0 : index
      %c0_9 = arith.constant 0 : index
      %c0_10 = arith.constant 0 : index
      %16 = vector.load %arg13[%c0_8, %c0_9, %c0_10] : memref<3x8x128xf32, #tpu.memory_space<vmem>>, vector<3x8x128xf32>
      tpu.vector_store %arg13[%c0_8, %c0_9, %c0_10], %15 {strides = array<i32>} : memref<3x8x128xf32, #tpu.memory_space<vmem>>, vector<3x8x128xf32>,
      %c0_11 = arith.constant 0 : index
      %c0_12 = arith.constant 0 : index
      %c0_13 = arith.constant 0 : index
      %17 = vector.load %arg9[%c0_11, %c0_12, %c0_13] : memref<3x8x128xf32, #tpu.memory_space<vmem>>, vector<3x8x128xf32>
      %c0_14 = arith.constant 0 : index
      %c0_15 = arith.constant 0 : index
      %c0_16 = arith.constant 0 : index
      %18 = vector.load %arg14[%c0_14, %c0_15, %c0_16] : memref<3x8x128xf32, #tpu.memory_space<vmem>>, vector<3x8x128xf32>
      tpu.vector_store %arg14[%c0_14, %c0_15, %c0_16], %17 {strides = array<i32>} : memref<3x8x128xf32, #tpu.memory_space<vmem>>, vector<3x8x128xf32>,
    } else {
    }
    %c0 = arith.constant 0 : index
    %4 = memref.load %arg1[%c0] : memref<1xi32, #tpu.memory_space<smem>>
    %5 = arith.cmpi slt, %0, %4 : i32
    %6 = arith.extui %5 : i1 to i32
    %c0_i32_1 = arith.constant 0 : i32
    %7 = arith.cmpi ne, %6, %c0_i32_1 : i32
    scf.if %7 {
      %c0_5 = arith.constant 0 : index
      %c0_6 = arith.constant 0 : index
      %c0_7 = arith.constant 0 : index
      %15 = vector.load %arg2[%c0_5, %c0_6, %c0_7] : memref<4x8x128xf32, #tpu.memory_space<vmem>>, vector<4x8x128xf32>
      %16 = vector.shape_cast %15 : vector<4x8x128xf32> to vector<32x128xf32>
      %c0_8 = arith.constant 0 : index
      %c0_9 = arith.constant 0 : index
      %17 = vector.load %arg4[%c0_8, %c0_9] : memref<128x512xf32, #tpu.memory_space<vmem>>, vector<128x512xf32>
      %cst = arith.constant dense<0.000000e+00> : vector<32x512xf32>
      %18 = tpu.matmul %16, %17, %cst {dimension_numbers = #tpu.dot_dimension_numbers<[1], [0], [0], [1], [0, 0, 1, 1], [], []>} : vector<32x128xf32>, vector<128x512xf32>, vector<32x512xf32> -> vector<32x512xf32>
      %c0_10 = arith.constant 0 : index
      %c0_11 = arith.constant 0 : index
      %c0_12 = arith.constant 0 : index
      %19 = vector.load %arg7[%c0_10, %c0_11, %c0_12] : memref<3x1x512xf32, #tpu.memory_space<vmem>>, vector<1x1x512xf32>
      %20 = vector.shape_cast %19 : vector<1x1x512xf32> to vector<1x512xf32>
      %21 = vector.broadcast %20 : vector<1x512xf32> to vector<32x512xf32>
      %22 = arith.addf %18, %21 : vector<32x512xf32>
      %23 = vector.shape_cast %22 : vector<32x512xf32> to vector<4x8x512xf32>
      %c0_13 = arith.constant 0 : index
      %c0_14 = arith.constant 0 : index
      %c0_15 = arith.constant 0 : index
      %24 = vector.load %arg15[%c0_13, %c0_14, %c0_15] : memref<4x8x512xf32, #tpu.memory_space<vmem>>, vector<4x8x512xf32>
      tpu.vector_store %arg15[%c0_13, %c0_14, %c0_15], %23 {strides = array<i32>} : memref<4x8x512xf32, #tpu.memory_space<vmem>>, vector<4x8x512xf32>,
      %c0_16 = arith.constant 0 : index
      %c0_17 = arith.constant 0 : index
      %c0_18 = arith.constant 0 : index
      %25 = vector.load %arg6[%c0_16, %c0_17, %c0_18] : memref<3x128x512xf32, #tpu.memory_space<vmem>>, vector<1x128x512xf32>
      %26 = vector.shape_cast %25 : vector<1x128x512xf32> to vector<128x512xf32>
      %c0_i32_19 = arith.constant 0 : i32
      %c0_20 = arith.constant 0 : index
      %c0_21 = arith.constant 0 : index
      %c0_22 = arith.constant 0 : index
      %27 = vector.load %arg13[%c0_20, %c0_21, %c0_22] : memref<3x8x128xf32, #tpu.memory_space<vmem>>, vector<1x8x128xf32>
      %28 = vector.shape_cast %27 : vector<1x8x128xf32> to vector<8x128xf32>
      %c0_23 = arith.constant 0 : index
      %c0_24 = arith.constant 0 : index
      %c0_25 = arith.constant 0 : index
      %29 = vector.load %arg14[%c0_23, %c0_24, %c0_25] : memref<3x8x128xf32, #tpu.memory_space<vmem>>, vector<1x8x128xf32>
      %30 = vector.shape_cast %29 : vector<1x8x128xf32> to vector<8x128xf32>
      %31 = arith.index_cast %c0_i32_19 : i32 to index
      %c0_26 = arith.constant 0 : index
      %c0_27 = arith.constant 0 : index
      %32 = vector.load %arg15[%31, %c0_26, %c0_27] : memref<4x8x512xf32, #tpu.memory_space<vmem>>, vector<1x8x512xf32>
      %33 = vector.shape_cast %32 : vector<1x8x512xf32> to vector<8x512xf32>
      %cst_28 = arith.constant dense<0.000000e+00> : vector<8x512xf32>
      %34 = tpu.matmul %28, %26, %cst_28 {dimension_numbers = #tpu.dot_dimension_numbers<[1], [0], [0], [1], [0, 0, 1, 1], [], []>} : vector<8x128xf32>, vector<128x512xf32>, vector<8x512xf32> -> vector<8x512xf32>
      %35 = arith.addf %33, %34 : vector<8x512xf32>
      %36 = vector.extract_strided_slice %35 {offsets = [0, 0], sizes = [8, 128], strides = [1, 1]} : vector<8x512xf32> to vector<8x128xf32>
      %37 = arith.negf %36 : vector<8x128xf32>
      %38 = math.exp %37 : vector<8x128xf32>
      %cst_29 = arith.constant 1.000000e+00 : f32
      %39 = vector.broadcast %cst_29 : f32 to vector<8x128xf32>
      %40 = arith.addf %39, %38 : vector<8x128xf32>
      %41 = arith.divf %39, %40 : vector<8x128xf32>
      %42 = vector.extract_strided_slice %35 {offsets = [0, 128], sizes = [8, 128], strides = [1, 1]} : vector<8x512xf32> to vector<8x128xf32>
      %43 = arith.negf %42 : vector<8x128xf32>
      %44 = math.exp %43 : vector<8x128xf32>
      %cst_30 = arith.constant 1.000000e+00 : f32
      %45 = vector.broadcast %cst_30 : f32 to vector<8x128xf32>
      %46 = arith.addf %45, %44 : vector<8x128xf32>
      %47 = arith.divf %45, %46 : vector<8x128xf32>
      %48 = vector.extract_strided_slice %35 {offsets = [0, 256], sizes = [8, 128], strides = [1, 1]} : vector<8x512xf32> to vector<8x128xf32>
      %49 = math.tanh %48 : vector<8x128xf32>
      %50 = vector.extract_strided_slice %35 {offsets = [0, 384], sizes = [8, 128], strides = [1, 1]} : vector<8x512xf32> to vector<8x128xf32>
      %51 = arith.negf %50 : vector<8x128xf32>
      %52 = math.exp %51 : vector<8x128xf32>
      %cst_31 = arith.constant 1.000000e+00 : f32
      %53 = vector.broadcast %cst_31 : f32 to vector<8x128xf32>
      %54 = arith.addf %53, %52 : vector<8x128xf32>
      %55 = arith.divf %53, %54 : vector<8x128xf32>
      %56 = arith.mulf %47, %30 : vector<8x128xf32>
      %57 = arith.mulf %41, %49 : vector<8x128xf32>
      %58 = arith.addf %56, %57 : vector<8x128xf32>
      %59 = math.tanh %58 : vector<8x128xf32>
      %60 = arith.mulf %55, %59 : vector<8x128xf32>
      %c0_32 = arith.constant 0 : index
      %c0_33 = arith.constant 0 : index
      %61 = vector.load %arg3[%c0_32, %c0_33] : memref<8x1xi32, #tpu.memory_space<vmem>>, vector<8x1xi32>
      %62 = arith.addi %0, %c0_i32_19 : i32
      %63 = vector.broadcast %62 : i32 to vector<8x1xi32>
      %64 = arith.cmpi sgt, %61, %63 : vector<8x1xi32>
      %65 = vector.shape_cast %64 : vector<8x1xi1> to vector<8x1xi1>
      %66 = vector.broadcast %65 : vector<8x1xi1> to vector<8x128xi1>
      %67 = arith.select %66, %60, %28 : vector<8x128xi1>, vector<8x128xf32>
      %c0_34 = arith.constant 0 : index
      %c0_35 = arith.constant 0 : index
      %c0_36 = arith.constant 0 : index
      %68 = vector.load %arg13[%c0_34, %c0_35, %c0_36] : memref<3x8x128xf32, #tpu.memory_space<vmem>>, vector<1x8x128xf32>
      %69 = vector.shape_cast %68 : vector<1x8x128xf32> to vector<8x128xf32>
      %70 = vector.shape_cast %67 : vector<8x128xf32> to vector<1x8x128xf32>
      tpu.vector_store %arg13[%c0_34, %c0_35, %c0_36], %70 {strides = array<i32>} : memref<3x8x128xf32, #tpu.memory_space<vmem>>, vector<1x8x128xf32>,
      %71 = vector.shape_cast %64 : vector<8x1xi1> to vector<8x1xi1>
      %72 = vector.broadcast %71 : vector<8x1xi1> to vector<8x128xi1>
      %73 = arith.select %72, %58, %30 : vector<8x128xi1>, vector<8x128xf32>
      %c0_37 = arith.constant 0 : index
      %c0_38 = arith.constant 0 : index
      %c0_39 = arith.constant 0 : index
      %74 = vector.load %arg14[%c0_37, %c0_38, %c0_39] : memref<3x8x128xf32, #tpu.memory_space<vmem>>, vector<1x8x128xf32>
      %75 = vector.shape_cast %74 : vector<1x8x128xf32> to vector<8x128xf32>
      %76 = vector.shape_cast %73 : vector<8x128xf32> to vector<1x8x128xf32>
      tpu.vector_store %arg14[%c0_37, %c0_38, %c0_39], %76 {strides = array<i32>} : memref<3x8x128xf32, #tpu.memory_space<vmem>>, vector<1x8x128xf32>,
      %cst_40 = arith.constant 0.000000e+00 : f32
      %77 = vector.shape_cast %64 : vector<8x1xi1> to vector<8x1xi1>
      %78 = vector.broadcast %77 : vector<8x1xi1> to vector<8x128xi1>
      %79 = vector.broadcast %cst_40 : f32 to vector<8x128xf32>
      %80 = arith.select %78, %60, %79 : vector<8x128xi1>, vector<8x128xf32>
      %81 = arith.index_cast %c0_i32_19 : i32 to index
      %c0_41 = arith.constant 0 : index
      %c0_42 = arith.constant 0 : index
      %82 = vector.load %arg16[%81, %c0_41, %c0_42] : memref<4x8x128xf32, #tpu.memory_space<vmem>>, vector<1x8x128xf32>
      %83 = vector.shape_cast %82 : vector<1x8x128xf32> to vector<8x128xf32>
      %84 = vector.shape_cast %80 : vector<8x128xf32> to vector<1x8x128xf32>
      tpu.vector_store %arg16[%81, %c0_41, %c0_42], %84 {strides = array<i32>} : memref<4x8x128xf32, #tpu.memory_space<vmem>>, vector<1x8x128xf32>,
      %c1_i32 = arith.constant 1 : i32
      %c0_43 = arith.constant 0 : index
      %c0_44 = arith.constant 0 : index
      %c0_45 = arith.constant 0 : index
      %85 = vector.load %arg13[%c0_43, %c0_44, %c0_45] : memref<3x8x128xf32, #tpu.memory_space<vmem>>, vector<1x8x128xf32>
      %86 = vector.shape_cast %85 : vector<1x8x128xf32> to vector<8x128xf32>
      %c0_46 = arith.constant 0 : index
      %c0_47 = arith.constant 0 : index
      %c0_48 = arith.constant 0 : index
      %87 = vector.load %arg14[%c0_46, %c0_47, %c0_48] : memref<3x8x128xf32, #tpu.memory_space<vmem>>, vector<1x8x128xf32>
      %88 = vector.shape_cast %87 : vector<1x8x128xf32> to vector<8x128xf32>
      %89 = arith.index_cast %c1_i32 : i32 to index
      %c0_49 = arith.constant 0 : index
      %c0_50 = arith.constant 0 : index
      %90 = vector.load %arg15[%89, %c0_49, %c0_50] : memref<4x8x512xf32, #tpu.memory_space<vmem>>, vector<1x8x512xf32>
      %91 = vector.shape_cast %90 : vector<1x8x512xf32> to vector<8x512xf32>
      %cst_51 = arith.constant dense<0.000000e+00> : vector<8x512xf32>
      %92 = tpu.matmul %86, %26, %cst_51 {dimension_numbers = #tpu.dot_dimension_numbers<[1], [0], [0], [1], [0, 0, 1, 1], [], []>} : vector<8x128xf32>, vector<128x512xf32>, vector<8x512xf32> -> vector<8x512xf32>
      %93 = arith.addf %91, %92 : vector<8x512xf32>
      %94 = vector.extract_strided_slice %93 {offsets = [0, 0], sizes = [8, 128], strides = [1, 1]} : vector<8x512xf32> to vector<8x128xf32>
      %95 = arith.negf %94 : vector<8x128xf32>
      %96 = math.exp %95 : vector<8x128xf32>
      %cst_52 = arith.constant 1.000000e+00 : f32
      %97 = vector.broadcast %cst_52 : f32 to vector<8x128xf32>
      %98 = arith.addf %97, %96 : vector<8x128xf32>
      %99 = arith.divf %97, %98 : vector<8x128xf32>
      %100 = vector.extract_strided_slice %93 {offsets = [0, 128], sizes = [8, 128], strides = [1, 1]} : vector<8x512xf32> to vector<8x128xf32>
      %101 = arith.negf %100 : vector<8x128xf32>
      %102 = math.exp %101 : vector<8x128xf32>
      %cst_53 = arith.constant 1.000000e+00 : f32
      %103 = vector.broadcast %cst_53 : f32 to vector<8x128xf32>
      %104 = arith.addf %103, %102 : vector<8x128xf32>
      %105 = arith.divf %103, %104 : vector<8x128xf32>
      %106 = vector.extract_strided_slice %93 {offsets = [0, 256], sizes = [8, 128], strides = [1, 1]} : vector<8x512xf32> to vector<8x128xf32>
      %107 = math.tanh %106 : vector<8x128xf32>
      %108 = vector.extract_strided_slice %93 {offsets = [0, 384], sizes = [8, 128], strides = [1, 1]} : vector<8x512xf32> to vector<8x128xf32>
      %109 = arith.negf %108 : vector<8x128xf32>
      %110 = math.exp %109 : vector<8x128xf32>
      %cst_54 = arith.constant 1.000000e+00 : f32
      %111 = vector.broadcast %cst_54 : f32 to vector<8x128xf32>
      %112 = arith.addf %111, %110 : vector<8x128xf32>
      %113 = arith.divf %111, %112 : vector<8x128xf32>
      %114 = arith.mulf %105, %88 : vector<8x128xf32>
      %115 = arith.mulf %99, %107 : vector<8x128xf32>
      %116 = arith.addf %114, %115 : vector<8x128xf32>
      %117 = math.tanh %116 : vector<8x128xf32>
      %118 = arith.mulf %113, %117 : vector<8x128xf32>
      %c0_55 = arith.constant 0 : index
      %c0_56 = arith.constant 0 : index
      %119 = vector.load %arg3[%c0_55, %c0_56] : memref<8x1xi32, #tpu.memory_space<vmem>>, vector<8x1xi32>
      %120 = arith.addi %0, %c1_i32 : i32
      %121 = vector.broadcast %120 : i32 to vector<8x1xi32>
      %122 = arith.cmpi sgt, %119, %121 : vector<8x1xi32>
      %123 = vector.shape_cast %122 : vector<8x1xi1> to vector<8x1xi1>
      %124 = vector.broadcast %123 : vector<8x1xi1> to vector<8x128xi1>
      %125 = arith.select %124, %118, %86 : vector<8x128xi1>, vector<8x128xf32>
      %c0_57 = arith.constant 0 : index
      %c0_58 = arith.constant 0 : index
      %c0_59 = arith.constant 0 : index
      %126 = vector.load %arg13[%c0_57, %c0_58, %c0_59] : memref<3x8x128xf32, #tpu.memory_space<vmem>>, vector<1x8x128xf32>
      %127 = vector.shape_cast %126 : vector<1x8x128xf32> to vector<8x128xf32>
      %128 = vector.shape_cast %125 : vector<8x128xf32> to vector<1x8x128xf32>
      tpu.vector_store %arg13[%c0_57, %c0_58, %c0_59], %128 {strides = array<i32>} : memref<3x8x128xf32, #tpu.memory_space<vmem>>, vector<1x8x128xf32>,
      %129 = vector.shape_cast %122 : vector<8x1xi1> to vector<8x1xi1>
      %130 = vector.broadcast %129 : vector<8x1xi1> to vector<8x128xi1>
      %131 = arith.select %130, %116, %88 : vector<8x128xi1>, vector<8x128xf32>
      %c0_60 = arith.constant 0 : index
      %c0_61 = arith.constant 0 : index
      %c0_62 = arith.constant 0 : index
      %132 = vector.load %arg14[%c0_60, %c0_61, %c0_62] : memref<3x8x128xf32, #tpu.memory_space<vmem>>, vector<1x8x128xf32>
      %133 = vector.shape_cast %132 : vector<1x8x128xf32> to vector<8x128xf32>
      %134 = vector.shape_cast %131 : vector<8x128xf32> to vector<1x8x128xf32>
      tpu.vector_store %arg14[%c0_60, %c0_61, %c0_62], %134 {strides = array<i32>} : memref<3x8x128xf32, #tpu.memory_space<vmem>>, vector<1x8x128xf32>,
      %cst_63 = arith.constant 0.000000e+00 : f32
      %135 = vector.shape_cast %122 : vector<8x1xi1> to vector<8x1xi1>
      %136 = vector.broadcast %135 : vector<8x1xi1> to vector<8x128xi1>
      %137 = vector.broadcast %cst_63 : f32 to vector<8x128xf32>
      %138 = arith.select %136, %118, %137 : vector<8x128xi1>, vector<8x128xf32>
      %139 = arith.index_cast %c1_i32 : i32 to index
      %c0_64 = arith.constant 0 : index
      %c0_65 = arith.constant 0 : index
      %140 = vector.load %arg16[%139, %c0_64, %c0_65] : memref<4x8x128xf32, #tpu.memory_space<vmem>>, vector<1x8x128xf32>
      %141 = vector.shape_cast %140 : vector<1x8x128xf32> to vector<8x128xf32>
      %142 = vector.shape_cast %138 : vector<8x128xf32> to vector<1x8x128xf32>
      tpu.vector_store %arg16[%139, %c0_64, %c0_65], %142 {strides = array<i32>} : memref<4x8x128xf32, #tpu.memory_space<vmem>>, vector<1x8x128xf32>,
      %c2_i32_66 = arith.constant 2 : i32
      %c0_67 = arith.constant 0 : index
      %c0_68 = arith.constant 0 : index
      %c0_69 = arith.constant 0 : index
      %143 = vector.load %arg13[%c0_67, %c0_68, %c0_69] : memref<3x8x128xf32, #tpu.memory_space<vmem>>, vector<1x8x128xf32>
      %144 = vector.shape_cast %143 : vector<1x8x128xf32> to vector<8x128xf32>
      %c0_70 = arith.constant 0 : index
      %c0_71 = arith.constant 0 : index
      %c0_72 = arith.constant 0 : index
      %145 = vector.load %arg14[%c0_70, %c0_71, %c0_72] : memref<3x8x128xf32, #tpu.memory_space<vmem>>, vector<1x8x128xf32>
      %146 = vector.shape_cast %145 : vector<1x8x128xf32> to vector<8x128xf32>
      %147 = arith.index_cast %c2_i32_66 : i32 to index
      %c0_73 = arith.constant 0 : index
      %c0_74 = arith.constant 0 : index
      %148 = vector.load %arg15[%147, %c0_73, %c0_74] : memref<4x8x512xf32, #tpu.memory_space<vmem>>, vector<1x8x512xf32>
      %149 = vector.shape_cast %148 : vector<1x8x512xf32> to vector<8x512xf32>
      %cst_75 = arith.constant dense<0.000000e+00> : vector<8x512xf32>
      %150 = tpu.matmul %144, %26, %cst_75 {dimension_numbers = #tpu.dot_dimension_numbers<[1], [0], [0], [1], [0, 0, 1, 1], [], []>} : vector<8x128xf32>, vector<128x512xf32>, vector<8x512xf32> -> vector<8x512xf32>
      %151 = arith.addf %149, %150 : vector<8x512xf32>
      %152 = vector.extract_strided_slice %151 {offsets = [0, 0], sizes = [8, 128], strides = [1, 1]} : vector<8x512xf32> to vector<8x128xf32>
      %153 = arith.negf %152 : vector<8x128xf32>
      %154 = math.exp %153 : vector<8x128xf32>
      %cst_76 = arith.constant 1.000000e+00 : f32
      %155 = vector.broadcast %cst_76 : f32 to vector<8x128xf32>
      %156 = arith.addf %155, %154 : vector<8x128xf32>
      %157 = arith.divf %155, %156 : vector<8x128xf32>
      %158 = vector.extract_strided_slice %151 {offsets = [0, 128], sizes = [8, 128], strides = [1, 1]} : vector<8x512xf32> to vector<8x128xf32>
      %159 = arith.negf %158 : vector<8x128xf32>
      %160 = math.exp %159 : vector<8x128xf32>
      %cst_77 = arith.constant 1.000000e+00 : f32
      %161 = vector.broadcast %cst_77 : f32 to vector<8x128xf32>
      %162 = arith.addf %161, %160 : vector<8x128xf32>
      %163 = arith.divf %161, %162 : vector<8x128xf32>
      %164 = vector.extract_strided_slice %151 {offsets = [0, 256], sizes = [8, 128], strides = [1, 1]} : vector<8x512xf32> to vector<8x128xf32>
      %165 = math.tanh %164 : vector<8x128xf32>
      %166 = vector.extract_strided_slice %151 {offsets = [0, 384], sizes = [8, 128], strides = [1, 1]} : vector<8x512xf32> to vector<8x128xf32>
      %167 = arith.negf %166 : vector<8x128xf32>
      %168 = math.exp %167 : vector<8x128xf32>
      %cst_78 = arith.constant 1.000000e+00 : f32
      %169 = vector.broadcast %cst_78 : f32 to vector<8x128xf32>
      %170 = arith.addf %169, %168 : vector<8x128xf32>
      %171 = arith.divf %169, %170 : vector<8x128xf32>
      %172 = arith.mulf %163, %146 : vector<8x128xf32>
      %173 = arith.mulf %157, %165 : vector<8x128xf32>
      %174 = arith.addf %172, %173 : vector<8x128xf32>
      %175 = math.tanh %174 : vector<8x128xf32>
      %176 = arith.mulf %171, %175 : vector<8x128xf32>
      %c0_79 = arith.constant 0 : index
      %c0_80 = arith.constant 0 : index
      %177 = vector.load %arg3[%c0_79, %c0_80] : memref<8x1xi32, #tpu.memory_space<vmem>>, vector<8x1xi32>
      %178 = arith.addi %0, %c2_i32_66 : i32
      %179 = vector.broadcast %178 : i32 to vector<8x1xi32>
      %180 = arith.cmpi sgt, %177, %179 : vector<8x1xi32>
      %181 = vector.shape_cast %180 : vector<8x1xi1> to vector<8x1xi1>
      %182 = vector.broadcast %181 : vector<8x1xi1> to vector<8x128xi1>
      %183 = arith.select %182, %176, %144 : vector<8x128xi1>, vector<8x128xf32>
      %c0_81 = arith.constant 0 : index
      %c0_82 = arith.constant 0 : index
      %c0_83 = arith.constant 0 : index
      %184 = vector.load %arg13[%c0_81, %c0_82, %c0_83] : memref<3x8x128xf32, #tpu.memory_space<vmem>>, vector<1x8x128xf32>
      %185 = vector.shape_cast %184 : vector<1x8x128xf32> to vector<8x128xf32>
      %186 = vector.shape_cast %183 : vector<8x128xf32> to vector<1x8x128xf32>
      tpu.vector_store %arg13[%c0_81, %c0_82, %c0_83], %186 {strides = array<i32>} : memref<3x8x128xf32, #tpu.memory_space<vmem>>, vector<1x8x128xf32>,
      %187 = vector.shape_cast %180 : vector<8x1xi1> to vector<8x1xi1>
      %188 = vector.broadcast %187 : vector<8x1xi1> to vector<8x128xi1>
      %189 = arith.select %188, %174, %146 : vector<8x128xi1>, vector<8x128xf32>
      %c0_84 = arith.constant 0 : index
      %c0_85 = arith.constant 0 : index
      %c0_86 = arith.constant 0 : index
      %190 = vector.load %arg14[%c0_84, %c0_85, %c0_86] : memref<3x8x128xf32, #tpu.memory_space<vmem>>, vector<1x8x128xf32>
      %191 = vector.shape_cast %190 : vector<1x8x128xf32> to vector<8x128xf32>
      %192 = vector.shape_cast %189 : vector<8x128xf32> to vector<1x8x128xf32>
      tpu.vector_store %arg14[%c0_84, %c0_85, %c0_86], %192 {strides = array<i32>} : memref<3x8x128xf32, #tpu.memory_space<vmem>>, vector<1x8x128xf32>,
      %cst_87 = arith.constant 0.000000e+00 : f32
      %193 = vector.shape_cast %180 : vector<8x1xi1> to vector<8x1xi1>
      %194 = vector.broadcast %193 : vector<8x1xi1> to vector<8x128xi1>
      %195 = vector.broadcast %cst_87 : f32 to vector<8x128xf32>
      %196 = arith.select %194, %176, %195 : vector<8x128xi1>, vector<8x128xf32>
      %197 = arith.index_cast %c2_i32_66 : i32 to index
      %c0_88 = arith.constant 0 : index
      %c0_89 = arith.constant 0 : index
      %198 = vector.load %arg16[%197, %c0_88, %c0_89] : memref<4x8x128xf32, #tpu.memory_space<vmem>>, vector<1x8x128xf32>
      %199 = vector.shape_cast %198 : vector<1x8x128xf32> to vector<8x128xf32>
      %200 = vector.shape_cast %196 : vector<8x128xf32> to vector<1x8x128xf32>
      tpu.vector_store %arg16[%197, %c0_88, %c0_89], %200 {strides = array<i32>} : memref<4x8x128xf32, #tpu.memory_space<vmem>>, vector<1x8x128xf32>,
      %c3_i32 = arith.constant 3 : i32
      %c0_90 = arith.constant 0 : index
      %c0_91 = arith.constant 0 : index
      %c0_92 = arith.constant 0 : index
      %201 = vector.load %arg13[%c0_90, %c0_91, %c0_92] : memref<3x8x128xf32, #tpu.memory_space<vmem>>, vector<1x8x128xf32>
      %202 = vector.shape_cast %201 : vector<1x8x128xf32> to vector<8x128xf32>
      %c0_93 = arith.constant 0 : index
      %c0_94 = arith.constant 0 : index
      %c0_95 = arith.constant 0 : index
      %203 = vector.load %arg14[%c0_93, %c0_94, %c0_95] : memref<3x8x128xf32, #tpu.memory_space<vmem>>, vector<1x8x128xf32>
      %204 = vector.shape_cast %203 : vector<1x8x128xf32> to vector<8x128xf32>
      %205 = arith.index_cast %c3_i32 : i32 to index
      %c0_96 = arith.constant 0 : index
      %c0_97 = arith.constant 0 : index
      %206 = vector.load %arg15[%205, %c0_96, %c0_97] : memref<4x8x512xf32, #tpu.memory_space<vmem>>, vector<1x8x512xf32>
      %207 = vector.shape_cast %206 : vector<1x8x512xf32> to vector<8x512xf32>
      %cst_98 = arith.constant dense<0.000000e+00> : vector<8x512xf32>
      %208 = tpu.matmul %202, %26, %cst_98 {dimension_numbers = #tpu.dot_dimension_numbers<[1], [0], [0], [1], [0, 0, 1, 1], [], []>} : vector<8x128xf32>, vector<128x512xf32>, vector<8x512xf32> -> vector<8x512xf32>
      %209 = arith.addf %207, %208 : vector<8x512xf32>
      %210 = vector.extract_strided_slice %209 {offsets = [0, 0], sizes = [8, 128], strides = [1, 1]} : vector<8x512xf32> to vector<8x128xf32>
      %211 = arith.negf %210 : vector<8x128xf32>
      %212 = math.exp %211 : vector<8x128xf32>
      %cst_99 = arith.constant 1.000000e+00 : f32
      %213 = vector.broadcast %cst_99 : f32 to vector<8x128xf32>
      %214 = arith.addf %213, %212 : vector<8x128xf32>
      %215 = arith.divf %213, %214 : vector<8x128xf32>
      %216 = vector.extract_strided_slice %209 {offsets = [0, 128], sizes = [8, 128], strides = [1, 1]} : vector<8x512xf32> to vector<8x128xf32>
      %217 = arith.negf %216 : vector<8x128xf32>
      %218 = math.exp %217 : vector<8x128xf32>
      %cst_100 = arith.constant 1.000000e+00 : f32
      %219 = vector.broadcast %cst_100 : f32 to vector<8x128xf32>
      %220 = arith.addf %219, %218 : vector<8x128xf32>
      %221 = arith.divf %219, %220 : vector<8x128xf32>
      %222 = vector.extract_strided_slice %209 {offsets = [0, 256], sizes = [8, 128], strides = [1, 1]} : vector<8x512xf32> to vector<8x128xf32>
      %223 = math.tanh %222 : vector<8x128xf32>
      %224 = vector.extract_strided_slice %209 {offsets = [0, 384], sizes = [8, 128], strides = [1, 1]} : vector<8x512xf32> to vector<8x128xf32>
      %225 = arith.negf %224 : vector<8x128xf32>
      %226 = math.exp %225 : vector<8x128xf32>
      %cst_101 = arith.constant 1.000000e+00 : f32
      %227 = vector.broadcast %cst_101 : f32 to vector<8x128xf32>
      %228 = arith.addf %227, %226 : vector<8x128xf32>
      %229 = arith.divf %227, %228 : vector<8x128xf32>
      %230 = arith.mulf %221, %204 : vector<8x128xf32>
      %231 = arith.mulf %215, %223 : vector<8x128xf32>
      %232 = arith.addf %230, %231 : vector<8x128xf32>
      %233 = math.tanh %232 : vector<8x128xf32>
      %234 = arith.mulf %229, %233 : vector<8x128xf32>
      %c0_102 = arith.constant 0 : index
      %c0_103 = arith.constant 0 : index
      %235 = vector.load %arg3[%c0_102, %c0_103] : memref<8x1xi32, #tpu.memory_space<vmem>>, vector<8x1xi32>
      %236 = arith.addi %0, %c3_i32 : i32
      %237 = vector.broadcast %236 : i32 to vector<8x1xi32>
      %238 = arith.cmpi sgt, %235, %237 : vector<8x1xi32>
      %239 = vector.shape_cast %238 : vector<8x1xi1> to vector<8x1xi1>
      %240 = vector.broadcast %239 : vector<8x1xi1> to vector<8x128xi1>
      %241 = arith.select %240, %234, %202 : vector<8x128xi1>, vector<8x128xf32>
      %c0_104 = arith.constant 0 : index
      %c0_105 = arith.constant 0 : index
      %c0_106 = arith.constant 0 : index
      %242 = vector.load %arg13[%c0_104, %c0_105, %c0_106] : memref<3x8x128xf32, #tpu.memory_space<vmem>>, vector<1x8x128xf32>
      %243 = vector.shape_cast %242 : vector<1x8x128xf32> to vector<8x128xf32>
      %244 = vector.shape_cast %241 : vector<8x128xf32> to vector<1x8x128xf32>
      tpu.vector_store %arg13[%c0_104, %c0_105, %c0_106], %244 {strides = array<i32>} : memref<3x8x128xf32, #tpu.memory_space<vmem>>, vector<1x8x128xf32>,
      %245 = vector.shape_cast %238 : vector<8x1xi1> to vector<8x1xi1>
      %246 = vector.broadcast %245 : vector<8x1xi1> to vector<8x128xi1>
      %247 = arith.select %246, %232, %204 : vector<8x128xi1>, vector<8x128xf32>
      %c0_107 = arith.constant 0 : index
      %c0_108 = arith.constant 0 : index
      %c0_109 = arith.constant 0 : index
      %248 = vector.load %arg14[%c0_107, %c0_108, %c0_109] : memref<3x8x128xf32, #tpu.memory_space<vmem>>, vector<1x8x128xf32>
      %249 = vector.shape_cast %248 : vector<1x8x128xf32> to vector<8x128xf32>
      %250 = vector.shape_cast %247 : vector<8x128xf32> to vector<1x8x128xf32>
      tpu.vector_store %arg14[%c0_107, %c0_108, %c0_109], %250 {strides = array<i32>} : memref<3x8x128xf32, #tpu.memory_space<vmem>>, vector<1x8x128xf32>,
      %cst_110 = arith.constant 0.000000e+00 : f32
      %251 = vector.shape_cast %238 : vector<8x1xi1> to vector<8x1xi1>
      %252 = vector.broadcast %251 : vector<8x1xi1> to vector<8x128xi1>
      %253 = vector.broadcast %cst_110 : f32 to vector<8x128xf32>
      %254 = arith.select %252, %234, %253 : vector<8x128xi1>, vector<8x128xf32>
      %255 = arith.index_cast %c3_i32 : i32 to index
      %c0_111 = arith.constant 0 : index
      %c0_112 = arith.constant 0 : index
      %256 = vector.load %arg16[%255, %c0_111, %c0_112] : memref<4x8x128xf32, #tpu.memory_space<vmem>>, vector<1x8x128xf32>
      %257 = vector.shape_cast %256 : vector<1x8x128xf32> to vector<8x128xf32>
      %258 = vector.shape_cast %254 : vector<8x128xf32> to vector<1x8x128xf32>
      tpu.vector_store %arg16[%255, %c0_111, %c0_112], %258 {strides = array<i32>} : memref<4x8x128xf32, #tpu.memory_space<vmem>>, vector<1x8x128xf32>,
      %c4_i32_113 = arith.constant 4 : i32
      %c0_114 = arith.constant 0 : index
      %c0_115 = arith.constant 0 : index
      %c0_116 = arith.constant 0 : index
      %259 = vector.load %arg16[%c0_114, %c0_115, %c0_116] : memref<4x8x128xf32, #tpu.memory_space<vmem>>, vector<4x8x128xf32>
      %260 = vector.shape_cast %259 : vector<4x8x128xf32> to vector<32x128xf32>
      %c0_117 = arith.constant 0 : index
      %c0_118 = arith.constant 0 : index
      %c0_119 = arith.constant 0 : index
      %261 = vector.load %arg5[%c0_117, %c0_118, %c0_119] : memref<2x128x512xf32, #tpu.memory_space<vmem>>, vector<1x128x512xf32>
      %262 = vector.shape_cast %261 : vector<1x128x512xf32> to vector<128x512xf32>
      %cst_120 = arith.constant dense<0.000000e+00> : vector<32x512xf32>
      %263 = tpu.matmul %260, %262, %cst_120 {dimension_numbers = #tpu.dot_dimension_numbers<[1], [0], [0], [1], [0, 0, 1, 1], [], []>} : vector<32x128xf32>, vector<128x512xf32>, vector<32x512xf32> -> vector<32x512xf32>
      %c1 = arith.constant 1 : index
      %c0_121 = arith.constant 0 : index
      %c0_122 = arith.constant 0 : index
      %264 = vector.load %arg7[%c1, %c0_121, %c0_122] : memref<3x1x512xf32, #tpu.memory_space<vmem>>, vector<1x1x512xf32>
      %265 = vector.shape_cast %264 : vector<1x1x512xf32> to vector<1x512xf32>
      %266 = vector.broadcast %265 : vector<1x512xf32> to vector<32x512xf32>
      %267 = arith.addf %263, %266 : vector<32x512xf32>
      %268 = vector.shape_cast %267 : vector<32x512xf32> to vector<4x8x512xf32>
      %c0_123 = arith.constant 0 : index
      %c0_124 = arith.constant 0 : index
      %c0_125 = arith.constant 0 : index
      %269 = vector.load %arg15[%c0_123, %c0_124, %c0_125] : memref<4x8x512xf32, #tpu.memory_space<vmem>>, vector<4x8x512xf32>
      tpu.vector_store %arg15[%c0_123, %c0_124, %c0_125], %268 {strides = array<i32>} : memref<4x8x512xf32, #tpu.memory_space<vmem>>, vector<4x8x512xf32>,
      %c1_126 = arith.constant 1 : index
      %c0_127 = arith.constant 0 : index
      %c0_128 = arith.constant 0 : index
      %270 = vector.load %arg6[%c1_126, %c0_127, %c0_128] : memref<3x128x512xf32, #tpu.memory_space<vmem>>, vector<1x128x512xf32>
      %271 = vector.shape_cast %270 : vector<1x128x512xf32> to vector<128x512xf32>
      %c0_i32_129 = arith.constant 0 : i32
      %c1_130 = arith.constant 1 : index
      %c0_131 = arith.constant 0 : index
      %c0_132 = arith.constant 0 : index
      %272 = vector.load %arg13[%c1_130, %c0_131, %c0_132] : memref<3x8x128xf32, #tpu.memory_space<vmem>>, vector<1x8x128xf32>
      %273 = vector.shape_cast %272 : vector<1x8x128xf32> to vector<8x128xf32>
      %c1_133 = arith.constant 1 : index
      %c0_134 = arith.constant 0 : index
      %c0_135 = arith.constant 0 : index
      %274 = vector.load %arg14[%c1_133, %c0_134, %c0_135] : memref<3x8x128xf32, #tpu.memory_space<vmem>>, vector<1x8x128xf32>
      %275 = vector.shape_cast %274 : vector<1x8x128xf32> to vector<8x128xf32>
      %276 = arith.index_cast %c0_i32_129 : i32 to index
      %c0_136 = arith.constant 0 : index
      %c0_137 = arith.constant 0 : index
      %277 = vector.load %arg15[%276, %c0_136, %c0_137] : memref<4x8x512xf32, #tpu.memory_space<vmem>>, vector<1x8x512xf32>
      %278 = vector.shape_cast %277 : vector<1x8x512xf32> to vector<8x512xf32>
      %cst_138 = arith.constant dense<0.000000e+00> : vector<8x512xf32>
      %279 = tpu.matmul %273, %271, %cst_138 {dimension_numbers = #tpu.dot_dimension_numbers<[1], [0], [0], [1], [0, 0, 1, 1], [], []>} : vector<8x128xf32>, vector<128x512xf32>, vector<8x512xf32> -> vector<8x512xf32>
      %280 = arith.addf %278, %279 : vector<8x512xf32>
      %281 = vector.extract_strided_slice %280 {offsets = [0, 0], sizes = [8, 128], strides = [1, 1]} : vector<8x512xf32> to vector<8x128xf32>
      %282 = arith.negf %281 : vector<8x128xf32>
      %283 = math.exp %282 : vector<8x128xf32>
      %cst_139 = arith.constant 1.000000e+00 : f32
      %284 = vector.broadcast %cst_139 : f32 to vector<8x128xf32>
      %285 = arith.addf %284, %283 : vector<8x128xf32>
      %286 = arith.divf %284, %285 : vector<8x128xf32>
      %287 = vector.extract_strided_slice %280 {offsets = [0, 128], sizes = [8, 128], strides = [1, 1]} : vector<8x512xf32> to vector<8x128xf32>
      %288 = arith.negf %287 : vector<8x128xf32>
      %289 = math.exp %288 : vector<8x128xf32>
      %cst_140 = arith.constant 1.000000e+00 : f32
      %290 = vector.broadcast %cst_140 : f32 to vector<8x128xf32>
      %291 = arith.addf %290, %289 : vector<8x128xf32>
      %292 = arith.divf %290, %291 : vector<8x128xf32>
      %293 = vector.extract_strided_slice %280 {offsets = [0, 256], sizes = [8, 128], strides = [1, 1]} : vector<8x512xf32> to vector<8x128xf32>
      %294 = math.tanh %293 : vector<8x128xf32>
      %295 = vector.extract_strided_slice %280 {offsets = [0, 384], sizes = [8, 128], strides = [1, 1]} : vector<8x512xf32> to vector<8x128xf32>
      %296 = arith.negf %295 : vector<8x128xf32>
      %297 = math.exp %296 : vector<8x128xf32>
      %cst_141 = arith.constant 1.000000e+00 : f32
      %298 = vector.broadcast %cst_141 : f32 to vector<8x128xf32>
      %299 = arith.addf %298, %297 : vector<8x128xf32>
      %300 = arith.divf %298, %299 : vector<8x128xf32>
      %301 = arith.mulf %292, %275 : vector<8x128xf32>
      %302 = arith.mulf %286, %294 : vector<8x128xf32>
      %303 = arith.addf %301, %302 : vector<8x128xf32>
      %304 = math.tanh %303 : vector<8x128xf32>
      %305 = arith.mulf %300, %304 : vector<8x128xf32>
      %c0_142 = arith.constant 0 : index
      %c0_143 = arith.constant 0 : index
      %306 = vector.load %arg3[%c0_142, %c0_143] : memref<8x1xi32, #tpu.memory_space<vmem>>, vector<8x1xi32>
      %307 = arith.addi %0, %c0_i32_129 : i32
      %308 = vector.broadcast %307 : i32 to vector<8x1xi32>
      %309 = arith.cmpi sgt, %306, %308 : vector<8x1xi32>
      %310 = vector.shape_cast %309 : vector<8x1xi1> to vector<8x1xi1>
      %311 = vector.broadcast %310 : vector<8x1xi1> to vector<8x128xi1>
      %312 = arith.select %311, %305, %273 : vector<8x128xi1>, vector<8x128xf32>
      %c1_144 = arith.constant 1 : index
      %c0_145 = arith.constant 0 : index
      %c0_146 = arith.constant 0 : index
      %313 = vector.load %arg13[%c1_144, %c0_145, %c0_146] : memref<3x8x128xf32, #tpu.memory_space<vmem>>, vector<1x8x128xf32>
      %314 = vector.shape_cast %313 : vector<1x8x128xf32> to vector<8x128xf32>
      %315 = vector.shape_cast %312 : vector<8x128xf32> to vector<1x8x128xf32>
      tpu.vector_store %arg13[%c1_144, %c0_145, %c0_146], %315 {strides = array<i32>} : memref<3x8x128xf32, #tpu.memory_space<vmem>>, vector<1x8x128xf32>,
      %316 = vector.shape_cast %309 : vector<8x1xi1> to vector<8x1xi1>
      %317 = vector.broadcast %316 : vector<8x1xi1> to vector<8x128xi1>
      %318 = arith.select %317, %303, %275 : vector<8x128xi1>, vector<8x128xf32>
      %c1_147 = arith.constant 1 : index
      %c0_148 = arith.constant 0 : index
      %c0_149 = arith.constant 0 : index
      %319 = vector.load %arg14[%c1_147, %c0_148, %c0_149] : memref<3x8x128xf32, #tpu.memory_space<vmem>>, vector<1x8x128xf32>
      %320 = vector.shape_cast %319 : vector<1x8x128xf32> to vector<8x128xf32>
      %321 = vector.shape_cast %318 : vector<8x128xf32> to vector<1x8x128xf32>
      tpu.vector_store %arg14[%c1_147, %c0_148, %c0_149], %321 {strides = array<i32>} : memref<3x8x128xf32, #tpu.memory_space<vmem>>, vector<1x8x128xf32>,
      %cst_150 = arith.constant 0.000000e+00 : f32
      %322 = vector.shape_cast %309 : vector<8x1xi1> to vector<8x1xi1>
      %323 = vector.broadcast %322 : vector<8x1xi1> to vector<8x128xi1>
      %324 = vector.broadcast %cst_150 : f32 to vector<8x128xf32>
      %325 = arith.select %323, %305, %324 : vector<8x128xi1>, vector<8x128xf32>
      %326 = arith.index_cast %c0_i32_129 : i32 to index
      %c0_151 = arith.constant 0 : index
      %c0_152 = arith.constant 0 : index
      %327 = vector.load %arg16[%326, %c0_151, %c0_152] : memref<4x8x128xf32, #tpu.memory_space<vmem>>, vector<1x8x128xf32>
      %328 = vector.shape_cast %327 : vector<1x8x128xf32> to vector<8x128xf32>
      %329 = vector.shape_cast %325 : vector<8x128xf32> to vector<1x8x128xf32>
      tpu.vector_store %arg16[%326, %c0_151, %c0_152], %329 {strides = array<i32>} : memref<4x8x128xf32, #tpu.memory_space<vmem>>, vector<1x8x128xf32>,
      %c1_i32_153 = arith.constant 1 : i32
      %c1_154 = arith.constant 1 : index
      %c0_155 = arith.constant 0 : index
      %c0_156 = arith.constant 0 : index
      %330 = vector.load %arg13[%c1_154, %c0_155, %c0_156] : memref<3x8x128xf32, #tpu.memory_space<vmem>>, vector<1x8x128xf32>
      %331 = vector.shape_cast %330 : vector<1x8x128xf32> to vector<8x128xf32>
      %c1_157 = arith.constant 1 : index
      %c0_158 = arith.constant 0 : index
      %c0_159 = arith.constant 0 : index
      %332 = vector.load %arg14[%c1_157, %c0_158, %c0_159] : memref<3x8x128xf32, #tpu.memory_space<vmem>>, vector<1x8x128xf32>
      %333 = vector.shape_cast %332 : vector<1x8x128xf32> to vector<8x128xf32>
      %334 = arith.index_cast %c1_i32_153 : i32 to index
      %c0_160 = arith.constant 0 : index
      %c0_161 = arith.constant 0 : index
      %335 = vector.load %arg15[%334, %c0_160, %c0_161] : memref<4x8x512xf32, #tpu.memory_space<vmem>>, vector<1x8x512xf32>
      %336 = vector.shape_cast %335 : vector<1x8x512xf32> to vector<8x512xf32>
      %cst_162 = arith.constant dense<0.000000e+00> : vector<8x512xf32>
      %337 = tpu.matmul %331, %271, %cst_162 {dimension_numbers = #tpu.dot_dimension_numbers<[1], [0], [0], [1], [0, 0, 1, 1], [], []>} : vector<8x128xf32>, vector<128x512xf32>, vector<8x512xf32> -> vector<8x512xf32>
      %338 = arith.addf %336, %337 : vector<8x512xf32>
      %339 = vector.extract_strided_slice %338 {offsets = [0, 0], sizes = [8, 128], strides = [1, 1]} : vector<8x512xf32> to vector<8x128xf32>
      %340 = arith.negf %339 : vector<8x128xf32>
      %341 = math.exp %340 : vector<8x128xf32>
      %cst_163 = arith.constant 1.000000e+00 : f32
      %342 = vector.broadcast %cst_163 : f32 to vector<8x128xf32>
      %343 = arith.addf %342, %341 : vector<8x128xf32>
      %344 = arith.divf %342, %343 : vector<8x128xf32>
      %345 = vector.extract_strided_slice %338 {offsets = [0, 128], sizes = [8, 128], strides = [1, 1]} : vector<8x512xf32> to vector<8x128xf32>
      %346 = arith.negf %345 : vector<8x128xf32>
      %347 = math.exp %346 : vector<8x128xf32>
      %cst_164 = arith.constant 1.000000e+00 : f32
      %348 = vector.broadcast %cst_164 : f32 to vector<8x128xf32>
      %349 = arith.addf %348, %347 : vector<8x128xf32>
      %350 = arith.divf %348, %349 : vector<8x128xf32>
      %351 = vector.extract_strided_slice %338 {offsets = [0, 256], sizes = [8, 128], strides = [1, 1]} : vector<8x512xf32> to vector<8x128xf32>
      %352 = math.tanh %351 : vector<8x128xf32>
      %353 = vector.extract_strided_slice %338 {offsets = [0, 384], sizes = [8, 128], strides = [1, 1]} : vector<8x512xf32> to vector<8x128xf32>
      %354 = arith.negf %353 : vector<8x128xf32>
      %355 = math.exp %354 : vector<8x128xf32>
      %cst_165 = arith.constant 1.000000e+00 : f32
      %356 = vector.broadcast %cst_165 : f32 to vector<8x128xf32>
      %357 = arith.addf %356, %355 : vector<8x128xf32>
      %358 = arith.divf %356, %357 : vector<8x128xf32>
      %359 = arith.mulf %350, %333 : vector<8x128xf32>
      %360 = arith.mulf %344, %352 : vector<8x128xf32>
      %361 = arith.addf %359, %360 : vector<8x128xf32>
      %362 = math.tanh %361 : vector<8x128xf32>
      %363 = arith.mulf %358, %362 : vector<8x128xf32>
      %c0_166 = arith.constant 0 : index
      %c0_167 = arith.constant 0 : index
      %364 = vector.load %arg3[%c0_166, %c0_167] : memref<8x1xi32, #tpu.memory_space<vmem>>, vector<8x1xi32>
      %365 = arith.addi %0, %c1_i32_153 : i32
      %366 = vector.broadcast %365 : i32 to vector<8x1xi32>
      %367 = arith.cmpi sgt, %364, %366 : vector<8x1xi32>
      %368 = vector.shape_cast %367 : vector<8x1xi1> to vector<8x1xi1>
      %369 = vector.broadcast %368 : vector<8x1xi1> to vector<8x128xi1>
      %370 = arith.select %369, %363, %331 : vector<8x128xi1>, vector<8x128xf32>
      %c1_168 = arith.constant 1 : index
      %c0_169 = arith.constant 0 : index
      %c0_170 = arith.constant 0 : index
      %371 = vector.load %arg13[%c1_168, %c0_169, %c0_170] : memref<3x8x128xf32, #tpu.memory_space<vmem>>, vector<1x8x128xf32>
      %372 = vector.shape_cast %371 : vector<1x8x128xf32> to vector<8x128xf32>
      %373 = vector.shape_cast %370 : vector<8x128xf32> to vector<1x8x128xf32>
      tpu.vector_store %arg13[%c1_168, %c0_169, %c0_170], %373 {strides = array<i32>} : memref<3x8x128xf32, #tpu.memory_space<vmem>>, vector<1x8x128xf32>,
      %374 = vector.shape_cast %367 : vector<8x1xi1> to vector<8x1xi1>
      %375 = vector.broadcast %374 : vector<8x1xi1> to vector<8x128xi1>
      %376 = arith.select %375, %361, %333 : vector<8x128xi1>, vector<8x128xf32>
      %c1_171 = arith.constant 1 : index
      %c0_172 = arith.constant 0 : index
      %c0_173 = arith.constant 0 : index
      %377 = vector.load %arg14[%c1_171, %c0_172, %c0_173] : memref<3x8x128xf32, #tpu.memory_space<vmem>>, vector<1x8x128xf32>
      %378 = vector.shape_cast %377 : vector<1x8x128xf32> to vector<8x128xf32>
      %379 = vector.shape_cast %376 : vector<8x128xf32> to vector<1x8x128xf32>
      tpu.vector_store %arg14[%c1_171, %c0_172, %c0_173], %379 {strides = array<i32>} : memref<3x8x128xf32, #tpu.memory_space<vmem>>, vector<1x8x128xf32>,
      %cst_174 = arith.constant 0.000000e+00 : f32
      %380 = vector.shape_cast %367 : vector<8x1xi1> to vector<8x1xi1>
      %381 = vector.broadcast %380 : vector<8x1xi1> to vector<8x128xi1>
      %382 = vector.broadcast %cst_174 : f32 to vector<8x128xf32>
      %383 = arith.select %381, %363, %382 : vector<8x128xi1>, vector<8x128xf32>
      %384 = arith.index_cast %c1_i32_153 : i32 to index
      %c0_175 = arith.constant 0 : index
      %c0_176 = arith.constant 0 : index
      %385 = vector.load %arg16[%384, %c0_175, %c0_176] : memref<4x8x128xf32, #tpu.memory_space<vmem>>, vector<1x8x128xf32>
      %386 = vector.shape_cast %385 : vector<1x8x128xf32> to vector<8x128xf32>
      %387 = vector.shape_cast %383 : vector<8x128xf32> to vector<1x8x128xf32>
      tpu.vector_store %arg16[%384, %c0_175, %c0_176], %387 {strides = array<i32>} : memref<4x8x128xf32, #tpu.memory_space<vmem>>, vector<1x8x128xf32>,
      %c2_i32_177 = arith.constant 2 : i32
      %c1_178 = arith.constant 1 : index
      %c0_179 = arith.constant 0 : index
      %c0_180 = arith.constant 0 : index
      %388 = vector.load %arg13[%c1_178, %c0_179, %c0_180] : memref<3x8x128xf32, #tpu.memory_space<vmem>>, vector<1x8x128xf32>
      %389 = vector.shape_cast %388 : vector<1x8x128xf32> to vector<8x128xf32>
      %c1_181 = arith.constant 1 : index
      %c0_182 = arith.constant 0 : index
      %c0_183 = arith.constant 0 : index
      %390 = vector.load %arg14[%c1_181, %c0_182, %c0_183] : memref<3x8x128xf32, #tpu.memory_space<vmem>>, vector<1x8x128xf32>
      %391 = vector.shape_cast %390 : vector<1x8x128xf32> to vector<8x128xf32>
      %392 = arith.index_cast %c2_i32_177 : i32 to index
      %c0_184 = arith.constant 0 : index
      %c0_185 = arith.constant 0 : index
      %393 = vector.load %arg15[%392, %c0_184, %c0_185] : memref<4x8x512xf32, #tpu.memory_space<vmem>>, vector<1x8x512xf32>
      %394 = vector.shape_cast %393 : vector<1x8x512xf32> to vector<8x512xf32>
      %cst_186 = arith.constant dense<0.000000e+00> : vector<8x512xf32>
      %395 = tpu.matmul %389, %271, %cst_186 {dimension_numbers = #tpu.dot_dimension_numbers<[1], [0], [0], [1], [0, 0, 1, 1], [], []>} : vector<8x128xf32>, vector<128x512xf32>, vector<8x512xf32> -> vector<8x512xf32>
      %396 = arith.addf %394, %395 : vector<8x512xf32>
      %397 = vector.extract_strided_slice %396 {offsets = [0, 0], sizes = [8, 128], strides = [1, 1]} : vector<8x512xf32> to vector<8x128xf32>
      %398 = arith.negf %397 : vector<8x128xf32>
      %399 = math.exp %398 : vector<8x128xf32>
      %cst_187 = arith.constant 1.000000e+00 : f32
      %400 = vector.broadcast %cst_187 : f32 to vector<8x128xf32>
      %401 = arith.addf %400, %399 : vector<8x128xf32>
      %402 = arith.divf %400, %401 : vector<8x128xf32>
      %403 = vector.extract_strided_slice %396 {offsets = [0, 128], sizes = [8, 128], strides = [1, 1]} : vector<8x512xf32> to vector<8x128xf32>
      %404 = arith.negf %403 : vector<8x128xf32>
      %405 = math.exp %404 : vector<8x128xf32>
      %cst_188 = arith.constant 1.000000e+00 : f32
      %406 = vector.broadcast %cst_188 : f32 to vector<8x128xf32>
      %407 = arith.addf %406, %405 : vector<8x128xf32>
      %408 = arith.divf %406, %407 : vector<8x128xf32>
      %409 = vector.extract_strided_slice %396 {offsets = [0, 256], sizes = [8, 128], strides = [1, 1]} : vector<8x512xf32> to vector<8x128xf32>
      %410 = math.tanh %409 : vector<8x128xf32>
      %411 = vector.extract_strided_slice %396 {offsets = [0, 384], sizes = [8, 128], strides = [1, 1]} : vector<8x512xf32> to vector<8x128xf32>
      %412 = arith.negf %411 : vector<8x128xf32>
      %413 = math.exp %412 : vector<8x128xf32>
      %cst_189 = arith.constant 1.000000e+00 : f32
      %414 = vector.broadcast %cst_189 : f32 to vector<8x128xf32>
      %415 = arith.addf %414, %413 : vector<8x128xf32>
      %416 = arith.divf %414, %415 : vector<8x128xf32>
      %417 = arith.mulf %408, %391 : vector<8x128xf32>
      %418 = arith.mulf %402, %410 : vector<8x128xf32>
      %419 = arith.addf %417, %418 : vector<8x128xf32>
      %420 = math.tanh %419 : vector<8x128xf32>
      %421 = arith.mulf %416, %420 : vector<8x128xf32>
      %c0_190 = arith.constant 0 : index
      %c0_191 = arith.constant 0 : index
      %422 = vector.load %arg3[%c0_190, %c0_191] : memref<8x1xi32, #tpu.memory_space<vmem>>, vector<8x1xi32>
      %423 = arith.addi %0, %c2_i32_177 : i32
      %424 = vector.broadcast %423 : i32 to vector<8x1xi32>
      %425 = arith.cmpi sgt, %422, %424 : vector<8x1xi32>
      %426 = vector.shape_cast %425 : vector<8x1xi1> to vector<8x1xi1>
      %427 = vector.broadcast %426 : vector<8x1xi1> to vector<8x128xi1>
      %428 = arith.select %427, %421, %389 : vector<8x128xi1>, vector<8x128xf32>
      %c1_192 = arith.constant 1 : index
      %c0_193 = arith.constant 0 : index
      %c0_194 = arith.constant 0 : index
      %429 = vector.load %arg13[%c1_192, %c0_193, %c0_194] : memref<3x8x128xf32, #tpu.memory_space<vmem>>, vector<1x8x128xf32>
      %430 = vector.shape_cast %429 : vector<1x8x128xf32> to vector<8x128xf32>
      %431 = vector.shape_cast %428 : vector<8x128xf32> to vector<1x8x128xf32>
      tpu.vector_store %arg13[%c1_192, %c0_193, %c0_194], %431 {strides = array<i32>} : memref<3x8x128xf32, #tpu.memory_space<vmem>>, vector<1x8x128xf32>,
      %432 = vector.shape_cast %425 : vector<8x1xi1> to vector<8x1xi1>
      %433 = vector.broadcast %432 : vector<8x1xi1> to vector<8x128xi1>
      %434 = arith.select %433, %419, %391 : vector<8x128xi1>, vector<8x128xf32>
      %c1_195 = arith.constant 1 : index
      %c0_196 = arith.constant 0 : index
      %c0_197 = arith.constant 0 : index
      %435 = vector.load %arg14[%c1_195, %c0_196, %c0_197] : memref<3x8x128xf32, #tpu.memory_space<vmem>>, vector<1x8x128xf32>
      %436 = vector.shape_cast %435 : vector<1x8x128xf32> to vector<8x128xf32>
      %437 = vector.shape_cast %434 : vector<8x128xf32> to vector<1x8x128xf32>
      tpu.vector_store %arg14[%c1_195, %c0_196, %c0_197], %437 {strides = array<i32>} : memref<3x8x128xf32, #tpu.memory_space<vmem>>, vector<1x8x128xf32>,
      %cst_198 = arith.constant 0.000000e+00 : f32
      %438 = vector.shape_cast %425 : vector<8x1xi1> to vector<8x1xi1>
      %439 = vector.broadcast %438 : vector<8x1xi1> to vector<8x128xi1>
      %440 = vector.broadcast %cst_198 : f32 to vector<8x128xf32>
      %441 = arith.select %439, %421, %440 : vector<8x128xi1>, vector<8x128xf32>
      %442 = arith.index_cast %c2_i32_177 : i32 to index
      %c0_199 = arith.constant 0 : index
      %c0_200 = arith.constant 0 : index
      %443 = vector.load %arg16[%442, %c0_199, %c0_200] : memref<4x8x128xf32, #tpu.memory_space<vmem>>, vector<1x8x128xf32>
      %444 = vector.shape_cast %443 : vector<1x8x128xf32> to vector<8x128xf32>
      %445 = vector.shape_cast %441 : vector<8x128xf32> to vector<1x8x128xf32>
      tpu.vector_store %arg16[%442, %c0_199, %c0_200], %445 {strides = array<i32>} : memref<4x8x128xf32, #tpu.memory_space<vmem>>, vector<1x8x128xf32>,
      %c3_i32_201 = arith.constant 3 : i32
      %c1_202 = arith.constant 1 : index
      %c0_203 = arith.constant 0 : index
      %c0_204 = arith.constant 0 : index
      %446 = vector.load %arg13[%c1_202, %c0_203, %c0_204] : memref<3x8x128xf32, #tpu.memory_space<vmem>>, vector<1x8x128xf32>
      %447 = vector.shape_cast %446 : vector<1x8x128xf32> to vector<8x128xf32>
      %c1_205 = arith.constant 1 : index
      %c0_206 = arith.constant 0 : index
      %c0_207 = arith.constant 0 : index
      %448 = vector.load %arg14[%c1_205, %c0_206, %c0_207] : memref<3x8x128xf32, #tpu.memory_space<vmem>>, vector<1x8x128xf32>
      %449 = vector.shape_cast %448 : vector<1x8x128xf32> to vector<8x128xf32>
      %450 = arith.index_cast %c3_i32_201 : i32 to index
      %c0_208 = arith.constant 0 : index
      %c0_209 = arith.constant 0 : index
      %451 = vector.load %arg15[%450, %c0_208, %c0_209] : memref<4x8x512xf32, #tpu.memory_space<vmem>>, vector<1x8x512xf32>
      %452 = vector.shape_cast %451 : vector<1x8x512xf32> to vector<8x512xf32>
      %cst_210 = arith.constant dense<0.000000e+00> : vector<8x512xf32>
      %453 = tpu.matmul %447, %271, %cst_210 {dimension_numbers = #tpu.dot_dimension_numbers<[1], [0], [0], [1], [0, 0, 1, 1], [], []>} : vector<8x128xf32>, vector<128x512xf32>, vector<8x512xf32> -> vector<8x512xf32>
      %454 = arith.addf %452, %453 : vector<8x512xf32>
      %455 = vector.extract_strided_slice %454 {offsets = [0, 0], sizes = [8, 128], strides = [1, 1]} : vector<8x512xf32> to vector<8x128xf32>
      %456 = arith.negf %455 : vector<8x128xf32>
      %457 = math.exp %456 : vector<8x128xf32>
      %cst_211 = arith.constant 1.000000e+00 : f32
      %458 = vector.broadcast %cst_211 : f32 to vector<8x128xf32>
      %459 = arith.addf %458, %457 : vector<8x128xf32>
      %460 = arith.divf %458, %459 : vector<8x128xf32>
      %461 = vector.extract_strided_slice %454 {offsets = [0, 128], sizes = [8, 128], strides = [1, 1]} : vector<8x512xf32> to vector<8x128xf32>
      %462 = arith.negf %461 : vector<8x128xf32>
      %463 = math.exp %462 : vector<8x128xf32>
      %cst_212 = arith.constant 1.000000e+00 : f32
      %464 = vector.broadcast %cst_212 : f32 to vector<8x128xf32>
      %465 = arith.addf %464, %463 : vector<8x128xf32>
      %466 = arith.divf %464, %465 : vector<8x128xf32>
      %467 = vector.extract_strided_slice %454 {offsets = [0, 256], sizes = [8, 128], strides = [1, 1]} : vector<8x512xf32> to vector<8x128xf32>
      %468 = math.tanh %467 : vector<8x128xf32>
      %469 = vector.extract_strided_slice %454 {offsets = [0, 384], sizes = [8, 128], strides = [1, 1]} : vector<8x512xf32> to vector<8x128xf32>
      %470 = arith.negf %469 : vector<8x128xf32>
      %471 = math.exp %470 : vector<8x128xf32>
      %cst_213 = arith.constant 1.000000e+00 : f32
      %472 = vector.broadcast %cst_213 : f32 to vector<8x128xf32>
      %473 = arith.addf %472, %471 : vector<8x128xf32>
      %474 = arith.divf %472, %473 : vector<8x128xf32>
      %475 = arith.mulf %466, %449 : vector<8x128xf32>
      %476 = arith.mulf %460, %468 : vector<8x128xf32>
      %477 = arith.addf %475, %476 : vector<8x128xf32>
      %478 = math.tanh %477 : vector<8x128xf32>
      %479 = arith.mulf %474, %478 : vector<8x128xf32>
      %c0_214 = arith.constant 0 : index
      %c0_215 = arith.constant 0 : index
      %480 = vector.load %arg3[%c0_214, %c0_215] : memref<8x1xi32, #tpu.memory_space<vmem>>, vector<8x1xi32>
      %481 = arith.addi %0, %c3_i32_201 : i32
      %482 = vector.broadcast %481 : i32 to vector<8x1xi32>
      %483 = arith.cmpi sgt, %480, %482 : vector<8x1xi32>
      %484 = vector.shape_cast %483 : vector<8x1xi1> to vector<8x1xi1>
      %485 = vector.broadcast %484 : vector<8x1xi1> to vector<8x128xi1>
      %486 = arith.select %485, %479, %447 : vector<8x128xi1>, vector<8x128xf32>
      %c1_216 = arith.constant 1 : index
      %c0_217 = arith.constant 0 : index
      %c0_218 = arith.constant 0 : index
      %487 = vector.load %arg13[%c1_216, %c0_217, %c0_218] : memref<3x8x128xf32, #tpu.memory_space<vmem>>, vector<1x8x128xf32>
      %488 = vector.shape_cast %487 : vector<1x8x128xf32> to vector<8x128xf32>
      %489 = vector.shape_cast %486 : vector<8x128xf32> to vector<1x8x128xf32>
      tpu.vector_store %arg13[%c1_216, %c0_217, %c0_218], %489 {strides = array<i32>} : memref<3x8x128xf32, #tpu.memory_space<vmem>>, vector<1x8x128xf32>,
      %490 = vector.shape_cast %483 : vector<8x1xi1> to vector<8x1xi1>
      %491 = vector.broadcast %490 : vector<8x1xi1> to vector<8x128xi1>
      %492 = arith.select %491, %477, %449 : vector<8x128xi1>, vector<8x128xf32>
      %c1_219 = arith.constant 1 : index
      %c0_220 = arith.constant 0 : index
      %c0_221 = arith.constant 0 : index
      %493 = vector.load %arg14[%c1_219, %c0_220, %c0_221] : memref<3x8x128xf32, #tpu.memory_space<vmem>>, vector<1x8x128xf32>
      %494 = vector.shape_cast %493 : vector<1x8x128xf32> to vector<8x128xf32>
      %495 = vector.shape_cast %492 : vector<8x128xf32> to vector<1x8x128xf32>
      tpu.vector_store %arg14[%c1_219, %c0_220, %c0_221], %495 {strides = array<i32>} : memref<3x8x128xf32, #tpu.memory_space<vmem>>, vector<1x8x128xf32>,
      %cst_222 = arith.constant 0.000000e+00 : f32
      %496 = vector.shape_cast %483 : vector<8x1xi1> to vector<8x1xi1>
      %497 = vector.broadcast %496 : vector<8x1xi1> to vector<8x128xi1>
      %498 = vector.broadcast %cst_222 : f32 to vector<8x128xf32>
      %499 = arith.select %497, %479, %498 : vector<8x128xi1>, vector<8x128xf32>
      %500 = arith.index_cast %c3_i32_201 : i32 to index
      %c0_223 = arith.constant 0 : index
      %c0_224 = arith.constant 0 : index
      %501 = vector.load %arg16[%500, %c0_223, %c0_224] : memref<4x8x128xf32, #tpu.memory_space<vmem>>, vector<1x8x128xf32>
      %502 = vector.shape_cast %501 : vector<1x8x128xf32> to vector<8x128xf32>
      %503 = vector.shape_cast %499 : vector<8x128xf32> to vector<1x8x128xf32>
      tpu.vector_store %arg16[%500, %c0_223, %c0_224], %503 {strides = array<i32>} : memref<4x8x128xf32, #tpu.memory_space<vmem>>, vector<1x8x128xf32>,
      %c4_i32_225 = arith.constant 4 : i32
      %c0_226 = arith.constant 0 : index
      %c0_227 = arith.constant 0 : index
      %c0_228 = arith.constant 0 : index
      %504 = vector.load %arg16[%c0_226, %c0_227, %c0_228] : memref<4x8x128xf32, #tpu.memory_space<vmem>>, vector<4x8x128xf32>
      %505 = vector.shape_cast %504 : vector<4x8x128xf32> to vector<32x128xf32>
      %c1_229 = arith.constant 1 : index
      %c0_230 = arith.constant 0 : index
      %c0_231 = arith.constant 0 : index
      %506 = vector.load %arg5[%c1_229, %c0_230, %c0_231] : memref<2x128x512xf32, #tpu.memory_space<vmem>>, vector<1x128x512xf32>
      %507 = vector.shape_cast %506 : vector<1x128x512xf32> to vector<128x512xf32>
      %cst_232 = arith.constant dense<0.000000e+00> : vector<32x512xf32>
      %508 = tpu.matmul %505, %507, %cst_232 {dimension_numbers = #tpu.dot_dimension_numbers<[1], [0], [0], [1], [0, 0, 1, 1], [], []>} : vector<32x128xf32>, vector<128x512xf32>, vector<32x512xf32> -> vector<32x512xf32>
      %c2 = arith.constant 2 : index
      %c0_233 = arith.constant 0 : index
      %c0_234 = arith.constant 0 : index
      %509 = vector.load %arg7[%c2, %c0_233, %c0_234] : memref<3x1x512xf32, #tpu.memory_space<vmem>>, vector<1x1x512xf32>
      %510 = vector.shape_cast %509 : vector<1x1x512xf32> to vector<1x512xf32>
      %511 = vector.broadcast %510 : vector<1x512xf32> to vector<32x512xf32>
      %512 = arith.addf %508, %511 : vector<32x512xf32>
      %513 = vector.shape_cast %512 : vector<32x512xf32> to vector<4x8x512xf32>
      %c0_235 = arith.constant 0 : index
      %c0_236 = arith.constant 0 : index
      %c0_237 = arith.constant 0 : index
      %514 = vector.load %arg15[%c0_235, %c0_236, %c0_237] : memref<4x8x512xf32, #tpu.memory_space<vmem>>, vector<4x8x512xf32>
      tpu.vector_store %arg15[%c0_235, %c0_236, %c0_237], %513 {strides = array<i32>} : memref<4x8x512xf32, #tpu.memory_space<vmem>>, vector<4x8x512xf32>,
      %c2_238 = arith.constant 2 : index
      %c0_239 = arith.constant 0 : index
      %c0_240 = arith.constant 0 : index
      %515 = vector.load %arg6[%c2_238, %c0_239, %c0_240] : memref<3x128x512xf32, #tpu.memory_space<vmem>>, vector<1x128x512xf32>
      %516 = vector.shape_cast %515 : vector<1x128x512xf32> to vector<128x512xf32>
      %c0_i32_241 = arith.constant 0 : i32
      %c2_242 = arith.constant 2 : index
      %c0_243 = arith.constant 0 : index
      %c0_244 = arith.constant 0 : index
      %517 = vector.load %arg13[%c2_242, %c0_243, %c0_244] : memref<3x8x128xf32, #tpu.memory_space<vmem>>, vector<1x8x128xf32>
      %518 = vector.shape_cast %517 : vector<1x8x128xf32> to vector<8x128xf32>
      %c2_245 = arith.constant 2 : index
      %c0_246 = arith.constant 0 : index
      %c0_247 = arith.constant 0 : index
      %519 = vector.load %arg14[%c2_245, %c0_246, %c0_247] : memref<3x8x128xf32, #tpu.memory_space<vmem>>, vector<1x8x128xf32>
      %520 = vector.shape_cast %519 : vector<1x8x128xf32> to vector<8x128xf32>
      %521 = arith.index_cast %c0_i32_241 : i32 to index
      %c0_248 = arith.constant 0 : index
      %c0_249 = arith.constant 0 : index
      %522 = vector.load %arg15[%521, %c0_248, %c0_249] : memref<4x8x512xf32, #tpu.memory_space<vmem>>, vector<1x8x512xf32>
      %523 = vector.shape_cast %522 : vector<1x8x512xf32> to vector<8x512xf32>
      %cst_250 = arith.constant dense<0.000000e+00> : vector<8x512xf32>
      %524 = tpu.matmul %518, %516, %cst_250 {dimension_numbers = #tpu.dot_dimension_numbers<[1], [0], [0], [1], [0, 0, 1, 1], [], []>} : vector<8x128xf32>, vector<128x512xf32>, vector<8x512xf32> -> vector<8x512xf32>
      %525 = arith.addf %523, %524 : vector<8x512xf32>
      %526 = vector.extract_strided_slice %525 {offsets = [0, 0], sizes = [8, 128], strides = [1, 1]} : vector<8x512xf32> to vector<8x128xf32>
      %527 = arith.negf %526 : vector<8x128xf32>
      %528 = math.exp %527 : vector<8x128xf32>
      %cst_251 = arith.constant 1.000000e+00 : f32
      %529 = vector.broadcast %cst_251 : f32 to vector<8x128xf32>
      %530 = arith.addf %529, %528 : vector<8x128xf32>
      %531 = arith.divf %529, %530 : vector<8x128xf32>
      %532 = vector.extract_strided_slice %525 {offsets = [0, 128], sizes = [8, 128], strides = [1, 1]} : vector<8x512xf32> to vector<8x128xf32>
      %533 = arith.negf %532 : vector<8x128xf32>
      %534 = math.exp %533 : vector<8x128xf32>
      %cst_252 = arith.constant 1.000000e+00 : f32
      %535 = vector.broadcast %cst_252 : f32 to vector<8x128xf32>
      %536 = arith.addf %535, %534 : vector<8x128xf32>
      %537 = arith.divf %535, %536 : vector<8x128xf32>
      %538 = vector.extract_strided_slice %525 {offsets = [0, 256], sizes = [8, 128], strides = [1, 1]} : vector<8x512xf32> to vector<8x128xf32>
      %539 = math.tanh %538 : vector<8x128xf32>
      %540 = vector.extract_strided_slice %525 {offsets = [0, 384], sizes = [8, 128], strides = [1, 1]} : vector<8x512xf32> to vector<8x128xf32>
      %541 = arith.negf %540 : vector<8x128xf32>
      %542 = math.exp %541 : vector<8x128xf32>
      %cst_253 = arith.constant 1.000000e+00 : f32
      %543 = vector.broadcast %cst_253 : f32 to vector<8x128xf32>
      %544 = arith.addf %543, %542 : vector<8x128xf32>
      %545 = arith.divf %543, %544 : vector<8x128xf32>
      %546 = arith.mulf %537, %520 : vector<8x128xf32>
      %547 = arith.mulf %531, %539 : vector<8x128xf32>
      %548 = arith.addf %546, %547 : vector<8x128xf32>
      %549 = math.tanh %548 : vector<8x128xf32>
      %550 = arith.mulf %545, %549 : vector<8x128xf32>
      %c0_254 = arith.constant 0 : index
      %c0_255 = arith.constant 0 : index
      %551 = vector.load %arg3[%c0_254, %c0_255] : memref<8x1xi32, #tpu.memory_space<vmem>>, vector<8x1xi32>
      %552 = arith.addi %0, %c0_i32_241 : i32
      %553 = vector.broadcast %552 : i32 to vector<8x1xi32>
      %554 = arith.cmpi sgt, %551, %553 : vector<8x1xi32>
      %555 = vector.shape_cast %554 : vector<8x1xi1> to vector<8x1xi1>
      %556 = vector.broadcast %555 : vector<8x1xi1> to vector<8x128xi1>
      %557 = arith.select %556, %550, %518 : vector<8x128xi1>, vector<8x128xf32>
      %c2_256 = arith.constant 2 : index
      %c0_257 = arith.constant 0 : index
      %c0_258 = arith.constant 0 : index
      %558 = vector.load %arg13[%c2_256, %c0_257, %c0_258] : memref<3x8x128xf32, #tpu.memory_space<vmem>>, vector<1x8x128xf32>
      %559 = vector.shape_cast %558 : vector<1x8x128xf32> to vector<8x128xf32>
      %560 = vector.shape_cast %557 : vector<8x128xf32> to vector<1x8x128xf32>
      tpu.vector_store %arg13[%c2_256, %c0_257, %c0_258], %560 {strides = array<i32>} : memref<3x8x128xf32, #tpu.memory_space<vmem>>, vector<1x8x128xf32>,
      %561 = vector.shape_cast %554 : vector<8x1xi1> to vector<8x1xi1>
      %562 = vector.broadcast %561 : vector<8x1xi1> to vector<8x128xi1>
      %563 = arith.select %562, %548, %520 : vector<8x128xi1>, vector<8x128xf32>
      %c2_259 = arith.constant 2 : index
      %c0_260 = arith.constant 0 : index
      %c0_261 = arith.constant 0 : index
      %564 = vector.load %arg14[%c2_259, %c0_260, %c0_261] : memref<3x8x128xf32, #tpu.memory_space<vmem>>, vector<1x8x128xf32>
      %565 = vector.shape_cast %564 : vector<1x8x128xf32> to vector<8x128xf32>
      %566 = vector.shape_cast %563 : vector<8x128xf32> to vector<1x8x128xf32>
      tpu.vector_store %arg14[%c2_259, %c0_260, %c0_261], %566 {strides = array<i32>} : memref<3x8x128xf32, #tpu.memory_space<vmem>>, vector<1x8x128xf32>,
      %cst_262 = arith.constant 0.000000e+00 : f32
      %567 = vector.shape_cast %554 : vector<8x1xi1> to vector<8x1xi1>
      %568 = vector.broadcast %567 : vector<8x1xi1> to vector<8x128xi1>
      %569 = vector.broadcast %cst_262 : f32 to vector<8x128xf32>
      %570 = arith.select %568, %550, %569 : vector<8x128xi1>, vector<8x128xf32>
      %571 = arith.index_cast %c0_i32_241 : i32 to index
      %c0_263 = arith.constant 0 : index
      %c0_264 = arith.constant 0 : index
      %572 = vector.load %arg10[%571, %c0_263, %c0_264] : memref<4x8x128xf32, #tpu.memory_space<vmem>>, vector<1x8x128xf32>
      %573 = vector.shape_cast %572 : vector<1x8x128xf32> to vector<8x128xf32>
      %574 = vector.shape_cast %570 : vector<8x128xf32> to vector<1x8x128xf32>
      tpu.vector_store %arg10[%571, %c0_263, %c0_264], %574 {strides = array<i32>} : memref<4x8x128xf32, #tpu.memory_space<vmem>>, vector<1x8x128xf32>,
      %c1_i32_265 = arith.constant 1 : i32
      %c2_266 = arith.constant 2 : index
      %c0_267 = arith.constant 0 : index
      %c0_268 = arith.constant 0 : index
      %575 = vector.load %arg13[%c2_266, %c0_267, %c0_268] : memref<3x8x128xf32, #tpu.memory_space<vmem>>, vector<1x8x128xf32>
      %576 = vector.shape_cast %575 : vector<1x8x128xf32> to vector<8x128xf32>
      %c2_269 = arith.constant 2 : index
      %c0_270 = arith.constant 0 : index
      %c0_271 = arith.constant 0 : index
      %577 = vector.load %arg14[%c2_269, %c0_270, %c0_271] : memref<3x8x128xf32, #tpu.memory_space<vmem>>, vector<1x8x128xf32>
      %578 = vector.shape_cast %577 : vector<1x8x128xf32> to vector<8x128xf32>
      %579 = arith.index_cast %c1_i32_265 : i32 to index
      %c0_272 = arith.constant 0 : index
      %c0_273 = arith.constant 0 : index
      %580 = vector.load %arg15[%579, %c0_272, %c0_273] : memref<4x8x512xf32, #tpu.memory_space<vmem>>, vector<1x8x512xf32>
      %581 = vector.shape_cast %580 : vector<1x8x512xf32> to vector<8x512xf32>
      %cst_274 = arith.constant dense<0.000000e+00> : vector<8x512xf32>
      %582 = tpu.matmul %576, %516, %cst_274 {dimension_numbers = #tpu.dot_dimension_numbers<[1], [0], [0], [1], [0, 0, 1, 1], [], []>} : vector<8x128xf32>, vector<128x512xf32>, vector<8x512xf32> -> vector<8x512xf32>
      %583 = arith.addf %581, %582 : vector<8x512xf32>
      %584 = vector.extract_strided_slice %583 {offsets = [0, 0], sizes = [8, 128], strides = [1, 1]} : vector<8x512xf32> to vector<8x128xf32>
      %585 = arith.negf %584 : vector<8x128xf32>
      %586 = math.exp %585 : vector<8x128xf32>
      %cst_275 = arith.constant 1.000000e+00 : f32
      %587 = vector.broadcast %cst_275 : f32 to vector<8x128xf32>
      %588 = arith.addf %587, %586 : vector<8x128xf32>
      %589 = arith.divf %587, %588 : vector<8x128xf32>
      %590 = vector.extract_strided_slice %583 {offsets = [0, 128], sizes = [8, 128], strides = [1, 1]} : vector<8x512xf32> to vector<8x128xf32>
      %591 = arith.negf %590 : vector<8x128xf32>
      %592 = math.exp %591 : vector<8x128xf32>
      %cst_276 = arith.constant 1.000000e+00 : f32
      %593 = vector.broadcast %cst_276 : f32 to vector<8x128xf32>
      %594 = arith.addf %593, %592 : vector<8x128xf32>
      %595 = arith.divf %593, %594 : vector<8x128xf32>
      %596 = vector.extract_strided_slice %583 {offsets = [0, 256], sizes = [8, 128], strides = [1, 1]} : vector<8x512xf32> to vector<8x128xf32>
      %597 = math.tanh %596 : vector<8x128xf32>
      %598 = vector.extract_strided_slice %583 {offsets = [0, 384], sizes = [8, 128], strides = [1, 1]} : vector<8x512xf32> to vector<8x128xf32>
      %599 = arith.negf %598 : vector<8x128xf32>
      %600 = math.exp %599 : vector<8x128xf32>
      %cst_277 = arith.constant 1.000000e+00 : f32
      %601 = vector.broadcast %cst_277 : f32 to vector<8x128xf32>
      %602 = arith.addf %601, %600 : vector<8x128xf32>
      %603 = arith.divf %601, %602 : vector<8x128xf32>
      %604 = arith.mulf %595, %578 : vector<8x128xf32>
      %605 = arith.mulf %589, %597 : vector<8x128xf32>
      %606 = arith.addf %604, %605 : vector<8x128xf32>
      %607 = math.tanh %606 : vector<8x128xf32>
      %608 = arith.mulf %603, %607 : vector<8x128xf32>
      %c0_278 = arith.constant 0 : index
      %c0_279 = arith.constant 0 : index
      %609 = vector.load %arg3[%c0_278, %c0_279] : memref<8x1xi32, #tpu.memory_space<vmem>>, vector<8x1xi32>
      %610 = arith.addi %0, %c1_i32_265 : i32
      %611 = vector.broadcast %610 : i32 to vector<8x1xi32>
      %612 = arith.cmpi sgt, %609, %611 : vector<8x1xi32>
      %613 = vector.shape_cast %612 : vector<8x1xi1> to vector<8x1xi1>
      %614 = vector.broadcast %613 : vector<8x1xi1> to vector<8x128xi1>
      %615 = arith.select %614, %608, %576 : vector<8x128xi1>, vector<8x128xf32>
      %c2_280 = arith.constant 2 : index
      %c0_281 = arith.constant 0 : index
      %c0_282 = arith.constant 0 : index
      %616 = vector.load %arg13[%c2_280, %c0_281, %c0_282] : memref<3x8x128xf32, #tpu.memory_space<vmem>>, vector<1x8x128xf32>
      %617 = vector.shape_cast %616 : vector<1x8x128xf32> to vector<8x128xf32>
      %618 = vector.shape_cast %615 : vector<8x128xf32> to vector<1x8x128xf32>
      tpu.vector_store %arg13[%c2_280, %c0_281, %c0_282], %618 {strides = array<i32>} : memref<3x8x128xf32, #tpu.memory_space<vmem>>, vector<1x8x128xf32>,
      %619 = vector.shape_cast %612 : vector<8x1xi1> to vector<8x1xi1>
      %620 = vector.broadcast %619 : vector<8x1xi1> to vector<8x128xi1>
      %621 = arith.select %620, %606, %578 : vector<8x128xi1>, vector<8x128xf32>
      %c2_283 = arith.constant 2 : index
      %c0_284 = arith.constant 0 : index
      %c0_285 = arith.constant 0 : index
      %622 = vector.load %arg14[%c2_283, %c0_284, %c0_285] : memref<3x8x128xf32, #tpu.memory_space<vmem>>, vector<1x8x128xf32>
      %623 = vector.shape_cast %622 : vector<1x8x128xf32> to vector<8x128xf32>
      %624 = vector.shape_cast %621 : vector<8x128xf32> to vector<1x8x128xf32>
      tpu.vector_store %arg14[%c2_283, %c0_284, %c0_285], %624 {strides = array<i32>} : memref<3x8x128xf32, #tpu.memory_space<vmem>>, vector<1x8x128xf32>,
      %cst_286 = arith.constant 0.000000e+00 : f32
      %625 = vector.shape_cast %612 : vector<8x1xi1> to vector<8x1xi1>
      %626 = vector.broadcast %625 : vector<8x1xi1> to vector<8x128xi1>
      %627 = vector.broadcast %cst_286 : f32 to vector<8x128xf32>
      %628 = arith.select %626, %608, %627 : vector<8x128xi1>, vector<8x128xf32>
      %629 = arith.index_cast %c1_i32_265 : i32 to index
      %c0_287 = arith.constant 0 : index
      %c0_288 = arith.constant 0 : index
      %630 = vector.load %arg10[%629, %c0_287, %c0_288] : memref<4x8x128xf32, #tpu.memory_space<vmem>>, vector<1x8x128xf32>
      %631 = vector.shape_cast %630 : vector<1x8x128xf32> to vector<8x128xf32>
      %632 = vector.shape_cast %628 : vector<8x128xf32> to vector<1x8x128xf32>
      tpu.vector_store %arg10[%629, %c0_287, %c0_288], %632 {strides = array<i32>} : memref<4x8x128xf32, #tpu.memory_space<vmem>>, vector<1x8x128xf32>,
      %c2_i32_289 = arith.constant 2 : i32
      %c2_290 = arith.constant 2 : index
      %c0_291 = arith.constant 0 : index
      %c0_292 = arith.constant 0 : index
      %633 = vector.load %arg13[%c2_290, %c0_291, %c0_292] : memref<3x8x128xf32, #tpu.memory_space<vmem>>, vector<1x8x128xf32>
      %634 = vector.shape_cast %633 : vector<1x8x128xf32> to vector<8x128xf32>
      %c2_293 = arith.constant 2 : index
      %c0_294 = arith.constant 0 : index
      %c0_295 = arith.constant 0 : index
      %635 = vector.load %arg14[%c2_293, %c0_294, %c0_295] : memref<3x8x128xf32, #tpu.memory_space<vmem>>, vector<1x8x128xf32>
      %636 = vector.shape_cast %635 : vector<1x8x128xf32> to vector<8x128xf32>
      %637 = arith.index_cast %c2_i32_289 : i32 to index
      %c0_296 = arith.constant 0 : index
      %c0_297 = arith.constant 0 : index
      %638 = vector.load %arg15[%637, %c0_296, %c0_297] : memref<4x8x512xf32, #tpu.memory_space<vmem>>, vector<1x8x512xf32>
      %639 = vector.shape_cast %638 : vector<1x8x512xf32> to vector<8x512xf32>
      %cst_298 = arith.constant dense<0.000000e+00> : vector<8x512xf32>
      %640 = tpu.matmul %634, %516, %cst_298 {dimension_numbers = #tpu.dot_dimension_numbers<[1], [0], [0], [1], [0, 0, 1, 1], [], []>} : vector<8x128xf32>, vector<128x512xf32>, vector<8x512xf32> -> vector<8x512xf32>
      %641 = arith.addf %639, %640 : vector<8x512xf32>
      %642 = vector.extract_strided_slice %641 {offsets = [0, 0], sizes = [8, 128], strides = [1, 1]} : vector<8x512xf32> to vector<8x128xf32>
      %643 = arith.negf %642 : vector<8x128xf32>
      %644 = math.exp %643 : vector<8x128xf32>
      %cst_299 = arith.constant 1.000000e+00 : f32
      %645 = vector.broadcast %cst_299 : f32 to vector<8x128xf32>
      %646 = arith.addf %645, %644 : vector<8x128xf32>
      %647 = arith.divf %645, %646 : vector<8x128xf32>
      %648 = vector.extract_strided_slice %641 {offsets = [0, 128], sizes = [8, 128], strides = [1, 1]} : vector<8x512xf32> to vector<8x128xf32>
      %649 = arith.negf %648 : vector<8x128xf32>
      %650 = math.exp %649 : vector<8x128xf32>
      %cst_300 = arith.constant 1.000000e+00 : f32
      %651 = vector.broadcast %cst_300 : f32 to vector<8x128xf32>
      %652 = arith.addf %651, %650 : vector<8x128xf32>
      %653 = arith.divf %651, %652 : vector<8x128xf32>
      %654 = vector.extract_strided_slice %641 {offsets = [0, 256], sizes = [8, 128], strides = [1, 1]} : vector<8x512xf32> to vector<8x128xf32>
      %655 = math.tanh %654 : vector<8x128xf32>
      %656 = vector.extract_strided_slice %641 {offsets = [0, 384], sizes = [8, 128], strides = [1, 1]} : vector<8x512xf32> to vector<8x128xf32>
      %657 = arith.negf %656 : vector<8x128xf32>
      %658 = math.exp %657 : vector<8x128xf32>
      %cst_301 = arith.constant 1.000000e+00 : f32
      %659 = vector.broadcast %cst_301 : f32 to vector<8x128xf32>
      %660 = arith.addf %659, %658 : vector<8x128xf32>
      %661 = arith.divf %659, %660 : vector<8x128xf32>
      %662 = arith.mulf %653, %636 : vector<8x128xf32>
      %663 = arith.mulf %647, %655 : vector<8x128xf32>
      %664 = arith.addf %662, %663 : vector<8x128xf32>
      %665 = math.tanh %664 : vector<8x128xf32>
      %666 = arith.mulf %661, %665 : vector<8x128xf32>
      %c0_302 = arith.constant 0 : index
      %c0_303 = arith.constant 0 : index
      %667 = vector.load %arg3[%c0_302, %c0_303] : memref<8x1xi32, #tpu.memory_space<vmem>>, vector<8x1xi32>
      %668 = arith.addi %0, %c2_i32_289 : i32
      %669 = vector.broadcast %668 : i32 to vector<8x1xi32>
      %670 = arith.cmpi sgt, %667, %669 : vector<8x1xi32>
      %671 = vector.shape_cast %670 : vector<8x1xi1> to vector<8x1xi1>
      %672 = vector.broadcast %671 : vector<8x1xi1> to vector<8x128xi1>
      %673 = arith.select %672, %666, %634 : vector<8x128xi1>, vector<8x128xf32>
      %c2_304 = arith.constant 2 : index
      %c0_305 = arith.constant 0 : index
      %c0_306 = arith.constant 0 : index
      %674 = vector.load %arg13[%c2_304, %c0_305, %c0_306] : memref<3x8x128xf32, #tpu.memory_space<vmem>>, vector<1x8x128xf32>
      %675 = vector.shape_cast %674 : vector<1x8x128xf32> to vector<8x128xf32>
      %676 = vector.shape_cast %673 : vector<8x128xf32> to vector<1x8x128xf32>
      tpu.vector_store %arg13[%c2_304, %c0_305, %c0_306], %676 {strides = array<i32>} : memref<3x8x128xf32, #tpu.memory_space<vmem>>, vector<1x8x128xf32>,
      %677 = vector.shape_cast %670 : vector<8x1xi1> to vector<8x1xi1>
      %678 = vector.broadcast %677 : vector<8x1xi1> to vector<8x128xi1>
      %679 = arith.select %678, %664, %636 : vector<8x128xi1>, vector<8x128xf32>
      %c2_307 = arith.constant 2 : index
      %c0_308 = arith.constant 0 : index
      %c0_309 = arith.constant 0 : index
      %680 = vector.load %arg14[%c2_307, %c0_308, %c0_309] : memref<3x8x128xf32, #tpu.memory_space<vmem>>, vector<1x8x128xf32>
      %681 = vector.shape_cast %680 : vector<1x8x128xf32> to vector<8x128xf32>
      %682 = vector.shape_cast %679 : vector<8x128xf32> to vector<1x8x128xf32>
      tpu.vector_store %arg14[%c2_307, %c0_308, %c0_309], %682 {strides = array<i32>} : memref<3x8x128xf32, #tpu.memory_space<vmem>>, vector<1x8x128xf32>,
      %cst_310 = arith.constant 0.000000e+00 : f32
      %683 = vector.shape_cast %670 : vector<8x1xi1> to vector<8x1xi1>
      %684 = vector.broadcast %683 : vector<8x1xi1> to vector<8x128xi1>
      %685 = vector.broadcast %cst_310 : f32 to vector<8x128xf32>
      %686 = arith.select %684, %666, %685 : vector<8x128xi1>, vector<8x128xf32>
      %687 = arith.index_cast %c2_i32_289 : i32 to index
      %c0_311 = arith.constant 0 : index
      %c0_312 = arith.constant 0 : index
      %688 = vector.load %arg10[%687, %c0_311, %c0_312] : memref<4x8x128xf32, #tpu.memory_space<vmem>>, vector<1x8x128xf32>
      %689 = vector.shape_cast %688 : vector<1x8x128xf32> to vector<8x128xf32>
      %690 = vector.shape_cast %686 : vector<8x128xf32> to vector<1x8x128xf32>
      tpu.vector_store %arg10[%687, %c0_311, %c0_312], %690 {strides = array<i32>} : memref<4x8x128xf32, #tpu.memory_space<vmem>>, vector<1x8x128xf32>,
      %c3_i32_313 = arith.constant 3 : i32
      %c2_314 = arith.constant 2 : index
      %c0_315 = arith.constant 0 : index
      %c0_316 = arith.constant 0 : index
      %691 = vector.load %arg13[%c2_314, %c0_315, %c0_316] : memref<3x8x128xf32, #tpu.memory_space<vmem>>, vector<1x8x128xf32>
      %692 = vector.shape_cast %691 : vector<1x8x128xf32> to vector<8x128xf32>
      %c2_317 = arith.constant 2 : index
      %c0_318 = arith.constant 0 : index
      %c0_319 = arith.constant 0 : index
      %693 = vector.load %arg14[%c2_317, %c0_318, %c0_319] : memref<3x8x128xf32, #tpu.memory_space<vmem>>, vector<1x8x128xf32>
      %694 = vector.shape_cast %693 : vector<1x8x128xf32> to vector<8x128xf32>
      %695 = arith.index_cast %c3_i32_313 : i32 to index
      %c0_320 = arith.constant 0 : index
      %c0_321 = arith.constant 0 : index
      %696 = vector.load %arg15[%695, %c0_320, %c0_321] : memref<4x8x512xf32, #tpu.memory_space<vmem>>, vector<1x8x512xf32>
      %697 = vector.shape_cast %696 : vector<1x8x512xf32> to vector<8x512xf32>
      %cst_322 = arith.constant dense<0.000000e+00> : vector<8x512xf32>
      %698 = tpu.matmul %692, %516, %cst_322 {dimension_numbers = #tpu.dot_dimension_numbers<[1], [0], [0], [1], [0, 0, 1, 1], [], []>} : vector<8x128xf32>, vector<128x512xf32>, vector<8x512xf32> -> vector<8x512xf32>
      %699 = arith.addf %697, %698 : vector<8x512xf32>
      %700 = vector.extract_strided_slice %699 {offsets = [0, 0], sizes = [8, 128], strides = [1, 1]} : vector<8x512xf32> to vector<8x128xf32>
      %701 = arith.negf %700 : vector<8x128xf32>
      %702 = math.exp %701 : vector<8x128xf32>
      %cst_323 = arith.constant 1.000000e+00 : f32
      %703 = vector.broadcast %cst_323 : f32 to vector<8x128xf32>
      %704 = arith.addf %703, %702 : vector<8x128xf32>
      %705 = arith.divf %703, %704 : vector<8x128xf32>
      %706 = vector.extract_strided_slice %699 {offsets = [0, 128], sizes = [8, 128], strides = [1, 1]} : vector<8x512xf32> to vector<8x128xf32>
      %707 = arith.negf %706 : vector<8x128xf32>
      %708 = math.exp %707 : vector<8x128xf32>
      %cst_324 = arith.constant 1.000000e+00 : f32
      %709 = vector.broadcast %cst_324 : f32 to vector<8x128xf32>
      %710 = arith.addf %709, %708 : vector<8x128xf32>
      %711 = arith.divf %709, %710 : vector<8x128xf32>
      %712 = vector.extract_strided_slice %699 {offsets = [0, 256], sizes = [8, 128], strides = [1, 1]} : vector<8x512xf32> to vector<8x128xf32>
      %713 = math.tanh %712 : vector<8x128xf32>
      %714 = vector.extract_strided_slice %699 {offsets = [0, 384], sizes = [8, 128], strides = [1, 1]} : vector<8x512xf32> to vector<8x128xf32>
      %715 = arith.negf %714 : vector<8x128xf32>
      %716 = math.exp %715 : vector<8x128xf32>
      %cst_325 = arith.constant 1.000000e+00 : f32
      %717 = vector.broadcast %cst_325 : f32 to vector<8x128xf32>
      %718 = arith.addf %717, %716 : vector<8x128xf32>
      %719 = arith.divf %717, %718 : vector<8x128xf32>
      %720 = arith.mulf %711, %694 : vector<8x128xf32>
      %721 = arith.mulf %705, %713 : vector<8x128xf32>
      %722 = arith.addf %720, %721 : vector<8x128xf32>
      %723 = math.tanh %722 : vector<8x128xf32>
      %724 = arith.mulf %719, %723 : vector<8x128xf32>
      %c0_326 = arith.constant 0 : index
      %c0_327 = arith.constant 0 : index
      %725 = vector.load %arg3[%c0_326, %c0_327] : memref<8x1xi32, #tpu.memory_space<vmem>>, vector<8x1xi32>
      %726 = arith.addi %0, %c3_i32_313 : i32
      %727 = vector.broadcast %726 : i32 to vector<8x1xi32>
      %728 = arith.cmpi sgt, %725, %727 : vector<8x1xi32>
      %729 = vector.shape_cast %728 : vector<8x1xi1> to vector<8x1xi1>
      %730 = vector.broadcast %729 : vector<8x1xi1> to vector<8x128xi1>
      %731 = arith.select %730, %724, %692 : vector<8x128xi1>, vector<8x128xf32>
      %c2_328 = arith.constant 2 : index
      %c0_329 = arith.constant 0 : index
      %c0_330 = arith.constant 0 : index
      %732 = vector.load %arg13[%c2_328, %c0_329, %c0_330] : memref<3x8x128xf32, #tpu.memory_space<vmem>>, vector<1x8x128xf32>
      %733 = vector.shape_cast %732 : vector<1x8x128xf32> to vector<8x128xf32>
      %734 = vector.shape_cast %731 : vector<8x128xf32> to vector<1x8x128xf32>
      tpu.vector_store %arg13[%c2_328, %c0_329, %c0_330], %734 {strides = array<i32>} : memref<3x8x128xf32, #tpu.memory_space<vmem>>, vector<1x8x128xf32>,
      %735 = vector.shape_cast %728 : vector<8x1xi1> to vector<8x1xi1>
      %736 = vector.broadcast %735 : vector<8x1xi1> to vector<8x128xi1>
      %737 = arith.select %736, %722, %694 : vector<8x128xi1>, vector<8x128xf32>
      %c2_331 = arith.constant 2 : index
      %c0_332 = arith.constant 0 : index
      %c0_333 = arith.constant 0 : index
      %738 = vector.load %arg14[%c2_331, %c0_332, %c0_333] : memref<3x8x128xf32, #tpu.memory_space<vmem>>, vector<1x8x128xf32>
      %739 = vector.shape_cast %738 : vector<1x8x128xf32> to vector<8x128xf32>
      %740 = vector.shape_cast %737 : vector<8x128xf32> to vector<1x8x128xf32>
      tpu.vector_store %arg14[%c2_331, %c0_332, %c0_333], %740 {strides = array<i32>} : memref<3x8x128xf32, #tpu.memory_space<vmem>>, vector<1x8x128xf32>,
      %cst_334 = arith.constant 0.000000e+00 : f32
      %741 = vector.shape_cast %728 : vector<8x1xi1> to vector<8x1xi1>
      %742 = vector.broadcast %741 : vector<8x1xi1> to vector<8x128xi1>
      %743 = vector.broadcast %cst_334 : f32 to vector<8x128xf32>
      %744 = arith.select %742, %724, %743 : vector<8x128xi1>, vector<8x128xf32>
      %745 = arith.index_cast %c3_i32_313 : i32 to index
      %c0_335 = arith.constant 0 : index
      %c0_336 = arith.constant 0 : index
      %746 = vector.load %arg10[%745, %c0_335, %c0_336] : memref<4x8x128xf32, #tpu.memory_space<vmem>>, vector<1x8x128xf32>
      %747 = vector.shape_cast %746 : vector<1x8x128xf32> to vector<8x128xf32>
      %748 = vector.shape_cast %744 : vector<8x128xf32> to vector<1x8x128xf32>
      tpu.vector_store %arg10[%745, %c0_335, %c0_336], %748 {strides = array<i32>} : memref<4x8x128xf32, #tpu.memory_space<vmem>>, vector<1x8x128xf32>,
      %c4_i32_337 = arith.constant 4 : i32
    } else {
    }
    %c0_2 = arith.constant 0 : index
    %8 = memref.load %arg1[%c0_2] : memref<1xi32, #tpu.memory_space<smem>>
    %9 = arith.cmpi sge, %0, %8 : i32
    %10 = arith.extui %9 : i1 to i32
    %c0_i32_3 = arith.constant 0 : i32
    %11 = arith.cmpi ne, %10, %c0_i32_3 : i32
    scf.if %11 {
      %cst = arith.constant 0.000000e+00 : f32
      %15 = vector.broadcast %cst : f32 to vector<4x8x128xf32>
      %c0_5 = arith.constant 0 : index
      %c0_6 = arith.constant 0 : index
      %c0_7 = arith.constant 0 : index
      %16 = vector.load %arg10[%c0_5, %c0_6, %c0_7] : memref<4x8x128xf32, #tpu.memory_space<vmem>>, vector<4x8x128xf32>
      tpu.vector_store %arg10[%c0_5, %c0_6, %c0_7], %15 {strides = array<i32>} : memref<4x8x128xf32, #tpu.memory_space<vmem>>, vector<4x8x128xf32>,
    } else {
    }
    %c2_i32 = arith.constant 2 : i32
    %12 = arith.cmpi eq, %arg0, %c2_i32 : i32
    %13 = arith.extui %12 : i1 to i32
    %c0_i32_4 = arith.constant 0 : i32
    %14 = arith.cmpi ne, %13, %c0_i32_4 : i32
    scf.if %14 {
      %c0_5 = arith.constant 0 : index
      %c0_6 = arith.constant 0 : index
      %c0_7 = arith.constant 0 : index
      %15 = vector.load %arg13[%c0_5, %c0_6, %c0_7] : memref<3x8x128xf32, #tpu.memory_space<vmem>>, vector<3x8x128xf32>
      %c0_8 = arith.constant 0 : index
      %c0_9 = arith.constant 0 : index
      %c0_10 = arith.constant 0 : index
      %16 = vector.load %arg11[%c0_8, %c0_9, %c0_10] : memref<3x8x128xf32, #tpu.memory_space<vmem>>, vector<3x8x128xf32>
      tpu.vector_store %arg11[%c0_8, %c0_9, %c0_10], %15 {strides = array<i32>} : memref<3x8x128xf32, #tpu.memory_space<vmem>>, vector<3x8x128xf32>,
      %c0_11 = arith.constant 0 : index
      %c0_12 = arith.constant 0 : index
      %c0_13 = arith.constant 0 : index
      %17 = vector.load %arg14[%c0_11, %c0_12, %c0_13] : memref<3x8x128xf32, #tpu.memory_space<vmem>>, vector<3x8x128xf32>
      %c0_14 = arith.constant 0 : index
      %c0_15 = arith.constant 0 : index
      %c0_16 = arith.constant 0 : index
      %18 = vector.load %arg12[%c0_14, %c0_15, %c0_16] : memref<3x8x128xf32, #tpu.memory_space<vmem>>, vector<3x8x128xf32>
      tpu.vector_store %arg12[%c0_14, %c0_15, %c0_16], %17 {strides = array<i32>} : memref<3x8x128xf32, #tpu.memory_space<vmem>>, vector<3x8x128xf32>,
    } else {
    }
    return
  }
  func.func @transform_0(%arg0: i32, %arg1: memref<1xi32, #tpu.memory_space<smem>>) -> (i32, i32, i32) {
    %c0_i32 = arith.constant 0 : i32
    %c0_i32_0 = arith.constant 0 : i32
    %c0_i32_1 = arith.constant 0 : i32
    return %arg0, %c0_i32, %c0_i32_0 : i32, i32, i32
  }
  func.func @transform_1(%arg0: i32, %arg1: memref<1xi32, #tpu.memory_space<smem>>) -> (i32, i32) {
    %c0_i32 = arith.constant 0 : i32
    %c0_i32_0 = arith.constant 0 : i32
    %c0_i32_1 = arith.constant 0 : i32
    return %c0_i32, %c0_i32_0 : i32, i32
  }
  func.func @transform_2(%arg0: i32, %arg1: memref<1xi32, #tpu.memory_space<smem>>) -> (i32, i32) {
    %c0_i32 = arith.constant 0 : i32
    %c0_i32_0 = arith.constant 0 : i32
    %c0_i32_1 = arith.constant 0 : i32
    return %c0_i32, %c0_i32_0 : i32, i32
  }
  func.func @transform_3(%arg0: i32, %arg1: memref<1xi32, #tpu.memory_space<smem>>) -> (i32, i32, i32) {
    %c0_i32 = arith.constant 0 : i32
    %c0_i32_0 = arith.constant 0 : i32
    %c0_i32_1 = arith.constant 0 : i32
    %c0_i32_2 = arith.constant 0 : i32
    return %c0_i32, %c0_i32_0, %c0_i32_1 : i32, i32, i32
  }
  func.func @transform_4(%arg0: i32, %arg1: memref<1xi32, #tpu.memory_space<smem>>) -> (i32, i32, i32) {
    %c0_i32 = arith.constant 0 : i32
    %c0_i32_0 = arith.constant 0 : i32
    %c0_i32_1 = arith.constant 0 : i32
    %c0_i32_2 = arith.constant 0 : i32
    return %c0_i32, %c0_i32_0, %c0_i32_1 : i32, i32, i32
  }
  func.func @transform_5(%arg0: i32, %arg1: memref<1xi32, #tpu.memory_space<smem>>) -> (i32, i32, i32) {
    %c0_i32 = arith.constant 0 : i32
    %c0_i32_0 = arith.constant 0 : i32
    %c0_i32_1 = arith.constant 0 : i32
    %c0_i32_2 = arith.constant 0 : i32
    return %c0_i32, %c0_i32_0, %c0_i32_1 : i32, i32, i32
  }
  func.func @transform_6(%arg0: i32, %arg1: memref<1xi32, #tpu.memory_space<smem>>) -> (i32, i32, i32) {
    %c0_i32 = arith.constant 0 : i32
    %c0_i32_0 = arith.constant 0 : i32
    %c0_i32_1 = arith.constant 0 : i32
    %c0_i32_2 = arith.constant 0 : i32
    return %c0_i32, %c0_i32_0, %c0_i32_1 : i32, i32, i32
  }
  func.func @transform_7(%arg0: i32, %arg1: memref<1xi32, #tpu.memory_space<smem>>) -> (i32, i32, i32) {
    %c0_i32 = arith.constant 0 : i32
    %c0_i32_0 = arith.constant 0 : i32
    %c0_i32_1 = arith.constant 0 : i32
    %c0_i32_2 = arith.constant 0 : i32
    return %c0_i32, %c0_i32_0, %c0_i32_1 : i32, i32, i32
  }
  func.func @transform_8(%arg0: i32, %arg1: memref<1xi32, #tpu.memory_space<smem>>) -> (i32, i32, i32) {
    %c0_i32 = arith.constant 0 : i32
    %c0_i32_0 = arith.constant 0 : i32
    %c0_i32_1 = arith.constant 0 : i32
    return %arg0, %c0_i32, %c0_i32_0 : i32, i32, i32
  }
  func.func @transform_9(%arg0: i32, %arg1: memref<1xi32, #tpu.memory_space<smem>>) -> (i32, i32, i32) {
    %c0_i32 = arith.constant 0 : i32
    %c0_i32_0 = arith.constant 0 : i32
    %c0_i32_1 = arith.constant 0 : i32
    %c0_i32_2 = arith.constant 0 : i32
    return %c0_i32, %c0_i32_0, %c0_i32_1 : i32, i32, i32
  }
  func.func @transform_10(%arg0: i32, %arg1: memref<1xi32, #tpu.memory_space<smem>>) -> (i32, i32, i32) {
    %c0_i32 = arith.constant 0 : i32
    %c0_i32_0 = arith.constant 0 : i32
    %c0_i32_1 = arith.constant 0 : i32
    %c0_i32_2 = arith.constant 0 : i32
    return %c0_i32, %c0_i32_0, %c0_i32_1 : i32, i32, i32
  }
}

</mosaic_0001>

<llo_original>
// kernel: tpu_custom_call.1
$region0: #{tpu_custom_call.1}
  #allocation0 [shape = 'u32[]', space=smem, size = 0x4, offset = 0x4, fixed_abs, tag = 'smem constant byte address 0x4 - core index']
  #allocation1 [shape = 'u32[144,128]{1,0:T(1,128)}', space=vmem, size = 0x12000, scoped, tag = 'internal scratch']
  #allocation2 [shape = 'f32[3,8,128]{2,1,0:T(8,128)}', space=vmem, size = 0x3000, scoped, tag = 'scratch operand']
  #allocation3 [shape = 'f32[3,8,128]{2,1,0:T(8,128)}', space=vmem, size = 0x3000, scoped, tag = 'scratch operand']
  #allocation4 [shape = 'f32[4,8,512]{2,1,0:T(8,128)}', space=vmem, size = 0x10000, scoped, tag = 'scratch operand']
  #allocation5 [shape = 'f32[4,8,128]{2,1,0:T(8,128)}', space=vmem, size = 0x4000, scoped, tag = 'scratch operand']
  #allocation6 [shape = 's32[1]{0}', space=sflag, size = 0x4, scoped, tag = 'scoped memory for tpu_custom_call.1']
  #allocation7 [shape = 's32[1]{0:T(128)S(6)}', space=smem, size = 0x200, scoped, tag = 'prefetched SMEM operand 0']
  %s0 = inlined_call_operand.<no memory space> [shape: s32[1], index: 0, kind: input, shape index: {}]
  %s1 = inlined_call_operand.hbm [shape: f32[12,8,128], index: 1, kind: input, shape index: {}]
  %s2 = inlined_call_operand.vmem [shape: s32[8,1], index: 2, kind: input, shape index: {}]
  %s3 = inlined_call_operand.hbm [shape: f32[128,512], index: 3, kind: input, shape index: {}]
  %s4 = inlined_call_operand.hbm [shape: f32[2,128,512], index: 4, kind: input, shape index: {}]
  %s5 = inlined_call_operand.hbm [shape: f32[3,128,512], index: 5, kind: input, shape index: {}]
  %s6 = inlined_call_operand.vmem [shape: f32[3,1,512], index: 6, kind: input, shape index: {}]
  %s7 = inlined_call_operand.hbm [shape: f32[3,8,128], index: 7, kind: input, shape index: {}]
  %s8 = inlined_call_operand.hbm [shape: f32[3,8,128], index: 8, kind: input, shape index: {}]
  %s9 = inlined_call_operand.hbm [shape: f32[12,8,128], index: 9, kind: output, shape index: {0}]
  %s10 = inlined_call_operand.hbm [shape: f32[3,8,128], index: 10, kind: output, shape index: {1}]
  %s11 = inlined_call_operand.hbm [shape: f32[3,8,128], index: 11, kind: output, shape index: {2}]
  %12 = xla_tuple %s9, %s10, %s11
  %s13 = sld [smem:[#allocation0]]
  $region121: #{tpu_custom_call.1} parent=0
    _
  %s15 = ssub.s32 1, %s13
  %s16 = scalar_select 0, %s15, %s13
  %17 = sst [smem:[#allocation7]] %s0
  $region1: #{tpu_custom_call.1} parent=0
    #allocation8 [shape = 'u8[32768]{0}', space=vmem, size = 0x8000, scoped, tag = 'input window, operand 1']
    #allocation9 [shape = 's32[2]{0}', space=sflag, size = 0x8, scoped, tag = 'scoped memory for tpu_custom_call.1']
    #allocation10 [shape = 's32[2]{0}', space=sflag, size = 0x8, scoped, tag = 'scoped memory for tpu_custom_call.1']
    #allocation11 [shape = 'u8[262144]{0}', space=vmem, size = 0x40000, scoped, tag = 'input window, operand 3, single buffered']
    #allocation12 [shape = 's32[1]{0}', space=sflag, size = 0x4, scoped, tag = 'scoped memory for tpu_custom_call.1']
    #allocation13 [shape = 'u8[524288]{0}', space=vmem, size = 0x80000, scoped, tag = 'input window, operand 4, single buffered']
    #allocation14 [shape = 'u8[786432]{0}', space=vmem, size = 0xc0000, scoped, tag = 'input window, operand 5, single buffered']
    #allocation15 [shape = 's32[1]{0}', space=sflag, size = 0x4, scoped, tag = 'scoped memory for tpu_custom_call.1']
    #allocation16 [shape = 'u8[12288]{0}', space=vmem, size = 0x3000, scoped, tag = 'input window, operand 7, single buffered']
    #allocation17 [shape = 'u8[12288]{0}', space=vmem, size = 0x3000, scoped, tag = 'input window, operand 8, single buffered']
    #allocation18 [shape = 's32[1]{0}', space=sflag, size = 0x4, scoped, tag = 'scoped memory for tpu_custom_call.1']
    #allocation19 [shape = 'u8[32768]{0}', space=vmem, size = 0x8000, scoped, tag = 'output window, operand 0']
    #allocation20 [shape = 'u8[12288]{0}', space=vmem, size = 0x3000, scoped, tag = 'output window, operand 1, single buffered']
    #allocation21 [shape = 's32[1]{0}', space=sflag, size = 0x4, scoped, tag = 'scoped memory for tpu_custom_call.1']
    #allocation22 [shape = 'u8[12288]{0}', space=vmem, size = 0x3000, scoped, tag = 'output window, operand 2, single buffered']
    %18 = vsyncpa [#allocation9], 0
    %s19 = scalar_lea.sflag [#allocation9], 1
    %20 = vsyncpa %s19, 0
    %21 = vsyncpa [#allocation12], 0
    %22 = vsyncpa [#allocation15], 0
    %23 = vsyncpa [#allocation18], 0
    %24 = vsyncpa [#allocation10], 0
    %s25 = scalar_lea.sflag [#allocation10], 1
    %26 = vsyncpa %s25, 0
    %27 = vsyncpa [#allocation21], 0
    loop: start=0, step=1, limit=5
    $region2: #{tpu_custom_call.1} parent=1 // loop_pre_header
      _
    $region3: #{tpu_custom_call.1} parent=1 // loop_header
      %s29 = sphi 0, %s33
      %p30 = scmp.ge.s32.totalorder %s29, 5
      %s39 = sphi 0, %s41
      %s42 = sphi 0, %s39
      %s43 = sphi 0, %s42
      %s59 = sphi 0, %s43
      %s63 = sphi 0, %s63
      %s65 = sphi 0, %s63
      %s66 = sphi 0, %s65
      %s80 = sphi 0, %s66
      %s84 = sphi 0, %s84
      %s86 = sphi 0, %s84
      %s87 = sphi 0, %s86
      %s101 = sphi 0, %s87
      %s105 = sphi 0, %s105
      %s107 = sphi 0, %s105
      %s108 = sphi 0, %s107
      %s122 = sphi 0, %s108
      %s126 = sphi 0, %s126
      %s128 = sphi 0, %s126
      %s129 = sphi 0, %s128
      %s143 = sphi 0, %s129
      %s147 = sphi 0, %s147
      %s149 = sphi 0, %s147
      %s150 = sphi 0, %s149
      %s164 = sphi 0, %s150
      %s168 = sphi 0, %s168
      %s170 = sphi 0, %s168
      %s171 = sphi 0, %s170
      %s185 = sphi 0, %s171
      %s189 = sphi 0, %s189
      %s191 = sphi 0, %s189
      %s192 = sphi 0, %s191
      %s206 = sphi 0, %s192
      %s212 = sphi 0, %s214
      %s215 = sphi 0, %s212
      %s216 = sphi 0, %s215
      %s232 = sphi 0, %s216
      %s236 = sphi 0, %s236
      %s238 = sphi 0, %s236
      %s239 = sphi 0, %s238
      %s253 = sphi 0, %s239
      %s257 = sphi 0, %s257
      %s259 = sphi 0, %s257
      %s260 = sphi 0, %s259
      %s274 = sphi 0, %s260
    $region4: #{tpu_custom_call.1} parent=1 // loop_header_branch
      %32 = sbr.rel (%p30) target = $region8
    $region5: #{tpu_custom_call.1} parent=1 // loop_body
      %s34 = ssub.s32 %s29, 1
      %s35 = ssub.s32 %s29, 2
      %s36 = sadd.s32 %s29, 1
      %s37 = ssub.s32 %s29, %s36
      %p38 = scmp.eq.s32.totalorder %s37, 0
      %s40 = sadd.s32 %s39, 1
      %s41 = scalar_select %p38, %s39, %s40
      %p44 = pneg %p38
      %p45 = scmp.eq.s32.totalorder %s29, 2
      %p46 = por %p44, %p45
      %p47 = scmp.ne.s32.totalorder %s39, %s42
      %p48 = scmp.eq.s32.totalorder %s29, 0
      %p49 = por %p47, %p48
      %p50 = scmp.ne.s32.totalorder %s39, %s42
      %p51 = scmp.eq.s32.totalorder %s34, 2
      %p52 = por %p50, %p51
      %p53 = scmp.ne.s32.totalorder %s42, %s43
      %p54 = scmp.eq.s32.totalorder %s34, 0
      %p55 = por %p53, %p54
      %p56 = scmp.ne.s32.totalorder %s42, %s43
      %p57 = scmp.eq.s32.totalorder %s35, 2
      %p58 = por %p56, %p57
      %p60 = scmp.ne.s32.totalorder %s43, %s59
      %p61 = scmp.eq.s32.totalorder %s35, 0
      %p62 = por %p60, %p61
      %s64 = sadd.s32 %s63, 1
      %p67 = scmp.eq.s32.totalorder %s29, 2
      %p68 = scmp.ne.s32.totalorder %s63, %s65
      %p69 = scmp.eq.s32.totalorder %s29, 0
      %p70 = por %p68, %p69
      %p71 = scmp.ne.s32.totalorder %s63, %s65
      %p72 = scmp.eq.s32.totalorder %s34, 2
      %p73 = por %p71, %p72
      %p74 = scmp.ne.s32.totalorder %s65, %s66
      %p75 = scmp.eq.s32.totalorder %s34, 0
      %p76 = por %p74, %p75
      %p77 = scmp.ne.s32.totalorder %s65, %s66
      %p78 = scmp.eq.s32.totalorder %s35, 2
      %p79 = por %p77, %p78
      %p81 = scmp.ne.s32.totalorder %s66, %s80
      %p82 = scmp.eq.s32.totalorder %s35, 0
      %p83 = por %p81, %p82
      %s85 = sadd.s32 %s84, 1
      %p88 = scmp.eq.s32.totalorder %s29, 2
      %p89 = scmp.ne.s32.totalorder %s84, %s86
      %p90 = scmp.eq.s32.totalorder %s29, 0
      %p91 = por %p89, %p90
      %p92 = scmp.ne.s32.totalorder %s84, %s86
      %p93 = scmp.eq.s32.totalorder %s34, 2
      %p94 = por %p92, %p93
      %p95 = scmp.ne.s32.totalorder %s86, %s87
      %p96 = scmp.eq.s32.totalorder %s34, 0
      %p97 = por %p95, %p96
      %p98 = scmp.ne.s32.totalorder %s86, %s87
      %p99 = scmp.eq.s32.totalorder %s35, 2
      %p100 = por %p98, %p99
      %p102 = scmp.ne.s32.totalorder %s87, %s101
      %p103 = scmp.eq.s32.totalorder %s35, 0
      %p104 = por %p102, %p103
      %s106 = sadd.s32 %s105, 1
      %p109 = scmp.eq.s32.totalorder %s29, 2
      %p110 = scmp.ne.s32.totalorder %s105, %s107
      %p111 = scmp.eq.s32.totalorder %s29, 0
      %p112 = por %p110, %p111
      %p113 = scmp.ne.s32.totalorder %s105, %s107
      %p114 = scmp.eq.s32.totalorder %s34, 2
      %p115 = por %p113, %p114
      %p116 = scmp.ne.s32.totalorder %s107, %s108
      %p117 = scmp.eq.s32.totalorder %s34, 0
      %p118 = por %p116, %p117
      %p119 = scmp.ne.s32.totalorder %s107, %s108
      %p120 = scmp.eq.s32.totalorder %s35, 2
      %p121 = por %p119, %p120
      %p123 = scmp.ne.s32.totalorder %s108, %s122
      %p124 = scmp.eq.s32.totalorder %s35, 0
      %p125 = por %p123, %p124
      %s127 = sadd.s32 %s126, 1
      %p130 = scmp.eq.s32.totalorder %s29, 2
      %p131 = scmp.ne.s32.totalorder %s126, %s128
      %p132 = scmp.eq.s32.totalorder %s29, 0
      %p133 = por %p131, %p132
      %p134 = scmp.ne.s32.totalorder %s126, %s128
      %p135 = scmp.eq.s32.totalorder %s34, 2
      %p136 = por %p134, %p135
      %p137 = scmp.ne.s32.totalorder %s128, %s129
      %p138 = scmp.eq.s32.totalorder %s34, 0
      %p139 = por %p137, %p138
      %p140 = scmp.ne.s32.totalorder %s128, %s129
      %p141 = scmp.eq.s32.totalorder %s35, 2
      %p142 = por %p140, %p141
      %p144 = scmp.ne.s32.totalorder %s129, %s143
      %p145 = scmp.eq.s32.totalorder %s35, 0
      %p146 = por %p144, %p145
      %s148 = sadd.s32 %s147, 1
      %p151 = scmp.eq.s32.totalorder %s29, 2
      %p152 = scmp.ne.s32.totalorder %s147, %s149
      %p153 = scmp.eq.s32.totalorder %s29, 0
      %p154 = por %p152, %p153
      %p155 = scmp.ne.s32.totalorder %s147, %s149
      %p156 = scmp.eq.s32.totalorder %s34, 2
      %p157 = por %p155, %p156
      %p158 = scmp.ne.s32.totalorder %s149, %s150
      %p159 = scmp.eq.s32.totalorder %s34, 0
      %p160 = por %p158, %p159
      %p161 = scmp.ne.s32.totalorder %s149, %s150
      %p162 = scmp.eq.s32.totalorder %s35, 2
      %p163 = por %p161, %p162
      %p165 = scmp.ne.s32.totalorder %s150, %s164
      %p166 = scmp.eq.s32.totalorder %s35, 0
      %p167 = por %p165, %p166
      %s169 = sadd.s32 %s168, 1
      %p172 = scmp.eq.s32.totalorder %s29, 2
      %p173 = scmp.ne.s32.totalorder %s168, %s170
      %p174 = scmp.eq.s32.totalorder %s29, 0
      %p175 = por %p173, %p174
      %p176 = scmp.ne.s32.totalorder %s168, %s170
      %p177 = scmp.eq.s32.totalorder %s34, 2
      %p178 = por %p176, %p177
      %p179 = scmp.ne.s32.totalorder %s170, %s171
      %p180 = scmp.eq.s32.totalorder %s34, 0
      %p181 = por %p179, %p180
      %p182 = scmp.ne.s32.totalorder %s170, %s171
      %p183 = scmp.eq.s32.totalorder %s35, 2
      %p184 = por %p182, %p183
      %p186 = scmp.ne.s32.totalorder %s171, %s185
      %p187 = scmp.eq.s32.totalorder %s35, 0
      %p188 = por %p186, %p187
      %s190 = sadd.s32 %s189, 1
      %p193 = scmp.eq.s32.totalorder %s29, 2
      %p194 = scmp.ne.s32.totalorder %s189, %s191
      %p195 = scmp.eq.s32.totalorder %s29, 0
      %p196 = por %p194, %p195
      %p197 = scmp.ne.s32.totalorder %s189, %s191
      %p198 = scmp.eq.s32.totalorder %s34, 2
      %p199 = por %p197, %p198
      %p200 = scmp.ne.s32.totalorder %s191, %s192
      %p201 = scmp.eq.s32.totalorder %s34, 0
      %p202 = por %p200, %p201
      %p203 = scmp.ne.s32.totalorder %s191, %s192
      %p204 = scmp.eq.s32.totalorder %s35, 2
      %p205 = por %p203, %p204
      %p207 = scmp.ne.s32.totalorder %s192, %s206
      %p208 = scmp.eq.s32.totalorder %s35, 0
      %p209 = por %p207, %p208
      %s210 = ssub.s32 %s29, %s36
      %p211 = scmp.eq.s32.totalorder %s210, 0
      %s213 = sadd.s32 %s212, 1
      %s214 = scalar_select %p211, %s212, %s213
      %p217 = pneg %p211
      %p218 = scmp.eq.s32.totalorder %s29, 2
      %p219 = por %p217, %p218
      %p220 = scmp.ne.s32.totalorder %s212, %s215
      %p221 = scmp.eq.s32.totalorder %s29, 0
      %p222 = por %p220, %p221
      %p223 = scmp.ne.s32.totalorder %s212, %s215
      %p224 = scmp.eq.s32.totalorder %s34, 2
      %p225 = por %p223, %p224
      %p226 = scmp.ne.s32.totalorder %s215, %s216
      %p227 = scmp.eq.s32.totalorder %s34, 0
      %p228 = por %p226, %p227
      %p229 = scmp.ne.s32.totalorder %s215, %s216
      %p230 = scmp.eq.s32.totalorder %s35, 2
      %p231 = por %p229, %p230
      %p233 = scmp.ne.s32.totalorder %s216, %s232
      %p234 = scmp.eq.s32.totalorder %s35, 0
      %p235 = por %p233, %p234
      %s237 = sadd.s32 %s236, 1
      %p240 = scmp.eq.s32.totalorder %s29, 2
      %p241 = scmp.ne.s32.totalorder %s236, %s238
      %p242 = scmp.eq.s32.totalorder %s29, 0
      %p243 = por %p241, %p242
      %p244 = scmp.ne.s32.totalorder %s236, %s238
      %p245 = scmp.eq.s32.totalorder %s34, 2
      %p246 = por %p244, %p245
      %p247 = scmp.ne.s32.totalorder %s238, %s239
      %p248 = scmp.eq.s32.totalorder %s34, 0
      %p249 = por %p247, %p248
      %p250 = scmp.ne.s32.totalorder %s238, %s239
      %p251 = scmp.eq.s32.totalorder %s35, 2
      %p252 = por %p250, %p251
      %p254 = scmp.ne.s32.totalorder %s239, %s253
      %p255 = scmp.eq.s32.totalorder %s35, 0
      %p256 = por %p254, %p255
      %s258 = sadd.s32 %s257, 1
      %p261 = scmp.eq.s32.totalorder %s29, 2
      %p262 = scmp.ne.s32.totalorder %s257, %s259
      %p263 = scmp.eq.s32.totalorder %s29, 0
      %p264 = por %p262, %p263
      %p265 = scmp.ne.s32.totalorder %s257, %s259
      %p266 = scmp.eq.s32.totalorder %s34, 2
      %p267 = por %p265, %p266
      %p268 = scmp.ne.s32.totalorder %s259, %s260
      %p269 = scmp.eq.s32.totalorder %s34, 0
      %p270 = por %p268, %p269
      %p271 = scmp.ne.s32.totalorder %s259, %s260
      %p272 = scmp.eq.s32.totalorder %s35, 2
      %p273 = por %p271, %p272
      %p275 = scmp.ne.s32.totalorder %s260, %s274
      %p276 = scmp.eq.s32.totalorder %s35, 0
      %p277 = por %p275, %p276
      %p278 = scmp.le.s32.totalorder 1, %s29
      %p279 = scmp.lt.s32.totalorder %s29, 4
      %p280 = pnand %p278, %p279
      %p281 = pneg %p280
      // Predicated region
      $region9: #{tpu_custom_call.1} parent=5 // pred_check
        _
      $region10: #{tpu_custom_call.1} parent=5 // pred_check_branch
        %283 = sbr.rel (%p280) target = $region12
      $region11: #{tpu_custom_call.1} parent=5 // pred_region
        %s284 = ssub.s32 %s29, 1
        // Predicated region
        $region13: #{tpu_custom_call.1} parent=11 // pred_check
          %p285 = pneg %p76
        $region14: #{tpu_custom_call.1} parent=11 // pred_check_branch
          %287 = sbr.rel (%p285) target = $region16
        $region15: #{tpu_custom_call.1} parent=11 // pred_region
          _
        $region16: #{tpu_custom_call.1} parent=11 // pred_fallthru
          _
        // Predicated region
        $region17: #{tpu_custom_call.1} parent=11 // pred_check
          %p288 = pneg %p97
        $region18: #{tpu_custom_call.1} parent=11 // pred_check_branch
          %290 = sbr.rel (%p288) target = $region20
        $region19: #{tpu_custom_call.1} parent=11 // pred_region
          %s292 = ssub.s32 8192, 8192
          %293 = vsyncadd [#allocation12], %s292
          %s294 = sshll.u32 [#allocation11], 4
          %s295 = int_to_ptr.vmem [resolvable:$true] %s294
          %300 = dma.hbm_to_vmem [thread:$0]  %s3, 8192, %s295, [#allocation12], 512, 512, 32
        $region20: #{tpu_custom_call.1} parent=11 // pred_fallthru
          _
        // Predicated region
        $region21: #{tpu_custom_call.1} parent=11 // pred_check
          %p301 = pneg %p118
        $region22: #{tpu_custom_call.1} parent=11 // pred_check_branch
          %303 = sbr.rel (%p301) target = $region24
        $region23: #{tpu_custom_call.1} parent=11 // pred_region
          %s305 = ssub.s32 16384, 16384
          %306 = vsyncadd [#allocation12], %s305
          %s307 = sshll.u32 [#allocation13], 4
          %s308 = int_to_ptr.vmem [resolvable:$true] %s307
          %313 = dma.hbm_to_vmem [thread:$0]  %s4, 16384, %s308, [#allocation12], 512, 512, 32
        $region24: #{tpu_custom_call.1} parent=11 // pred_fallthru
          _
        // Predicated region
        $region25: #{tpu_custom_call.1} parent=11 // pred_check
          %p314 = pneg %p139
        $region26: #{tpu_custom_call.1} parent=11 // pred_check_branch
          %316 = sbr.rel (%p314) target = $region28
        $region27: #{tpu_custom_call.1} parent=11 // pred_region
          %s318 = ssub.s32 24576, 24576
          %319 = vsyncadd [#allocation15], %s318
          %s320 = sshll.u32 [#allocation14], 4
          %s321 = int_to_ptr.vmem [resolvable:$true] %s320
          %326 = dma.hbm_to_vmem [thread:$0]  %s5, 24576, %s321, [#allocation15], 512, 512, 32
        $region28: #{tpu_custom_call.1} parent=11 // pred_fallthru
          _
        // Predicated region
        $region29: #{tpu_custom_call.1} parent=11 // pred_check
          %p327 = pneg %p160
        $region30: #{tpu_custom_call.1} parent=11 // pred_check_branch
          %329 = sbr.rel (%p327) target = $region32
        $region31: #{tpu_custom_call.1} parent=11 // pred_region
          _
        $region32: #{tpu_custom_call.1} parent=11 // pred_fallthru
          _
        // Predicated region
        $region33: #{tpu_custom_call.1} parent=11 // pred_check
          %p330 = pneg %p181
        $region34: #{tpu_custom_call.1} parent=11 // pred_check_branch
          %332 = sbr.rel (%p330) target = $region36
        $region35: #{tpu_custom_call.1} parent=11 // pred_region
          %s334 = ssub.s32 384, 384
          %335 = vsyncadd [#allocation15], %s334
          %s336 = sshll.u32 [#allocation16], 4
          %s337 = int_to_ptr.vmem [resolvable:$true] %s336
          %342 = dma.hbm_to_vmem [thread:$0]  %s7, 384, %s337, [#allocation15], 128, 128, 8
        $region36: #{tpu_custom_call.1} parent=11 // pred_fallthru
          _
        // Predicated region
        $region37: #{tpu_custom_call.1} parent=11 // pred_check
          %p343 = pneg %p202
        $region38: #{tpu_custom_call.1} parent=11 // pred_check_branch
          %345 = sbr.rel (%p343) target = $region40
        $region39: #{tpu_custom_call.1} parent=11 // pred_region
          %s347 = ssub.s32 384, 384
          %348 = vsyncadd [#allocation18], %s347
          %s349 = sshll.u32 [#allocation17], 4
          %s350 = int_to_ptr.vmem [resolvable:$true] %s349
          %355 = dma.hbm_to_vmem [thread:$0]  %s8, 384, %s350, [#allocation18], 128, 128, 8
        $region40: #{tpu_custom_call.1} parent=11 // pred_fallthru
          _
      $region12: #{tpu_custom_call.1} parent=5 // pred_fallthru
        _
      %p356 = scmp.lt.s32.totalorder %s29, 3
      // Predicated region
      $region41: #{tpu_custom_call.1} parent=5 // pred_check
        %p357 = pneg %p356
      $region42: #{tpu_custom_call.1} parent=5 // pred_check_branch
        %359 = sbr.rel (%p357) target = $region44
      $region43: #{tpu_custom_call.1} parent=5 // pred_region
        // Predicated region
        $region45: #{tpu_custom_call.1} parent=43 // pred_check
          %p360 = pneg %p49
        $region46: #{tpu_custom_call.1} parent=43 // pred_check_branch
          %362 = sbr.rel (%p360) target = $region48
        $region47: #{tpu_custom_call.1} parent=43 // pred_region
          %s363 = sand.u32 %s39, 1
          %s364 = scalar_lea.sflag [#allocation9], %s363
          %s365 = sand.u32 %s39, 1
          %s366 = smul.addr %s365, 32
          %s367 = scalar_lea.vmem [#allocation8], %s366
          %s368 = smul.u32 4, %s29
          %s370 = ssub.s32 512, 512
          %371 = vsyncadd %s364, %s370
          %s372 = smul.addr %s368, 128
          %s373 = scalar_lea.hbm %s1, %s372
          %s374 = sshll.u32 %s367, 4
          %s375 = int_to_ptr.vmem [resolvable:$true] %s374
          %380 = dma.hbm_to_vmem [thread:$0]  %s373, 512, %s375, %s364, 128, 128, 8
        $region48: #{tpu_custom_call.1} parent=43 // pred_fallthru
          _
      $region44: #{tpu_custom_call.1} parent=5 // pred_fallthru
        _
      %p381 = scmp.le.s32.totalorder 1, %s29
      %p382 = scmp.lt.s32.totalorder %s29, 4
      %p383 = pnand %p381, %p382
      %p384 = pneg %p383
      // Predicated region
      $region49: #{tpu_custom_call.1} parent=5 // pred_check
        _
      $region50: #{tpu_custom_call.1} parent=5 // pred_check_branch
        %386 = sbr.rel (%p383) target = $region52
      $region51: #{tpu_custom_call.1} parent=5 // pred_region
        %s387 = ssub.s32 %s29, 1
        %s388 = sand.u32 %s42, 1
        %s389 = scalar_lea.sflag [#allocation9], %s388
        %s390 = sand.u32 %s42, 1
        %s391 = smul.addr %s390, 32
        %s392 = scalar_lea.vmem [#allocation8], %s391
        // Predicated region
        $region53: #{tpu_custom_call.1} parent=51 // pred_check
          %p393 = pneg %p55
        $region54: #{tpu_custom_call.1} parent=51 // pred_check_branch
          %395 = sbr.rel (%p393) target = $region56
        $region55: #{tpu_custom_call.1} parent=51 // pred_region
          %396 = dma.done %s389, 512
        $region56: #{tpu_custom_call.1} parent=51 // pred_fallthru
          _
        // Predicated region
        $region57: #{tpu_custom_call.1} parent=51 // pred_check
          %p397 = pneg %p97
        $region58: #{tpu_custom_call.1} parent=51 // pred_check_branch
          %399 = sbr.rel (%p397) target = $region60
        $region59: #{tpu_custom_call.1} parent=51 // pred_region
          %400 = dma.done [#allocation12], 8192
        $region60: #{tpu_custom_call.1} parent=51 // pred_fallthru
          _
        // Predicated region
        $region61: #{tpu_custom_call.1} parent=51 // pred_check
          %p401 = pneg %p118
        $region62: #{tpu_custom_call.1} parent=51 // pred_check_branch
          %403 = sbr.rel (%p401) target = $region64
        $region63: #{tpu_custom_call.1} parent=51 // pred_region
          %404 = dma.done [#allocation12], 16384
        $region64: #{tpu_custom_call.1} parent=51 // pred_fallthru
          _
        // Predicated region
        $region65: #{tpu_custom_call.1} parent=51 // pred_check
          %p405 = pneg %p139
        $region66: #{tpu_custom_call.1} parent=51 // pred_check_branch
          %407 = sbr.rel (%p405) target = $region68
        $region67: #{tpu_custom_call.1} parent=51 // pred_region
          %408 = dma.done [#allocation15], 24576
        $region68: #{tpu_custom_call.1} parent=51 // pred_fallthru
          _
        // Predicated region
        $region69: #{tpu_custom_call.1} parent=51 // pred_check
          %p409 = pneg %p181
        $region70: #{tpu_custom_call.1} parent=51 // pred_check_branch
          %411 = sbr.rel (%p409) target = $region72
        $region71: #{tpu_custom_call.1} parent=51 // pred_region
          %412 = dma.done [#allocation15], 384
        $region72: #{tpu_custom_call.1} parent=51 // pred_fallthru
          _
        // Predicated region
        $region73: #{tpu_custom_call.1} parent=51 // pred_check
          %p413 = pneg %p202
        $region74: #{tpu_custom_call.1} parent=51 // pred_check_branch
          %415 = sbr.rel (%p413) target = $region76
        $region75: #{tpu_custom_call.1} parent=51 // pred_region
          %416 = dma.done [#allocation18], 384
        $region76: #{tpu_custom_call.1} parent=51 // pred_fallthru
          _
        %s417 = sand.u32 %s42, 1
        %s418 = scalar_lea.sflag [#allocation9], %s417
        %s419 = sand.u32 %s42, 1
        %s420 = smul.addr %s419, 32
        %s421 = scalar_lea.vmem [#allocation8], %s420
        %p422 = pneg %p55
        %p423 = pneg %p52
        %p424 = pneg %p76
        %p425 = pneg %p73
        %p426 = pneg %p97
        %p427 = pneg %p94
        %p428 = pneg %p118
        %p429 = pneg %p115
        %p430 = pneg %p139
        %p431 = pneg %p136
        %p432 = pneg %p160
        %p433 = pneg %p157
        %p434 = pneg %p181
        %p435 = pneg %p178
        %p436 = pneg %p202
        %p437 = pneg %p199
        %p438 = pneg %p228
        %p439 = pneg %p225
        %s440 = sand.u32 %s215, 1
        %s441 = scalar_lea.sflag [#allocation10], %s440
        %s442 = sand.u32 %s215, 1
        %s443 = smul.addr %s442, 32
        %s444 = scalar_lea.vmem [#allocation19], %s443
        %p445 = pneg %p249
        %p446 = pneg %p246
        %p447 = pneg %p270
        %p448 = pneg %p267
        %s449 = smul.u32 4, %s34
        %s450 = smul.u32 4, %s34
        %s451 = smul.u32 %s34, 4
        %p452 = scmp.eq.s32.totalorder %s34, 0
        // Predicated region
        $region77: #{tpu_custom_call.1} parent=51 // pred_check
          %p453 = pneg %p452
        $region78: #{tpu_custom_call.1} parent=51 // pred_check_branch
          %455 = sbr.rel (%p453) target = $region80
        $region79: #{tpu_custom_call.1} parent=51 // pred_region
          %v456 = vld [vmem:[#allocation16] sm:$0xff]
          %v457 = vld [vmem:[#allocation16 + $0x8] sm:$0xff]
          %v458 = vld [vmem:[#allocation16 + $0x10] sm:$0xff]
          %459 = vst [vmem:[#allocation2] sm:$0xff] %v456
          %460 = vst [vmem:[#allocation2 + $0x8] sm:$0xff] %v457
          %461 = vst [vmem:[#allocation2 + $0x10] sm:$0xff] %v458
          %v462 = vld [vmem:[#allocation17] sm:$0xff]
          %v463 = vld [vmem:[#allocation17 + $0x8] sm:$0xff]
          %v464 = vld [vmem:[#allocation17 + $0x10] sm:$0xff]
          %465 = vst [vmem:[#allocation3] sm:$0xff] %v462
          %466 = vst [vmem:[#allocation3 + $0x8] sm:$0xff] %v463
          %467 = vst [vmem:[#allocation3 + $0x10] sm:$0xff] %v464
        $region80: #{tpu_custom_call.1} parent=51 // pred_fallthru
          _
        %s468 = sld [smem:[#allocation7]]
        %p469 = scmp.lt.s32.totalorder %s451, %s468
        // Predicated region
        $region81: #{tpu_custom_call.1} parent=51 // pred_check
          %p470 = pneg %p469
        $region82: #{tpu_custom_call.1} parent=51 // pred_check_branch
          %472 = sbr.rel (%p470) target = $region84
        $region83: #{tpu_custom_call.1} parent=51 // pred_region
          %v473 = vld [vmem:[%s392] sm:$0xff]
          %v474 = vld [vmem:[%s392 + $0x8] sm:$0xff]
          %v475 = vld [vmem:[%s392 + $0x10] sm:$0xff]
          %v476 = vld [vmem:[%s392 + $0x18] sm:$0xff]
          %v477 = vld [vmem:[#allocation11] sm:$0xff]
          %v478 = vld [vmem:[#allocation11 + $0x8] sm:$0xff]
          %v479 = vld [vmem:[#allocation11 + $0x10] sm:$0xff]
          %v480 = vld [vmem:[#allocation11 + $0x18] sm:$0xff]
          %v481 = vld [vmem:[#allocation11 + $0x20] sm:$0xff]
          %v482 = vld [vmem:[#allocation11 + $0x28] sm:$0xff]
          %v483 = vld [vmem:[#allocation11 + $0x30] sm:$0xff]
          %v484 = vld [vmem:[#allocation11 + $0x38] sm:$0xff]
          %v485 = vld [vmem:[#allocation11 + $0x40] sm:$0xff]
          %v486 = vld [vmem:[#allocation11 + $0x48] sm:$0xff]
          %v487 = vld [vmem:[#allocation11 + $0x50] sm:$0xff]
          %v488 = vld [vmem:[#allocation11 + $0x58] sm:$0xff]
          %v489 = vld [vmem:[#allocation11 + $0x60] sm:$0xff]
          %v490 = vld [vmem:[#allocation11 + $0x68] sm:$0xff]
          %v491 = vld [vmem:[#allocation11 + $0x70] sm:$0xff]
          %v492 = vld [vmem:[#allocation11 + $0x78] sm:$0xff]
          %v493 = vld [vmem:[#allocation11 + $0x80] sm:$0xff]
          %v494 = vld [vmem:[#allocation11 + $0x88] sm:$0xff]
          %v495 = vld [vmem:[#allocation11 + $0x90] sm:$0xff]
          %v496 = vld [vmem:[#allocation11 + $0x98] sm:$0xff]
          %v497 = vld [vmem:[#allocation11 + $0xa0] sm:$0xff]
          %v498 = vld [vmem:[#allocation11 + $0xa8] sm:$0xff]
          %v499 = vld [vmem:[#allocation11 + $0xb0] sm:$0xff]
          %v500 = vld [vmem:[#allocation11 + $0xb8] sm:$0xff]
          %v501 = vld [vmem:[#allocation11 + $0xc0] sm:$0xff]
          %v502 = vld [vmem:[#allocation11 + $0xc8] sm:$0xff]
          %v503 = vld [vmem:[#allocation11 + $0xd0] sm:$0xff]
          %v504 = vld [vmem:[#allocation11 + $0xd8] sm:$0xff]
          %v505 = vld [vmem:[#allocation11 + $0xe0] sm:$0xff]
          %v506 = vld [vmem:[#allocation11 + $0xe8] sm:$0xff]
          %v507 = vld [vmem:[#allocation11 + $0xf0] sm:$0xff]
          %v508 = vld [vmem:[#allocation11 + $0xf8] sm:$0xff]
          %v509 = vld [vmem:[#allocation11 + $0x100] sm:$0xff]
          %v510 = vld [vmem:[#allocation11 + $0x108] sm:$0xff]
          %v511 = vld [vmem:[#allocation11 + $0x110] sm:$0xff]
          %v512 = vld [vmem:[#allocation11 + $0x118] sm:$0xff]
          %v513 = vld [vmem:[#allocation11 + $0x120] sm:$0xff]
          %v514 = vld [vmem:[#allocation11 + $0x128] sm:$0xff]
          %v515 = vld [vmem:[#allocation11 + $0x130] sm:$0xff]
          %v516 = vld [vmem:[#allocation11 + $0x138] sm:$0xff]
          %v517 = vld [vmem:[#allocation11 + $0x140] sm:$0xff]
          %v518 = vld [vmem:[#allocation11 + $0x148] sm:$0xff]
          %v519 = vld [vmem:[#allocation11 + $0x150] sm:$0xff]
          %v520 = vld [vmem:[#allocation11 + $0x158] sm:$0xff]
          %v521 = vld [vmem:[#allocation11 + $0x160] sm:$0xff]
          %v522 = vld [vmem:[#allocation11 + $0x168] sm:$0xff]
          %v523 = vld [vmem:[#allocation11 + $0x170] sm:$0xff]
          %v524 = vld [vmem:[#allocation11 + $0x178] sm:$0xff]
          %v525 = vld [vmem:[#allocation11 + $0x180] sm:$0xff]
          %v526 = vld [vmem:[#allocation11 + $0x188] sm:$0xff]
          %v527 = vld [vmem:[#allocation11 + $0x190] sm:$0xff]
          %v528 = vld [vmem:[#allocation11 + $0x198] sm:$0xff]
          %v529 = vld [vmem:[#allocation11 + $0x1a0] sm:$0xff]
          %v530 = vld [vmem:[#allocation11 + $0x1a8] sm:$0xff]
          %v531 = vld [vmem:[#allocation11 + $0x1b0] sm:$0xff]
          %v532 = vld [vmem:[#allocation11 + $0x1b8] sm:$0xff]
          %v533 = vld [vmem:[#allocation11 + $0x1c0] sm:$0xff]
          %v534 = vld [vmem:[#allocation11 + $0x1c8] sm:$0xff]
          %v535 = vld [vmem:[#allocation11 + $0x1d0] sm:$0xff]
          %v536 = vld [vmem:[#allocation11 + $0x1d8] sm:$0xff]
          %v537 = vld [vmem:[#allocation11 + $0x1e0] sm:$0xff]
          %v538 = vld [vmem:[#allocation11 + $0x1e8] sm:$0xff]
          %v539 = vld [vmem:[#allocation11 + $0x1f0] sm:$0xff]
          %v540 = vld [vmem:[#allocation11 + $0x1f8] sm:$0xff]
          %v541 = vld [vmem:[%s6] sm:$0xf]
          %v543 = vlaneseq
          %v544 = vshrl.u32 %v543, 7
          %v545 = vsub.s32 0, %v544
          %v546 = vrot.slane %v541, %v545
          %v547 = vlaneseq
          %v548 = vshrl.u32 %v547, 7
          %v549 = vsub.s32 1, %v548
          %v550 = vrot.slane %v541, %v549
          %v551 = vlaneseq
          %v552 = vshrl.u32 %v551, 7
          %v553 = vsub.s32 2, %v552
          %v554 = vrot.slane %v541, %v553
          %v555 = vlaneseq
          %v556 = vshrl.u32 %v555, 7
          %v557 = vsub.s32 3, %v556
          %v558 = vrot.slane %v541, %v557
          %563 = vmatprep.subr.mxu0 %v538
          %564 = vmatpush1.msra.mxu0 %v537
          %565 = vmatprep.subr.mxu0 %v534
          %566 = vmatpush1.msra.mxu0 %v533
          %567 = vmatprep.subr.mxu0 %v530
          %568 = vmatpush1.msra.mxu0 %v529
          %569 = vmatprep.subr.mxu0 %v526
          %570 = vmatpush1.msra.mxu0 %v525
          %571 = vmatprep.subr.mxu0 %v522
          %572 = vmatpush1.msra.mxu0 %v521
          %573 = vmatprep.subr.mxu0 %v518
          %574 = vmatpush1.msra.mxu0 %v517
          %575 = vmatprep.subr.mxu0 %v514
          %576 = vmatpush1.msra.mxu0 %v513
          %577 = vmatprep.subr.mxu0 %v510
          %578 = vmatpush1.msra.mxu0 %v509
          %579 = vmatprep.subr.mxu0 %v506
          %580 = vmatpush1.msra.mxu0 %v505
          %581 = vmatprep.subr.mxu0 %v502
          %582 = vmatpush1.msra.mxu0 %v501
          %583 = vmatprep.subr.mxu0 %v498
          %584 = vmatpush1.msra.mxu0 %v497
          %585 = vmatprep.subr.mxu0 %v494
          %586 = vmatpush1.msra.mxu0 %v493
          %587 = vmatprep.subr.mxu0 %v490
          %588 = vmatpush1.msra.mxu0 %v489
          %589 = vmatprep.subr.mxu0 %v486
          %590 = vmatpush1.msra.mxu0 %v485
          %591 = vmatprep.subr.mxu0 %v482
          %592 = vmatpush1.msra.mxu0 %v481
          %593 = vmatprep.subr.mxu0 %v478
          %594 = vmatpush1.msra.mxu0 %v477
          %595 = vmatprep.subr.mxu0 0.0
          %596 = vmatpush2.msra.mxu0 0.0
          %597 = vmatprep.subr.mxu0 0.0
          %598 = vmatpush2.msra.mxu0 0.0
          %599 = vmatprep.subr.mxu0 0.0
          %600 = vmatpush2.msra.mxu0 0.0
          %601 = vmatprep.subr.mxu0 0.0
          %602 = vmatpush2.msra.mxu0 0.0
          %603 = vmatprep.subr.mxu0 0.0
          %604 = vmatpush2.msra.mxu0 0.0
          %605 = vmatprep.subr.mxu0 0.0
          %606 = vmatpush2.msra.mxu0 0.0
          %607 = vmatprep.subr.mxu0 0.0
          %608 = vmatpush2.msra.mxu0 0.0
          %609 = vmatprep.subr.mxu0 0.0
          %610 = vmatpush2.msra.mxu0 0.0
          %611 = vmatprep.subr.mxu0 0.0
          %612 = vmatpush2.msra.mxu0 0.0
          %613 = vmatprep.subr.mxu0 0.0
          %614 = vmatpush2.msra.mxu0 0.0
          %615 = vmatprep.subr.mxu0 0.0
          %616 = vmatpush2.msra.mxu0 0.0
          %617 = vmatprep.subr.mxu0 0.0
          %618 = vmatpush2.msra.mxu0 0.0
          %619 = vmatprep.subr.mxu0 0.0
          %620 = vmatpush2.msra.mxu0 0.0
          %621 = vmatprep.subr.mxu0 0.0
          %622 = vmatpush2.msra.mxu0 0.0
          %623 = vmatprep.subr.mxu0 0.0
          %624 = vmatpush2.msra.mxu0 0.0
          %625 = vmatprep.subr.mxu0 0.0
          %626 = vmatpush2.msra.mxu0 0.0
          %627 = vmatprep.mubr.f32.mxu0 0.0
          %628 = vmatmul.mubr.f32.gmra.mxu0 %v473
          %v629 = vpop.f32.mrf.mxu0
          %v630 = vadd.f32 %v546, %v629
          %v631 = vpop.f32.mrf.mxu0
          %v632 = vadd.f32 %v550, %v631
          %633 = vmatprep.mubr.f32.mxu0 0.0
          %634 = vmatmul.mubr.f32.gmra.mxu0 %v474
          %v635 = vpop.f32.mrf.mxu0
          %v636 = vadd.f32 %v546, %v635
          %v637 = vpop.f32.mrf.mxu0
          %v638 = vadd.f32 %v550, %v637
          %639 = vmatprep.mubr.f32.mxu0 0.0
          %640 = vmatmul.mubr.f32.gmra.mxu0 %v475
          %v641 = vpop.f32.mrf.mxu0
          %v642 = vadd.f32 %v546, %v641
          %v643 = vpop.f32.mrf.mxu0
          %v644 = vadd.f32 %v550, %v643
          %645 = vmatprep.mubr.f32.mxu0 0.0
          %646 = vmatmul.mubr.f32.gmra.mxu0 %v476
          %v647 = vpop.f32.mrf.mxu0
          %v648 = vadd.f32 %v546, %v647
          %v649 = vpop.f32.mrf.mxu0
          %v650 = vadd.f32 %v550, %v649
          %651 = vdwg.mxu0
          %652 = vmatprep.subr.mxu0 %v540
          %653 = vmatpush1.msra.mxu0 %v539
          %654 = vmatprep.subr.mxu0 %v536
          %655 = vmatpush1.msra.mxu0 %v535
          %656 = vmatprep.subr.mxu0 %v532
          %657 = vmatpush1.msra.mxu0 %v531
          %658 = vmatprep.subr.mxu0 %v528
          %659 = vmatpush1.msra.mxu0 %v527
          %660 = vmatprep.subr.mxu0 %v524
          %661 = vmatpush1.msra.mxu0 %v523
          %662 = vmatprep.subr.mxu0 %v520
          %663 = vmatpush1.msra.mxu0 %v519
          %664 = vmatprep.subr.mxu0 %v516
          %665 = vmatpush1.msra.mxu0 %v515
          %666 = vmatprep.subr.mxu0 %v512
          %667 = vmatpush1.msra.mxu0 %v511
          %668 = vmatprep.subr.mxu0 %v508
          %669 = vmatpush1.msra.mxu0 %v507
          %670 = vmatprep.subr.mxu0 %v504
          %671 = vmatpush1.msra.mxu0 %v503
          %672 = vmatprep.subr.mxu0 %v500
          %673 = vmatpush1.msra.mxu0 %v499
          %674 = vmatprep.subr.mxu0 %v496
          %675 = vmatpush1.msra.mxu0 %v495
          %676 = vmatprep.subr.mxu0 %v492
          %677 = vmatpush1.msra.mxu0 %v491
          %678 = vmatprep.subr.mxu0 %v488
          %679 = vmatpush1.msra.mxu0 %v487
          %680 = vmatprep.subr.mxu0 %v484
          %681 = vmatpush1.msra.mxu0 %v483
          %682 = vmatprep.subr.mxu0 %v480
          %683 = vmatpush1.msra.mxu0 %v479
          %684 = vmatprep.subr.mxu0 0.0
          %685 = vmatpush2.msra.mxu0 0.0
          %686 = vmatprep.subr.mxu0 0.0
          %687 = vmatpush2.msra.mxu0 0.0
          %688 = vmatprep.subr.mxu0 0.0
          %689 = vmatpush2.msra.mxu0 0.0
          %690 = vmatprep.subr.mxu0 0.0
          %691 = vmatpush2.msra.mxu0 0.0
          %692 = vmatprep.subr.mxu0 0.0
          %693 = vmatpush2.msra.mxu0 0.0
          %694 = vmatprep.subr.mxu0 0.0
          %695 = vmatpush2.msra.mxu0 0.0
          %696 = vmatprep.subr.mxu0 0.0
          %697 = vmatpush2.msra.mxu0 0.0
          %698 = vmatprep.subr.mxu0 0.0
          %699 = vmatpush2.msra.mxu0 0.0
          %700 = vmatprep.subr.mxu0 0.0
          %701 = vmatpush2.msra.mxu0 0.0
          %702 = vmatprep.subr.mxu0 0.0
          %703 = vmatpush2.msra.mxu0 0.0
          %704 = vmatprep.subr.mxu0 0.0
          %705 = vmatpush2.msra.mxu0 0.0
          %706 = vmatprep.subr.mxu0 0.0
          %707 = vmatpush2.msra.mxu0 0.0
          %708 = vmatprep.subr.mxu0 0.0
          %709 = vmatpush2.msra.mxu0 0.0
          %710 = vmatprep.subr.mxu0 0.0
          %711 = vmatpush2.msra.mxu0 0.0
          %712 = vmatprep.subr.mxu0 0.0
          %713 = vmatpush2.msra.mxu0 0.0
          %714 = vmatprep.subr.mxu0 0.0
          %715 = vmatpush2.msra.mxu0 0.0
          %716 = vmatprep.mubr.f32.mxu0 0.0
          %717 = vmatmul.mubr.f32.gmra.mxu0 %v473
          %v718 = vpop.f32.mrf.mxu0
          %v719 = vadd.f32 %v554, %v718
          %v720 = vpop.f32.mrf.mxu0
          %v721 = vadd.f32 %v558, %v720
          %722 = vmatprep.mubr.f32.mxu0 0.0
          %723 = vmatmul.mubr.f32.gmra.mxu0 %v474
          %v724 = vpop.f32.mrf.mxu0
          %v725 = vadd.f32 %v554, %v724
          %v726 = vpop.f32.mrf.mxu0
          %v727 = vadd.f32 %v558, %v726
          %728 = vmatprep.mubr.f32.mxu0 0.0
          %729 = vmatmul.mubr.f32.gmra.mxu0 %v475
          %v730 = vpop.f32.mrf.mxu0
          %v731 = vadd.f32 %v554, %v730
          %v732 = vpop.f32.mrf.mxu0
          %v733 = vadd.f32 %v558, %v732
          %734 = vmatprep.mubr.f32.mxu0 0.0
          %735 = vmatmul.mubr.f32.gmra.mxu0 %v476
          %v736 = vpop.f32.mrf.mxu0
          %v737 = vadd.f32 %v554, %v736
          %v738 = vpop.f32.mrf.mxu0
          %v739 = vadd.f32 %v558, %v738
          %740 = vdwg.mxu0
          %741 = vst [vmem:[#allocation4] sm:$0xff] %v630
          %742 = vst [vmem:[#allocation4 + $0x8] sm:$0xff] %v632
          %743 = vst [vmem:[#allocation4 + $0x10] sm:$0xff] %v719
          %744 = vst [vmem:[#allocation4 + $0x18] sm:$0xff] %v721
          %745 = vst [vmem:[#allocation4 + $0x20] sm:$0xff] %v636
          %746 = vst [vmem:[#allocation4 + $0x28] sm:$0xff] %v638
          %747 = vst [vmem:[#allocation4 + $0x30] sm:$0xff] %v725
          %748 = vst [vmem:[#allocation4 + $0x38] sm:$0xff] %v727
          %749 = vst [vmem:[#allocation4 + $0x40] sm:$0xff] %v642
          %750 = vst [vmem:[#allocation4 + $0x48] sm:$0xff] %v644
          %751 = vst [vmem:[#allocation4 + $0x50] sm:$0xff] %v731
          %752 = vst [vmem:[#allocation4 + $0x58] sm:$0xff] %v733
          %753 = vst [vmem:[#allocation4 + $0x60] sm:$0xff] %v648
          %754 = vst [vmem:[#allocation4 + $0x68] sm:$0xff] %v650
          %755 = vst [vmem:[#allocation4 + $0x70] sm:$0xff] %v737
          %756 = vst [vmem:[#allocation4 + $0x78] sm:$0xff] %v739
          %v757 = vld [vmem:[#allocation14] sm:$0xff]
          %v758 = vld [vmem:[#allocation14 + $0x8] sm:$0xff]
          %v759 = vld [vmem:[#allocation14 + $0x10] sm:$0xff]
          %v760 = vld [vmem:[#allocation14 + $0x18] sm:$0xff]
          %v761 = vld [vmem:[#allocation14 + $0x20] sm:$0xff]
          %v762 = vld [vmem:[#allocation14 + $0x28] sm:$0xff]
          %v763 = vld [vmem:[#allocation14 + $0x30] sm:$0xff]
          %v764 = vld [vmem:[#allocation14 + $0x38] sm:$0xff]
          %v765 = vld [vmem:[#allocation14 + $0x40] sm:$0xff]
          %v766 = vld [vmem:[#allocation14 + $0x48] sm:$0xff]
          %v767 = vld [vmem:[#allocation14 + $0x50] sm:$0xff]
          %v768 = vld [vmem:[#allocation14 + $0x58] sm:$0xff]
          %v769 = vld [vmem:[#allocation14 + $0x60] sm:$0xff]
          %v770 = vld [vmem:[#allocation14 + $0x68] sm:$0xff]
          %v771 = vld [vmem:[#allocation14 + $0x70] sm:$0xff]
          %v772 = vld [vmem:[#allocation14 + $0x78] sm:$0xff]
          %v773 = vld [vmem:[#allocation14 + $0x80] sm:$0xff]
          %v774 = vld [vmem:[#allocation14 + $0x88] sm:$0xff]
          %v775 = vld [vmem:[#allocation14 + $0x90] sm:$0xff]
          %v776 = vld [vmem:[#allocation14 + $0x98] sm:$0xff]
          %v777 = vld [vmem:[#allocation14 + $0xa0] sm:$0xff]
          %v778 = vld [vmem:[#allocation14 + $0xa8] sm:$0xff]
          %v779 = vld [vmem:[#allocation14 + $0xb0] sm:$0xff]
          %v780 = vld [vmem:[#allocation14 + $0xb8] sm:$0xff]
          %v781 = vld [vmem:[#allocation14 + $0xc0] sm:$0xff]
          %v782 = vld [vmem:[#allocation14 + $0xc8] sm:$0xff]
          %v783 = vld [vmem:[#allocation14 + $0xd0] sm:$0xff]
          %v784 = vld [vmem:[#allocation14 + $0xd8] sm:$0xff]
          %v785 = vld [vmem:[#allocation14 + $0xe0] sm:$0xff]
          %v786 = vld [vmem:[#allocation14 + $0xe8] sm:$0xff]
          %v787 = vld [vmem:[#allocation14 + $0xf0] sm:$0xff]
          %v788 = vld [vmem:[#allocation14 + $0xf8] sm:$0xff]
          %v789 = vld [vmem:[#allocation14 + $0x100] sm:$0xff]
          %v790 = vld [vmem:[#allocation14 + $0x108] sm:$0xff]
          %v791 = vld [vmem:[#allocation14 + $0x110] sm:$0xff]
          %v792 = vld [vmem:[#allocation14 + $0x118] sm:$0xff]
          %v793 = vld [vmem:[#allocation14 + $0x120] sm:$0xff]
          %v794 = vld [vmem:[#allocation14 + $0x128] sm:$0xff]
          %v795 = vld [vmem:[#allocation14 + $0x130] sm:$0xff]
          %v796 = vld [vmem:[#allocation14 + $0x138] sm:$0xff]
          %v797 = vld [vmem:[#allocation14 + $0x140] sm:$0xff]
          %v798 = vld [vmem:[#allocation14 + $0x148] sm:$0xff]
          %v799 = vld [vmem:[#allocation14 + $0x150] sm:$0xff]
          %v800 = vld [vmem:[#allocation14 + $0x158] sm:$0xff]
          %v801 = vld [vmem:[#allocation14 + $0x160] sm:$0xff]
          %v802 = vld [vmem:[#allocation14 + $0x168] sm:$0xff]
          %v803 = vld [vmem:[#allocation14 + $0x170] sm:$0xff]
          %v804 = vld [vmem:[#allocation14 + $0x178] sm:$0xff]
          %v805 = vld [vmem:[#allocation14 + $0x180] sm:$0xff]
          %v806 = vld [vmem:[#allocation14 + $0x188] sm:$0xff]
          %v807 = vld [vmem:[#allocation14 + $0x190] sm:$0xff]
          %v808 = vld [vmem:[#allocation14 + $0x198] sm:$0xff]
          %v809 = vld [vmem:[#allocation14 + $0x1a0] sm:$0xff]
          %v810 = vld [vmem:[#allocation14 + $0x1a8] sm:$0xff]
          %v811 = vld [vmem:[#allocation14 + $0x1b0] sm:$0xff]
          %v812 = vld [vmem:[#allocation14 + $0x1b8] sm:$0xff]
          %v813 = vld [vmem:[#allocation14 + $0x1c0] sm:$0xff]
          %v814 = vld [vmem:[#allocation14 + $0x1c8] sm:$0xff]
          %v815 = vld [vmem:[#allocation14 + $0x1d0] sm:$0xff]
          %v816 = vld [vmem:[#allocation14 + $0x1d8] sm:$0xff]
          %v817 = vld [vmem:[#allocation14 + $0x1e0] sm:$0xff]
          %v818 = vld [vmem:[#allocation14 + $0x1e8] sm:$0xff]
          %v819 = vld [vmem:[#allocation14 + $0x1f0] sm:$0xff]
          %v820 = vld [vmem:[#allocation14 + $0x1f8] sm:$0xff]
          %v821 = vld [vmem:[#allocation2] sm:$0xff]
          %v822 = vld [vmem:[#allocation3] sm:$0xff]
          %v823 = vld [vmem:[#allocation4] sm:$0xff]
          %v824 = vld [vmem:[#allocation4 + $0x8] sm:$0xff]
          %v825 = vld [vmem:[#allocation4 + $0x10] sm:$0xff]
          %v826 = vld [vmem:[#allocation4 + $0x18] sm:$0xff]
          %827 = vmatprep.subr.mxu0 %v818
          %828 = vmatpush1.msra.mxu0 %v817
          %829 = vmatprep.subr.mxu0 %v814
          %830 = vmatpush1.msra.mxu0 %v813
          %831 = vmatprep.subr.mxu0 %v810
          %832 = vmatpush1.msra.mxu0 %v809
          %833 = vmatprep.subr.mxu0 %v806
          %834 = vmatpush1.msra.mxu0 %v805
          %835 = vmatprep.subr.mxu0 %v802
          %836 = vmatpush1.msra.mxu0 %v801
          %837 = vmatprep.subr.mxu0 %v798
          %838 = vmatpush1.msra.mxu0 %v797
          %839 = vmatprep.subr.mxu0 %v794
          %840 = vmatpush1.msra.mxu0 %v793
          %841 = vmatprep.subr.mxu0 %v790
          %842 = vmatpush1.msra.mxu0 %v789
          %843 = vmatprep.subr.mxu0 %v786
          %844 = vmatpush1.msra.mxu0 %v785
          %845 = vmatprep.subr.mxu0 %v782
          %846 = vmatpush1.msra.mxu0 %v781
          %847 = vmatprep.subr.mxu0 %v778
          %848 = vmatpush1.msra.mxu0 %v777
          %849 = vmatprep.subr.mxu0 %v774
          %850 = vmatpush1.msra.mxu0 %v773
          %851 = vmatprep.subr.mxu0 %v770
          %852 = vmatpush1.msra.mxu0 %v769
          %853 = vmatprep.subr.mxu0 %v766
          %854 = vmatpush1.msra.mxu0 %v765
          %855 = vmatprep.subr.mxu0 %v762
          %856 = vmatpush1.msra.mxu0 %v761
          %857 = vmatprep.subr.mxu0 %v758
          %858 = vmatpush1.msra.mxu0 %v757
          %859 = vmatprep.subr.mxu0 0.0
          %860 = vmatpush2.msra.mxu0 0.0
          %861 = vmatprep.subr.mxu0 0.0
          %862 = vmatpush2.msra.mxu0 0.0
          %863 = vmatprep.subr.mxu0 0.0
          %864 = vmatpush2.msra.mxu0 0.0
          %865 = vmatprep.subr.mxu0 0.0
          %866 = vmatpush2.msra.mxu0 0.0
          %867 = vmatprep.subr.mxu0 0.0
          %868 = vmatpush2.msra.mxu0 0.0
          %869 = vmatprep.subr.mxu0 0.0
          %870 = vmatpush2.msra.mxu0 0.0
          %871 = vmatprep.subr.mxu0 0.0
          %872 = vmatpush2.msra.mxu0 0.0
          %873 = vmatprep.subr.mxu0 0.0
          %874 = vmatpush2.msra.mxu0 0.0
          %875 = vmatprep.subr.mxu0 0.0
          %876 = vmatpush2.msra.mxu0 0.0
          %877 = vmatprep.subr.mxu0 0.0
          %878 = vmatpush2.msra.mxu0 0.0
          %879 = vmatprep.subr.mxu0 0.0
          %880 = vmatpush2.msra.mxu0 0.0
          %881 = vmatprep.subr.mxu0 0.0
          %882 = vmatpush2.msra.mxu0 0.0
          %883 = vmatprep.subr.mxu0 0.0
          %884 = vmatpush2.msra.mxu0 0.0
          %885 = vmatprep.subr.mxu0 0.0
          %886 = vmatpush2.msra.mxu0 0.0
          %887 = vmatprep.subr.mxu0 0.0
          %888 = vmatpush2.msra.mxu0 0.0
          %889 = vmatprep.subr.mxu0 0.0
          %890 = vmatpush2.msra.mxu0 0.0
          %891 = vmatprep.mubr.f32.mxu0 0.0
          %892 = vmatmul.mubr.f32.gmra.mxu0 %v821
          %v893 = vpop.f32.mrf.mxu0
          %v894 = vadd.f32 0.0, %v893
          %v895 = vpop.f32.mrf.mxu0
          %v896 = vadd.f32 0.0, %v895
          %897 = vdwg.mxu0
          %898 = vmatprep.subr.mxu0 %v820
          %899 = vmatpush1.msra.mxu0 %v819
          %900 = vmatprep.subr.mxu0 %v816
          %901 = vmatpush1.msra.mxu0 %v815
          %902 = vmatprep.subr.mxu0 %v812
          %903 = vmatpush1.msra.mxu0 %v811
          %904 = vmatprep.subr.mxu0 %v808
          %905 = vmatpush1.msra.mxu0 %v807
          %906 = vmatprep.subr.mxu0 %v804
          %907 = vmatpush1.msra.mxu0 %v803
          %908 = vmatprep.subr.mxu0 %v800
          %909 = vmatpush1.msra.mxu0 %v799
          %910 = vmatprep.subr.mxu0 %v796
          %911 = vmatpush1.msra.mxu0 %v795
          %912 = vmatprep.subr.mxu0 %v792
          %913 = vmatpush1.msra.mxu0 %v791
          %914 = vmatprep.subr.mxu0 %v788
          %915 = vmatpush1.msra.mxu0 %v787
          %916 = vmatprep.subr.mxu0 %v784
          %917 = vmatpush1.msra.mxu0 %v783
          %918 = vmatprep.subr.mxu0 %v780
          %919 = vmatpush1.msra.mxu0 %v779
          %920 = vmatprep.subr.mxu0 %v776
          %921 = vmatpush1.msra.mxu0 %v775
          %922 = vmatprep.subr.mxu0 %v772
          %923 = vmatpush1.msra.mxu0 %v771
          %924 = vmatprep.subr.mxu0 %v768
          %925 = vmatpush1.msra.mxu0 %v767
          %926 = vmatprep.subr.mxu0 %v764
          %927 = vmatpush1.msra.mxu0 %v763
          %928 = vmatprep.subr.mxu0 %v760
          %929 = vmatpush1.msra.mxu0 %v759
          %930 = vmatprep.subr.mxu0 0.0
          %931 = vmatpush2.msra.mxu0 0.0
          %932 = vmatprep.subr.mxu0 0.0
          %933 = vmatpush2.msra.mxu0 0.0
          %934 = vmatprep.subr.mxu0 0.0
          %935 = vmatpush2.msra.mxu0 0.0
          %936 = vmatprep.subr.mxu0 0.0
          %937 = vmatpush2.msra.mxu0 0.0
          %938 = vmatprep.subr.mxu0 0.0
          %939 = vmatpush2.msra.mxu0 0.0
          %940 = vmatprep.subr.mxu0 0.0
          %941 = vmatpush2.msra.mxu0 0.0
          %942 = vmatprep.subr.mxu0 0.0
          %943 = vmatpush2.msra.mxu0 0.0
          %944 = vmatprep.subr.mxu0 0.0
          %945 = vmatpush2.msra.mxu0 0.0
          %946 = vmatprep.subr.mxu0 0.0
          %947 = vmatpush2.msra.mxu0 0.0
          %948 = vmatprep.subr.mxu0 0.0
          %949 = vmatpush2.msra.mxu0 0.0
          %950 = vmatprep.subr.mxu0 0.0
          %951 = vmatpush2.msra.mxu0 0.0
          %952 = vmatprep.subr.mxu0 0.0
          %953 = vmatpush2.msra.mxu0 0.0
          %954 = vmatprep.subr.mxu0 0.0
          %955 = vmatpush2.msra.mxu0 0.0
          %956 = vmatprep.subr.mxu0 0.0
          %957 = vmatpush2.msra.mxu0 0.0
          %958 = vmatprep.subr.mxu0 0.0
          %959 = vmatpush2.msra.mxu0 0.0
          %960 = vmatprep.subr.mxu0 0.0
          %961 = vmatpush2.msra.mxu0 0.0
          %962 = vmatprep.mubr.f32.mxu0 0.0
          %963 = vmatmul.mubr.f32.gmra.mxu0 %v821
          %v964 = vpop.f32.mrf.mxu0
          %v965 = vadd.f32 0.0, %v964
          %v966 = vpop.f32.mrf.mxu0
          %v967 = vadd.f32 0.0, %v966
          %968 = vdwg.mxu0
          %v969 = vadd.f32 %v823, %v894
          %v970 = vadd.f32 %v824, %v896
          %v971 = vadd.f32 %v825, %v965
          %v972 = vadd.f32 %v826, %v967
          %v973 = vxor.u32 %v969, 2147483648
          %v974 = vmul.f32 %v973, 1.442695
          %v975 = vpow.pop %v974
          %v976 = vadd.f32 %v975, 1.0
          %v977 = vrcp.pop %v976
          %v978 = vmul.f32 1.0, %v977
          %v979 = vxor.u32 %v970, 2147483648
          %v980 = vmul.f32 %v979, 1.442695
          %v981 = vpow.pop %v980
          %v982 = vadd.f32 %v981, 1.0
          %v983 = vrcp.pop %v982
          %v984 = vmul.f32 1.0, %v983
          %v985 = vtanh.pop %v971
          %v986 = vxor.u32 %v972, 2147483648
          %v987 = vmul.f32 %v986, 1.442695
          %v988 = vpow.pop %v987
          %v989 = vadd.f32 %v988, 1.0
          %v990 = vrcp.pop %v989
          %v991 = vmul.f32 1.0, %v990
          %v992 = vmul.f32 %v984, %v822
          %v993 = vmul.f32 %v978, %v985
          %v994 = vadd.f32 %v992, %v993
          %v995 = vtanh.pop %v994
          %v996 = vmul.f32 %v991, %v995
          %v997 = vld [vmem:[%s2] sm:$0xff]
          %v998 = vstv %s451
          %vm999 = vcmp.gt.s32.totalorder %v997, %v998
          %v1000 = vsel %vm999, 1, 0
          %1001 = vset.pattern.permute.xlu0 0
          %1002 = vperm.xlu0 %1001, %v1000
          %v1003 = vpop.permute.xlu0 %1002
          %vm1004 = vcmp.eq.s32.totalorder %v1003, 1
          %v1005 = vsel %vm1004, %v996, %v821
          %1006 = vst [vmem:[#allocation2] sm:$0xff] %v1005
          %v1007 = vsel %vm1004, %v994, %v822
          %1008 = vst [vmem:[#allocation3] sm:$0xff] %v1007
          %v1009 = vsel %vm1004, %v996, 0.0
          %1010 = vst [vmem:[#allocation5] sm:$0xff] %v1009
          %v1011 = vld [vmem:[#allocation2] sm:$0xff]
          %v1012 = vld [vmem:[#allocation3] sm:$0xff]
          %s1013 = scalar_lea.vmem [#allocation4], 32
          %v1014 = vld [vmem:[%s1013] sm:$0xff]
          %v1015 = vld [vmem:[%s1013 + $0x8] sm:$0xff]
          %v1016 = vld [vmem:[%s1013 + $0x10] sm:$0xff]
          %v1017 = vld [vmem:[%s1013 + $0x18] sm:$0xff]
          %1018 = vmatprep.subr.mxu0 %v818
          %1019 = vmatpush1.msra.mxu0 %v817
          %1020 = vmatprep.subr.mxu0 %v814
          %1021 = vmatpush1.msra.mxu0 %v813
          %1022 = vmatprep.subr.mxu0 %v810
          %1023 = vmatpush1.msra.mxu0 %v809
          %1024 = vmatprep.subr.mxu0 %v806
          %1025 = vmatpush1.msra.mxu0 %v805
          %1026 = vmatprep.subr.mxu0 %v802
          %1027 = vmatpush1.msra.mxu0 %v801
          %1028 = vmatprep.subr.mxu0 %v798
          %1029 = vmatpush1.msra.mxu0 %v797
          %1030 = vmatprep.subr.mxu0 %v794
          %1031 = vmatpush1.msra.mxu0 %v793
          %1032 = vmatprep.subr.mxu0 %v790
          %1033 = vmatpush1.msra.mxu0 %v789
          %1034 = vmatprep.subr.mxu0 %v786
          %1035 = vmatpush1.msra.mxu0 %v785
          %1036 = vmatprep.subr.mxu0 %v782
          %1037 = vmatpush1.msra.mxu0 %v781
          %1038 = vmatprep.subr.mxu0 %v778
          %1039 = vmatpush1.msra.mxu0 %v777
          %1040 = vmatprep.subr.mxu0 %v774
          %1041 = vmatpush1.msra.mxu0 %v773
          %1042 = vmatprep.subr.mxu0 %v770
          %1043 = vmatpush1.msra.mxu0 %v769
          %1044 = vmatprep.subr.mxu0 %v766
          %1045 = vmatpush1.msra.mxu0 %v765
          %1046 = vmatprep.subr.mxu0 %v762
          %1047 = vmatpush1.msra.mxu0 %v761
          %1048 = vmatprep.subr.mxu0 %v758
          %1049 = vmatpush1.msra.mxu0 %v757
          %1050 = vmatprep.subr.mxu0 0.0
          %1051 = vmatpush2.msra.mxu0 0.0
          %1052 = vmatprep.subr.mxu0 0.0
          %1053 = vmatpush2.msra.mxu0 0.0
          %1054 = vmatprep.subr.mxu0 0.0
          %1055 = vmatpush2.msra.mxu0 0.0
          %1056 = vmatprep.subr.mxu0 0.0
          %1057 = vmatpush2.msra.mxu0 0.0
          %1058 = vmatprep.subr.mxu0 0.0
          %1059 = vmatpush2.msra.mxu0 0.0
          %1060 = vmatprep.subr.mxu0 0.0
          %1061 = vmatpush2.msra.mxu0 0.0
          %1062 = vmatprep.subr.mxu0 0.0
          %1063 = vmatpush2.msra.mxu0 0.0
          %1064 = vmatprep.subr.mxu0 0.0
          %1065 = vmatpush2.msra.mxu0 0.0
          %1066 = vmatprep.subr.mxu0 0.0
          %1067 = vmatpush2.msra.mxu0 0.0
          %1068 = vmatprep.subr.mxu0 0.0
          %1069 = vmatpush2.msra.mxu0 0.0
          %1070 = vmatprep.subr.mxu0 0.0
          %1071 = vmatpush2.msra.mxu0 0.0
          %1072 = vmatprep.subr.mxu0 0.0
          %1073 = vmatpush2.msra.mxu0 0.0
          %1074 = vmatprep.subr.mxu0 0.0
          %1075 = vmatpush2.msra.mxu0 0.0
          %1076 = vmatprep.subr.mxu0 0.0
          %1077 = vmatpush2.msra.mxu0 0.0
          %1078 = vmatprep.subr.mxu0 0.0
          %1079 = vmatpush2.msra.mxu0 0.0
          %1080 = vmatprep.subr.mxu0 0.0
          %1081 = vmatpush2.msra.mxu0 0.0
          %1082 = vmatprep.mubr.f32.mxu0 0.0
          %1083 = vmatmul.mubr.f32.gmra.mxu0 %v1011
          %v1084 = vpop.f32.mrf.mxu0
          %v1085 = vadd.f32 0.0, %v1084
          %v1086 = vpop.f32.mrf.mxu0
          %v1087 = vadd.f32 0.0, %v1086
          %1088 = vdwg.mxu0
          %1089 = vmatprep.subr.mxu0 %v820
          %1090 = vmatpush1.msra.mxu0 %v819
          %1091 = vmatprep.subr.mxu0 %v816
          %1092 = vmatpush1.msra.mxu0 %v815
          %1093 = vmatprep.subr.mxu0 %v812
          %1094 = vmatpush1.msra.mxu0 %v811
          %1095 = vmatprep.subr.mxu0 %v808
          %1096 = vmatpush1.msra.mxu0 %v807
          %1097 = vmatprep.subr.mxu0 %v804
          %1098 = vmatpush1.msra.mxu0 %v803
          %1099 = vmatprep.subr.mxu0 %v800
          %1100 = vmatpush1.msra.mxu0 %v799
          %1101 = vmatprep.subr.mxu0 %v796
          %1102 = vmatpush1.msra.mxu0 %v795
          %1103 = vmatprep.subr.mxu0 %v792
          %1104 = vmatpush1.msra.mxu0 %v791
          %1105 = vmatprep.subr.mxu0 %v788
          %1106 = vmatpush1.msra.mxu0 %v787
          %1107 = vmatprep.subr.mxu0 %v784
          %1108 = vmatpush1.msra.mxu0 %v783
          %1109 = vmatprep.subr.mxu0 %v780
          %1110 = vmatpush1.msra.mxu0 %v779
          %1111 = vmatprep.subr.mxu0 %v776
          %1112 = vmatpush1.msra.mxu0 %v775
          %1113 = vmatprep.subr.mxu0 %v772
          %1114 = vmatpush1.msra.mxu0 %v771
          %1115 = vmatprep.subr.mxu0 %v768
          %1116 = vmatpush1.msra.mxu0 %v767
          %1117 = vmatprep.subr.mxu0 %v764
          %1118 = vmatpush1.msra.mxu0 %v763
          %1119 = vmatprep.subr.mxu0 %v760
          %1120 = vmatpush1.msra.mxu0 %v759
          %1121 = vmatprep.subr.mxu0 0.0
          %1122 = vmatpush2.msra.mxu0 0.0
          %1123 = vmatprep.subr.mxu0 0.0
          %1124 = vmatpush2.msra.mxu0 0.0
          %1125 = vmatprep.subr.mxu0 0.0
          %1126 = vmatpush2.msra.mxu0 0.0
          %1127 = vmatprep.subr.mxu0 0.0
          %1128 = vmatpush2.msra.mxu0 0.0
          %1129 = vmatprep.subr.mxu0 0.0
          %1130 = vmatpush2.msra.mxu0 0.0
          %1131 = vmatprep.subr.mxu0 0.0
          %1132 = vmatpush2.msra.mxu0 0.0
          %1133 = vmatprep.subr.mxu0 0.0
          %1134 = vmatpush2.msra.mxu0 0.0
          %1135 = vmatprep.subr.mxu0 0.0
          %1136 = vmatpush2.msra.mxu0 0.0
          %1137 = vmatprep.subr.mxu0 0.0
          %1138 = vmatpush2.msra.mxu0 0.0
          %1139 = vmatprep.subr.mxu0 0.0
          %1140 = vmatpush2.msra.mxu0 0.0
          %1141 = vmatprep.subr.mxu0 0.0
          %1142 = vmatpush2.msra.mxu0 0.0
          %1143 = vmatprep.subr.mxu0 0.0
          %1144 = vmatpush2.msra.mxu0 0.0
          %1145 = vmatprep.subr.mxu0 0.0
          %1146 = vmatpush2.msra.mxu0 0.0
          %1147 = vmatprep.subr.mxu0 0.0
          %1148 = vmatpush2.msra.mxu0 0.0
          %1149 = vmatprep.subr.mxu0 0.0
          %1150 = vmatpush2.msra.mxu0 0.0
          %1151 = vmatprep.subr.mxu0 0.0
          %1152 = vmatpush2.msra.mxu0 0.0
          %1153 = vmatprep.mubr.f32.mxu0 0.0
          %1154 = vmatmul.mubr.f32.gmra.mxu0 %v1011
          %v1155 = vpop.f32.mrf.mxu0
          %v1156 = vadd.f32 0.0, %v1155
          %v1157 = vpop.f32.mrf.mxu0
          %v1158 = vadd.f32 0.0, %v1157
          %1159 = vdwg.mxu0
          %v1160 = vadd.f32 %v1014, %v1085
          %v1161 = vadd.f32 %v1015, %v1087
          %v1162 = vadd.f32 %v1016, %v1156
          %v1163 = vadd.f32 %v1017, %v1158
          %v1164 = vxor.u32 %v1160, 2147483648
          %v1165 = vmul.f32 %v1164, 1.442695
          %v1166 = vpow.pop %v1165
          %v1167 = vadd.f32 %v1166, 1.0
          %v1168 = vrcp.pop %v1167
          %v1169 = vmul.f32 1.0, %v1168
          %v1170 = vxor.u32 %v1161, 2147483648
          %v1171 = vmul.f32 %v1170, 1.442695
          %v1172 = vpow.pop %v1171
          %v1173 = vadd.f32 %v1172, 1.0
          %v1174 = vrcp.pop %v1173
          %v1175 = vmul.f32 1.0, %v1174
          %v1176 = vtanh.pop %v1162
          %v1177 = vxor.u32 %v1163, 2147483648
          %v1178 = vmul.f32 %v1177, 1.442695
          %v1179 = vpow.pop %v1178
          %v1180 = vadd.f32 %v1179, 1.0
          %v1181 = vrcp.pop %v1180
          %v1182 = vmul.f32 1.0, %v1181
          %v1183 = vmul.f32 %v1175, %v1012
          %v1184 = vmul.f32 %v1169, %v1176
          %v1185 = vadd.f32 %v1183, %v1184
          %v1186 = vtanh.pop %v1185
          %v1187 = vmul.f32 %v1182, %v1186
          %v1188 = vld [vmem:[%s2] sm:$0xff]
          %s1189 = sadd.s32 %s451, 1
          %v1190 = vstv %s1189
          %vm1191 = vcmp.gt.s32.totalorder %v1188, %v1190
          %v1192 = vsel %vm1191, 1, 0
          %1193 = vset.pattern.permute.xlu0 0
          %1194 = vperm.xlu0 %1193, %v1192
          %v1195 = vpop.permute.xlu0 %1194
          %vm1196 = vcmp.eq.s32.totalorder %v1195, 1
          %v1197 = vsel %vm1196, %v1187, %v1011
          %1198 = vst [vmem:[#allocation2] sm:$0xff] %v1197
          %v1199 = vsel %vm1196, %v1185, %v1012
          %1200 = vst [vmem:[#allocation3] sm:$0xff] %v1199
          %v1201 = vsel %vm1196, %v1187, 0.0
          %s1202 = scalar_lea.vmem [#allocation5], 8
          %1203 = vst [vmem:[%s1202] sm:$0xff] %v1201
          %v1204 = vld [vmem:[#allocation2] sm:$0xff]
          %v1205 = vld [vmem:[#allocation3] sm:$0xff]
          %s1206 = scalar_lea.vmem [#allocation4], 64
          %v1207 = vld [vmem:[%s1206] sm:$0xff]
          %v1208 = vld [vmem:[%s1206 + $0x8] sm:$0xff]
          %v1209 = vld [vmem:[%s1206 + $0x10] sm:$0xff]
          %v1210 = vld [vmem:[%s1206 + $0x18] sm:$0xff]
          %1211 = vmatprep.subr.mxu0 %v818
          %1212 = vmatpush1.msra.mxu0 %v817
          %1213 = vmatprep.subr.mxu0 %v814
          %1214 = vmatpush1.msra.mxu0 %v813
          %1215 = vmatprep.subr.mxu0 %v810
          %1216 = vmatpush1.msra.mxu0 %v809
          %1217 = vmatprep.subr.mxu0 %v806
          %1218 = vmatpush1.msra.mxu0 %v805
          %1219 = vmatprep.subr.mxu0 %v802
          %1220 = vmatpush1.msra.mxu0 %v801
          %1221 = vmatprep.subr.mxu0 %v798
          %1222 = vmatpush1.msra.mxu0 %v797
          %1223 = vmatprep.subr.mxu0 %v794
          %1224 = vmatpush1.msra.mxu0 %v793
          %1225 = vmatprep.subr.mxu0 %v790
          %1226 = vmatpush1.msra.mxu0 %v789
          %1227 = vmatprep.subr.mxu0 %v786
          %1228 = vmatpush1.msra.mxu0 %v785
          %1229 = vmatprep.subr.mxu0 %v782
          %1230 = vmatpush1.msra.mxu0 %v781
          %1231 = vmatprep.subr.mxu0 %v778
          %1232 = vmatpush1.msra.mxu0 %v777
          %1233 = vmatprep.subr.mxu0 %v774
          %1234 = vmatpush1.msra.mxu0 %v773
          %1235 = vmatprep.subr.mxu0 %v770
          %1236 = vmatpush1.msra.mxu0 %v769
          %1237 = vmatprep.subr.mxu0 %v766
          %1238 = vmatpush1.msra.mxu0 %v765
          %1239 = vmatprep.subr.mxu0 %v762
          %1240 = vmatpush1.msra.mxu0 %v761
          %1241 = vmatprep.subr.mxu0 %v758
          %1242 = vmatpush1.msra.mxu0 %v757
          %1243 = vmatprep.subr.mxu0 0.0
          %1244 = vmatpush2.msra.mxu0 0.0
          %1245 = vmatprep.subr.mxu0 0.0
          %1246 = vmatpush2.msra.mxu0 0.0
          %1247 = vmatprep.subr.mxu0 0.0
          %1248 = vmatpush2.msra.mxu0 0.0
          %1249 = vmatprep.subr.mxu0 0.0
          %1250 = vmatpush2.msra.mxu0 0.0
          %1251 = vmatprep.subr.mxu0 0.0
          %1252 = vmatpush2.msra.mxu0 0.0
          %1253 = vmatprep.subr.mxu0 0.0
          %1254 = vmatpush2.msra.mxu0 0.0
          %1255 = vmatprep.subr.mxu0 0.0
          %1256 = vmatpush2.msra.mxu0 0.0
          %1257 = vmatprep.subr.mxu0 0.0
          %1258 = vmatpush2.msra.mxu0 0.0
          %1259 = vmatprep.subr.mxu0 0.0
          %1260 = vmatpush2.msra.mxu0 0.0
          %1261 = vmatprep.subr.mxu0 0.0
          %1262 = vmatpush2.msra.mxu0 0.0
          %1263 = vmatprep.subr.mxu0 0.0
          %1264 = vmatpush2.msra.mxu0 0.0
          %1265 = vmatprep.subr.mxu0 0.0
          %1266 = vmatpush2.msra.mxu0 0.0
          %1267 = vmatprep.subr.mxu0 0.0
          %1268 = vmatpush2.msra.mxu0 0.0
          %1269 = vmatprep.subr.mxu0 0.0
          %1270 = vmatpush2.msra.mxu0 0.0
          %1271 = vmatprep.subr.mxu0 0.0
          %1272 = vmatpush2.msra.mxu0 0.0
          %1273 = vmatprep.subr.mxu0 0.0
          %1274 = vmatpush2.msra.mxu0 0.0
          %1275 = vmatprep.mubr.f32.mxu0 0.0
          %1276 = vmatmul.mubr.f32.gmra.mxu0 %v1204
          %v1277 = vpop.f32.mrf.mxu0
          %v1278 = vadd.f32 0.0, %v1277
          %v1279 = vpop.f32.mrf.mxu0
          %v1280 = vadd.f32 0.0, %v1279
          %1281 = vdwg.mxu0
          %1282 = vmatprep.subr.mxu0 %v820
          %1283 = vmatpush1.msra.mxu0 %v819
          %1284 = vmatprep.subr.mxu0 %v816
          %1285 = vmatpush1.msra.mxu0 %v815
          %1286 = vmatprep.subr.mxu0 %v812
          %1287 = vmatpush1.msra.mxu0 %v811
          %1288 = vmatprep.subr.mxu0 %v808
          %1289 = vmatpush1.msra.mxu0 %v807
          %1290 = vmatprep.subr.mxu0 %v804
          %1291 = vmatpush1.msra.mxu0 %v803
          %1292 = vmatprep.subr.mxu0 %v800
          %1293 = vmatpush1.msra.mxu0 %v799
          %1294 = vmatprep.subr.mxu0 %v796
          %1295 = vmatpush1.msra.mxu0 %v795
          %1296 = vmatprep.subr.mxu0 %v792
          %1297 = vmatpush1.msra.mxu0 %v791
          %1298 = vmatprep.subr.mxu0 %v788
          %1299 = vmatpush1.msra.mxu0 %v787
          %1300 = vmatprep.subr.mxu0 %v784
          %1301 = vmatpush1.msra.mxu0 %v783
          %1302 = vmatprep.subr.mxu0 %v780
          %1303 = vmatpush1.msra.mxu0 %v779
          %1304 = vmatprep.subr.mxu0 %v776
          %1305 = vmatpush1.msra.mxu0 %v775
          %1306 = vmatprep.subr.mxu0 %v772
          %1307 = vmatpush1.msra.mxu0 %v771
          %1308 = vmatprep.subr.mxu0 %v768
          %1309 = vmatpush1.msra.mxu0 %v767
          %1310 = vmatprep.subr.mxu0 %v764
          %1311 = vmatpush1.msra.mxu0 %v763
          %1312 = vmatprep.subr.mxu0 %v760
          %1313 = vmatpush1.msra.mxu0 %v759
          %1314 = vmatprep.subr.mxu0 0.0
          %1315 = vmatpush2.msra.mxu0 0.0
          %1316 = vmatprep.subr.mxu0 0.0
          %1317 = vmatpush2.msra.mxu0 0.0
          %1318 = vmatprep.subr.mxu0 0.0
          %1319 = vmatpush2.msra.mxu0 0.0
          %1320 = vmatprep.subr.mxu0 0.0
          %1321 = vmatpush2.msra.mxu0 0.0
          %1322 = vmatprep.subr.mxu0 0.0
          %1323 = vmatpush2.msra.mxu0 0.0
          %1324 = vmatprep.subr.mxu0 0.0
          %1325 = vmatpush2.msra.mxu0 0.0
          %1326 = vmatprep.subr.mxu0 0.0
          %1327 = vmatpush2.msra.mxu0 0.0
          %1328 = vmatprep.subr.mxu0 0.0
          %1329 = vmatpush2.msra.mxu0 0.0
          %1330 = vmatprep.subr.mxu0 0.0
          %1331 = vmatpush2.msra.mxu0 0.0
          %1332 = vmatprep.subr.mxu0 0.0
          %1333 = vmatpush2.msra.mxu0 0.0
          %1334 = vmatprep.subr.mxu0 0.0
          %1335 = vmatpush2.msra.mxu0 0.0
          %1336 = vmatprep.subr.mxu0 0.0
          %1337 = vmatpush2.msra.mxu0 0.0
          %1338 = vmatprep.subr.mxu0 0.0
          %1339 = vmatpush2.msra.mxu0 0.0
          %1340 = vmatprep.subr.mxu0 0.0
          %1341 = vmatpush2.msra.mxu0 0.0
          %1342 = vmatprep.subr.mxu0 0.0
          %1343 = vmatpush2.msra.mxu0 0.0
          %1344 = vmatprep.subr.mxu0 0.0
          %1345 = vmatpush2.msra.mxu0 0.0
          %1346 = vmatprep.mubr.f32.mxu0 0.0
          %1347 = vmatmul.mubr.f32.gmra.mxu0 %v1204
          %v1348 = vpop.f32.mrf.mxu0
          %v1349 = vadd.f32 0.0, %v1348
          %v1350 = vpop.f32.mrf.mxu0
          %v1351 = vadd.f32 0.0, %v1350
          %1352 = vdwg.mxu0
          %v1353 = vadd.f32 %v1207, %v1278
          %v1354 = vadd.f32 %v1208, %v1280
          %v1355 = vadd.f32 %v1209, %v1349
          %v1356 = vadd.f32 %v1210, %v1351
          %v1357 = vxor.u32 %v1353, 2147483648
          %v1358 = vmul.f32 %v1357, 1.442695
          %v1359 = vpow.pop %v1358
          %v1360 = vadd.f32 %v1359, 1.0
          %v1361 = vrcp.pop %v1360
          %v1362 = vmul.f32 1.0, %v1361
          %v1363 = vxor.u32 %v1354, 2147483648
          %v1364 = vmul.f32 %v1363, 1.442695
          %v1365 = vpow.pop %v1364
          %v1366 = vadd.f32 %v1365, 1.0
          %v1367 = vrcp.pop %v1366
          %v1368 = vmul.f32 1.0, %v1367
          %v1369 = vtanh.pop %v1355
          %v1370 = vxor.u32 %v1356, 2147483648
          %v1371 = vmul.f32 %v1370, 1.442695
          %v1372 = vpow.pop %v1371
          %v1373 = vadd.f32 %v1372, 1.0
          %v1374 = vrcp.pop %v1373
          %v1375 = vmul.f32 1.0, %v1374
          %v1376 = vmul.f32 %v1368, %v1205
          %v1377 = vmul.f32 %v1362, %v1369
          %v1378 = vadd.f32 %v1376, %v1377
          %v1379 = vtanh.pop %v1378
          %v1380 = vmul.f32 %v1375, %v1379
          %v1381 = vld [vmem:[%s2] sm:$0xff]
          %s1382 = sadd.s32 %s451, 2
          %v1383 = vstv %s1382
          %vm1384 = vcmp.gt.s32.totalorder %v1381, %v1383
          %v1385 = vsel %vm1384, 1, 0
          %1386 = vset.pattern.permute.xlu0 0
          %1387 = vperm.xlu0 %1386, %v1385
          %v1388 = vpop.permute.xlu0 %1387
          %vm1389 = vcmp.eq.s32.totalorder %v1388, 1
          %v1390 = vsel %vm1389, %v1380, %v1204
          %1391 = vst [vmem:[#allocation2] sm:$0xff] %v1390
          %v1392 = vsel %vm1389, %v1378, %v1205
          %1393 = vst [vmem:[#allocation3] sm:$0xff] %v1392
          %v1394 = vsel %vm1389, %v1380, 0.0
          %s1395 = scalar_lea.vmem [#allocation5], 16
          %1396 = vst [vmem:[%s1395] sm:$0xff] %v1394
          %v1397 = vld [vmem:[#allocation2] sm:$0xff]
          %v1398 = vld [vmem:[#allocation3] sm:$0xff]
          %s1399 = scalar_lea.vmem [#allocation4], 96
          %v1400 = vld [vmem:[%s1399] sm:$0xff]
          %v1401 = vld [vmem:[%s1399 + $0x8] sm:$0xff]
          %v1402 = vld [vmem:[%s1399 + $0x10] sm:$0xff]
          %v1403 = vld [vmem:[%s1399 + $0x18] sm:$0xff]
          %1404 = vmatprep.subr.mxu0 %v818
          %1405 = vmatpush1.msra.mxu0 %v817
          %1406 = vmatprep.subr.mxu0 %v814
          %1407 = vmatpush1.msra.mxu0 %v813
          %1408 = vmatprep.subr.mxu0 %v810
          %1409 = vmatpush1.msra.mxu0 %v809
          %1410 = vmatprep.subr.mxu0 %v806
          %1411 = vmatpush1.msra.mxu0 %v805
          %1412 = vmatprep.subr.mxu0 %v802
          %1413 = vmatpush1.msra.mxu0 %v801
          %1414 = vmatprep.subr.mxu0 %v798
          %1415 = vmatpush1.msra.mxu0 %v797
          %1416 = vmatprep.subr.mxu0 %v794
          %1417 = vmatpush1.msra.mxu0 %v793
          %1418 = vmatprep.subr.mxu0 %v790
          %1419 = vmatpush1.msra.mxu0 %v789
          %1420 = vmatprep.subr.mxu0 %v786
          %1421 = vmatpush1.msra.mxu0 %v785
          %1422 = vmatprep.subr.mxu0 %v782
          %1423 = vmatpush1.msra.mxu0 %v781
          %1424 = vmatprep.subr.mxu0 %v778
          %1425 = vmatpush1.msra.mxu0 %v777
          %1426 = vmatprep.subr.mxu0 %v774
          %1427 = vmatpush1.msra.mxu0 %v773
          %1428 = vmatprep.subr.mxu0 %v770
          %1429 = vmatpush1.msra.mxu0 %v769
          %1430 = vmatprep.subr.mxu0 %v766
          %1431 = vmatpush1.msra.mxu0 %v765
          %1432 = vmatprep.subr.mxu0 %v762
          %1433 = vmatpush1.msra.mxu0 %v761
          %1434 = vmatprep.subr.mxu0 %v758
          %1435 = vmatpush1.msra.mxu0 %v757
          %1436 = vmatprep.subr.mxu0 0.0
          %1437 = vmatpush2.msra.mxu0 0.0
          %1438 = vmatprep.subr.mxu0 0.0
          %1439 = vmatpush2.msra.mxu0 0.0
          %1440 = vmatprep.subr.mxu0 0.0
          %1441 = vmatpush2.msra.mxu0 0.0
          %1442 = vmatprep.subr.mxu0 0.0
          %1443 = vmatpush2.msra.mxu0 0.0
          %1444 = vmatprep.subr.mxu0 0.0
          %1445 = vmatpush2.msra.mxu0 0.0
          %1446 = vmatprep.subr.mxu0 0.0
          %1447 = vmatpush2.msra.mxu0 0.0
          %1448 = vmatprep.subr.mxu0 0.0
          %1449 = vmatpush2.msra.mxu0 0.0
          %1450 = vmatprep.subr.mxu0 0.0
          %1451 = vmatpush2.msra.mxu0 0.0
          %1452 = vmatprep.subr.mxu0 0.0
          %1453 = vmatpush2.msra.mxu0 0.0
          %1454 = vmatprep.subr.mxu0 0.0
          %1455 = vmatpush2.msra.mxu0 0.0
          %1456 = vmatprep.subr.mxu0 0.0
          %1457 = vmatpush2.msra.mxu0 0.0
          %1458 = vmatprep.subr.mxu0 0.0
          %1459 = vmatpush2.msra.mxu0 0.0
          %1460 = vmatprep.subr.mxu0 0.0
          %1461 = vmatpush2.msra.mxu0 0.0
          %1462 = vmatprep.subr.mxu0 0.0
          %1463 = vmatpush2.msra.mxu0 0.0
          %1464 = vmatprep.subr.mxu0 0.0
          %1465 = vmatpush2.msra.mxu0 0.0
          %1466 = vmatprep.subr.mxu0 0.0
          %1467 = vmatpush2.msra.mxu0 0.0
          %1468 = vmatprep.mubr.f32.mxu0 0.0
          %1469 = vmatmul.mubr.f32.gmra.mxu0 %v1397
          %v1470 = vpop.f32.mrf.mxu0
          %v1471 = vadd.f32 0.0, %v1470
          %v1472 = vpop.f32.mrf.mxu0
          %v1473 = vadd.f32 0.0, %v1472
          %1474 = vdwg.mxu0
          %1475 = vmatprep.subr.mxu0 %v820
          %1476 = vmatpush1.msra.mxu0 %v819
          %1477 = vmatprep.subr.mxu0 %v816
          %1478 = vmatpush1.msra.mxu0 %v815
          %1479 = vmatprep.subr.mxu0 %v812
          %1480 = vmatpush1.msra.mxu0 %v811
          %1481 = vmatprep.subr.mxu0 %v808
          %1482 = vmatpush1.msra.mxu0 %v807
          %1483 = vmatprep.subr.mxu0 %v804
          %1484 = vmatpush1.msra.mxu0 %v803
          %1485 = vmatprep.subr.mxu0 %v800
          %1486 = vmatpush1.msra.mxu0 %v799
          %1487 = vmatprep.subr.mxu0 %v796
          %1488 = vmatpush1.msra.mxu0 %v795
          %1489 = vmatprep.subr.mxu0 %v792
          %1490 = vmatpush1.msra.mxu0 %v791
          %1491 = vmatprep.subr.mxu0 %v788
          %1492 = vmatpush1.msra.mxu0 %v787
          %1493 = vmatprep.subr.mxu0 %v784
          %1494 = vmatpush1.msra.mxu0 %v783
          %1495 = vmatprep.subr.mxu0 %v780
          %1496 = vmatpush1.msra.mxu0 %v779
          %1497 = vmatprep.subr.mxu0 %v776
          %1498 = vmatpush1.msra.mxu0 %v775
          %1499 = vmatprep.subr.mxu0 %v772
          %1500 = vmatpush1.msra.mxu0 %v771
          %1501 = vmatprep.subr.mxu0 %v768
          %1502 = vmatpush1.msra.mxu0 %v767
          %1503 = vmatprep.subr.mxu0 %v764
          %1504 = vmatpush1.msra.mxu0 %v763
          %1505 = vmatprep.subr.mxu0 %v760
          %1506 = vmatpush1.msra.mxu0 %v759
          %1507 = vmatprep.subr.mxu0 0.0
          %1508 = vmatpush2.msra.mxu0 0.0
          %1509 = vmatprep.subr.mxu0 0.0
          %1510 = vmatpush2.msra.mxu0 0.0
          %1511 = vmatprep.subr.mxu0 0.0
          %1512 = vmatpush2.msra.mxu0 0.0
          %1513 = vmatprep.subr.mxu0 0.0
          %1514 = vmatpush2.msra.mxu0 0.0
          %1515 = vmatprep.subr.mxu0 0.0
          %1516 = vmatpush2.msra.mxu0 0.0
          %1517 = vmatprep.subr.mxu0 0.0
          %1518 = vmatpush2.msra.mxu0 0.0
          %1519 = vmatprep.subr.mxu0 0.0
          %1520 = vmatpush2.msra.mxu0 0.0
          %1521 = vmatprep.subr.mxu0 0.0
          %1522 = vmatpush2.msra.mxu0 0.0
          %1523 = vmatprep.subr.mxu0 0.0
          %1524 = vmatpush2.msra.mxu0 0.0
          %1525 = vmatprep.subr.mxu0 0.0
          %1526 = vmatpush2.msra.mxu0 0.0
          %1527 = vmatprep.subr.mxu0 0.0
          %1528 = vmatpush2.msra.mxu0 0.0
          %1529 = vmatprep.subr.mxu0 0.0
          %1530 = vmatpush2.msra.mxu0 0.0
          %1531 = vmatprep.subr.mxu0 0.0
          %1532 = vmatpush2.msra.mxu0 0.0
          %1533 = vmatprep.subr.mxu0 0.0
          %1534 = vmatpush2.msra.mxu0 0.0
          %1535 = vmatprep.subr.mxu0 0.0
          %1536 = vmatpush2.msra.mxu0 0.0
          %1537 = vmatprep.subr.mxu0 0.0
          %1538 = vmatpush2.msra.mxu0 0.0
          %1539 = vmatprep.mubr.f32.mxu0 0.0
          %1540 = vmatmul.mubr.f32.gmra.mxu0 %v1397
          %v1541 = vpop.f32.mrf.mxu0
          %v1542 = vadd.f32 0.0, %v1541
          %v1543 = vpop.f32.mrf.mxu0
          %v1544 = vadd.f32 0.0, %v1543
          %1545 = vdwg.mxu0
          %v1546 = vadd.f32 %v1400, %v1471
          %v1547 = vadd.f32 %v1401, %v1473
          %v1548 = vadd.f32 %v1402, %v1542
          %v1549 = vadd.f32 %v1403, %v1544
          %v1550 = vxor.u32 %v1546, 2147483648
          %v1551 = vmul.f32 %v1550, 1.442695
          %v1552 = vpow.pop %v1551
          %v1553 = vadd.f32 %v1552, 1.0
          %v1554 = vrcp.pop %v1553
          %v1555 = vmul.f32 1.0, %v1554
          %v1556 = vxor.u32 %v1547, 2147483648
          %v1557 = vmul.f32 %v1556, 1.442695
          %v1558 = vpow.pop %v1557
          %v1559 = vadd.f32 %v1558, 1.0
          %v1560 = vrcp.pop %v1559
          %v1561 = vmul.f32 1.0, %v1560
          %v1562 = vtanh.pop %v1548
          %v1563 = vxor.u32 %v1549, 2147483648
          %v1564 = vmul.f32 %v1563, 1.442695
          %v1565 = vpow.pop %v1564
          %v1566 = vadd.f32 %v1565, 1.0
          %v1567 = vrcp.pop %v1566
          %v1568 = vmul.f32 1.0, %v1567
          %v1569 = vmul.f32 %v1561, %v1398
          %v1570 = vmul.f32 %v1555, %v1562
          %v1571 = vadd.f32 %v1569, %v1570
          %v1572 = vtanh.pop %v1571
          %v1573 = vmul.f32 %v1568, %v1572
          %v1574 = vld [vmem:[%s2] sm:$0xff]
          %s1575 = sadd.s32 %s451, 3
          %v1576 = vstv %s1575
          %vm1577 = vcmp.gt.s32.totalorder %v1574, %v1576
          %v1578 = vsel %vm1577, 1, 0
          %1579 = vset.pattern.permute.xlu0 0
          %1580 = vperm.xlu0 %1579, %v1578
          %v1581 = vpop.permute.xlu0 %1580
          %vm1582 = vcmp.eq.s32.totalorder %v1581, 1
          %v1583 = vsel %vm1582, %v1573, %v1397
          %1584 = vst [vmem:[#allocation2] sm:$0xff] %v1583
          %v1585 = vsel %vm1582, %v1571, %v1398
          %1586 = vst [vmem:[#allocation3] sm:$0xff] %v1585
          %v1587 = vsel %vm1582, %v1573, 0.0
          %s1588 = scalar_lea.vmem [#allocation5], 24
          %1589 = vst [vmem:[%s1588] sm:$0xff] %v1587
          %v1590 = vld [vmem:[#allocation5] sm:$0xff]
          %v1591 = vld [vmem:[#allocation5 + $0x8] sm:$0xff]
          %v1592 = vld [vmem:[#allocation5 + $0x10] sm:$0xff]
          %v1593 = vld [vmem:[#allocation5 + $0x18] sm:$0xff]
          %v1594 = vld [vmem:[#allocation13] sm:$0xff]
          %v1595 = vld [vmem:[#allocation13 + $0x8] sm:$0xff]
          %v1596 = vld [vmem:[#allocation13 + $0x10] sm:$0xff]
          %v1597 = vld [vmem:[#allocation13 + $0x18] sm:$0xff]
          %v1598 = vld [vmem:[#allocation13 + $0x20] sm:$0xff]
          %v1599 = vld [vmem:[#allocation13 + $0x28] sm:$0xff]
          %v1600 = vld [vmem:[#allocation13 + $0x30] sm:$0xff]
          %v1601 = vld [vmem:[#allocation13 + $0x38] sm:$0xff]
          %v1602 = vld [vmem:[#allocation13 + $0x40] sm:$0xff]
          %v1603 = vld [vmem:[#allocation13 + $0x48] sm:$0xff]
          %v1604 = vld [vmem:[#allocation13 + $0x50] sm:$0xff]
          %v1605 = vld [vmem:[#allocation13 + $0x58] sm:$0xff]
          %v1606 = vld [vmem:[#allocation13 + $0x60] sm:$0xff]
          %v1607 = vld [vmem:[#allocation13 + $0x68] sm:$0xff]
          %v1608 = vld [vmem:[#allocation13 + $0x70] sm:$0xff]
          %v1609 = vld [vmem:[#allocation13 + $0x78] sm:$0xff]
          %v1610 = vld [vmem:[#allocation13 + $0x80] sm:$0xff]
          %v1611 = vld [vmem:[#allocation13 + $0x88] sm:$0xff]
          %v1612 = vld [vmem:[#allocation13 + $0x90] sm:$0xff]
          %v1613 = vld [vmem:[#allocation13 + $0x98] sm:$0xff]
          %v1614 = vld [vmem:[#allocation13 + $0xa0] sm:$0xff]
          %v1615 = vld [vmem:[#allocation13 + $0xa8] sm:$0xff]
          %v1616 = vld [vmem:[#allocation13 + $0xb0] sm:$0xff]
          %v1617 = vld [vmem:[#allocation13 + $0xb8] sm:$0xff]
          %v1618 = vld [vmem:[#allocation13 + $0xc0] sm:$0xff]
          %v1619 = vld [vmem:[#allocation13 + $0xc8] sm:$0xff]
          %v1620 = vld [vmem:[#allocation13 + $0xd0] sm:$0xff]
          %v1621 = vld [vmem:[#allocation13 + $0xd8] sm:$0xff]
          %v1622 = vld [vmem:[#allocation13 + $0xe0] sm:$0xff]
          %v1623 = vld [vmem:[#allocation13 + $0xe8] sm:$0xff]
          %v1624 = vld [vmem:[#allocation13 + $0xf0] sm:$0xff]
          %v1625 = vld [vmem:[#allocation13 + $0xf8] sm:$0xff]
          %v1626 = vld [vmem:[#allocation13 + $0x100] sm:$0xff]
          %v1627 = vld [vmem:[#allocation13 + $0x108] sm:$0xff]
          %v1628 = vld [vmem:[#allocation13 + $0x110] sm:$0xff]
          %v1629 = vld [vmem:[#allocation13 + $0x118] sm:$0xff]
          %v1630 = vld [vmem:[#allocation13 + $0x120] sm:$0xff]
          %v1631 = vld [vmem:[#allocation13 + $0x128] sm:$0xff]
          %v1632 = vld [vmem:[#allocation13 + $0x130] sm:$0xff]
          %v1633 = vld [vmem:[#allocation13 + $0x138] sm:$0xff]
          %v1634 = vld [vmem:[#allocation13 + $0x140] sm:$0xff]
          %v1635 = vld [vmem:[#allocation13 + $0x148] sm:$0xff]
          %v1636 = vld [vmem:[#allocation13 + $0x150] sm:$0xff]
          %v1637 = vld [vmem:[#allocation13 + $0x158] sm:$0xff]
          %v1638 = vld [vmem:[#allocation13 + $0x160] sm:$0xff]
          %v1639 = vld [vmem:[#allocation13 + $0x168] sm:$0xff]
          %v1640 = vld [vmem:[#allocation13 + $0x170] sm:$0xff]
          %v1641 = vld [vmem:[#allocation13 + $0x178] sm:$0xff]
          %v1642 = vld [vmem:[#allocation13 + $0x180] sm:$0xff]
          %v1643 = vld [vmem:[#allocation13 + $0x188] sm:$0xff]
          %v1644 = vld [vmem:[#allocation13 + $0x190] sm:$0xff]
          %v1645 = vld [vmem:[#allocation13 + $0x198] sm:$0xff]
          %v1646 = vld [vmem:[#allocation13 + $0x1a0] sm:$0xff]
          %v1647 = vld [vmem:[#allocation13 + $0x1a8] sm:$0xff]
          %v1648 = vld [vmem:[#allocation13 + $0x1b0] sm:$0xff]
          %v1649 = vld [vmem:[#allocation13 + $0x1b8] sm:$0xff]
          %v1650 = vld [vmem:[#allocation13 + $0x1c0] sm:$0xff]
          %v1651 = vld [vmem:[#allocation13 + $0x1c8] sm:$0xff]
          %v1652 = vld [vmem:[#allocation13 + $0x1d0] sm:$0xff]
          %v1653 = vld [vmem:[#allocation13 + $0x1d8] sm:$0xff]
          %v1654 = vld [vmem:[#allocation13 + $0x1e0] sm:$0xff]
          %v1655 = vld [vmem:[#allocation13 + $0x1e8] sm:$0xff]
          %v1656 = vld [vmem:[#allocation13 + $0x1f0] sm:$0xff]
          %v1657 = vld [vmem:[#allocation13 + $0x1f8] sm:$0xff]
          %s1658 = scalar_lea.vmem %s6, 4
          %v1659 = vld [vmem:[%s1658] sm:$0xf]
          %v1661 = vlaneseq
          %v1662 = vshrl.u32 %v1661, 7
          %v1663 = vsub.s32 0, %v1662
          %v1664 = vrot.slane %v1659, %v1663
          %v1665 = vlaneseq
          %v1666 = vshrl.u32 %v1665, 7
          %v1667 = vsub.s32 1, %v1666
          %v1668 = vrot.slane %v1659, %v1667
          %v1669 = vlaneseq
          %v1670 = vshrl.u32 %v1669, 7
          %v1671 = vsub.s32 2, %v1670
          %v1672 = vrot.slane %v1659, %v1671
          %v1673 = vlaneseq
          %v1674 = vshrl.u32 %v1673, 7
          %v1675 = vsub.s32 3, %v1674
          %v1676 = vrot.slane %v1659, %v1675
          %1681 = vmatprep.subr.mxu0 %v1655
          %1682 = vmatpush1.msra.mxu0 %v1654
          %1683 = vmatprep.subr.mxu0 %v1651
          %1684 = vmatpush1.msra.mxu0 %v1650
          %1685 = vmatprep.subr.mxu0 %v1647
          %1686 = vmatpush1.msra.mxu0 %v1646
          %1687 = vmatprep.subr.mxu0 %v1643
          %1688 = vmatpush1.msra.mxu0 %v1642
          %1689 = vmatprep.subr.mxu0 %v1639
          %1690 = vmatpush1.msra.mxu0 %v1638
          %1691 = vmatprep.subr.mxu0 %v1635
          %1692 = vmatpush1.msra.mxu0 %v1634
          %1693 = vmatprep.subr.mxu0 %v1631
          %1694 = vmatpush1.msra.mxu0 %v1630
          %1695 = vmatprep.subr.mxu0 %v1627
          %1696 = vmatpush1.msra.mxu0 %v1626
          %1697 = vmatprep.subr.mxu0 %v1623
          %1698 = vmatpush1.msra.mxu0 %v1622
          %1699 = vmatprep.subr.mxu0 %v1619
          %1700 = vmatpush1.msra.mxu0 %v1618
          %1701 = vmatprep.subr.mxu0 %v1615
          %1702 = vmatpush1.msra.mxu0 %v1614
          %1703 = vmatprep.subr.mxu0 %v1611
          %1704 = vmatpush1.msra.mxu0 %v1610
          %1705 = vmatprep.subr.mxu0 %v1607
          %1706 = vmatpush1.msra.mxu0 %v1606
          %1707 = vmatprep.subr.mxu0 %v1603
          %1708 = vmatpush1.msra.mxu0 %v1602
          %1709 = vmatprep.subr.mxu0 %v1599
          %1710 = vmatpush1.msra.mxu0 %v1598
          %1711 = vmatprep.subr.mxu0 %v1595
          %1712 = vmatpush1.msra.mxu0 %v1594
          %1713 = vmatprep.subr.mxu0 0.0
          %1714 = vmatpush2.msra.mxu0 0.0
          %1715 = vmatprep.subr.mxu0 0.0
          %1716 = vmatpush2.msra.mxu0 0.0
          %1717 = vmatprep.subr.mxu0 0.0
          %1718 = vmatpush2.msra.mxu0 0.0
          %1719 = vmatprep.subr.mxu0 0.0
          %1720 = vmatpush2.msra.mxu0 0.0
          %1721 = vmatprep.subr.mxu0 0.0
          %1722 = vmatpush2.msra.mxu0 0.0
          %1723 = vmatprep.subr.mxu0 0.0
          %1724 = vmatpush2.msra.mxu0 0.0
          %1725 = vmatprep.subr.mxu0 0.0
          %1726 = vmatpush2.msra.mxu0 0.0
          %1727 = vmatprep.subr.mxu0 0.0
          %1728 = vmatpush2.msra.mxu0 0.0
          %1729 = vmatprep.subr.mxu0 0.0
          %1730 = vmatpush2.msra.mxu0 0.0
          %1731 = vmatprep.subr.mxu0 0.0
          %1732 = vmatpush2.msra.mxu0 0.0
          %1733 = vmatprep.subr.mxu0 0.0
          %1734 = vmatpush2.msra.mxu0 0.0
          %1735 = vmatprep.subr.mxu0 0.0
          %1736 = vmatpush2.msra.mxu0 0.0
          %1737 = vmatprep.subr.mxu0 0.0
          %1738 = vmatpush2.msra.mxu0 0.0
          %1739 = vmatprep.subr.mxu0 0.0
          %1740 = vmatpush2.msra.mxu0 0.0
          %1741 = vmatprep.subr.mxu0 0.0
          %1742 = vmatpush2.msra.mxu0 0.0
          %1743 = vmatprep.subr.mxu0 0.0
          %1744 = vmatpush2.msra.mxu0 0.0
          %1745 = vmatprep.mubr.f32.mxu0 0.0
          %1746 = vmatmul.mubr.f32.gmra.mxu0 %v1590
          %v1747 = vpop.f32.mrf.mxu0
          %v1748 = vadd.f32 %v1664, %v1747
          %v1749 = vpop.f32.mrf.mxu0
          %v1750 = vadd.f32 %v1668, %v1749
          %1751 = vmatprep.mubr.f32.mxu0 0.0
          %1752 = vmatmul.mubr.f32.gmra.mxu0 %v1591
          %v1753 = vpop.f32.mrf.mxu0
          %v1754 = vadd.f32 %v1664, %v1753
          %v1755 = vpop.f32.mrf.mxu0
          %v1756 = vadd.f32 %v1668, %v1755
          %1757 = vmatprep.mubr.f32.mxu0 0.0
          %1758 = vmatmul.mubr.f32.gmra.mxu0 %v1592
          %v1759 = vpop.f32.mrf.mxu0
          %v1760 = vadd.f32 %v1664, %v1759
          %v1761 = vpop.f32.mrf.mxu0
          %v1762 = vadd.f32 %v1668, %v1761
          %1763 = vmatprep.mubr.f32.mxu0 0.0
          %1764 = vmatmul.mubr.f32.gmra.mxu0 %v1593
          %v1765 = vpop.f32.mrf.mxu0
          %v1766 = vadd.f32 %v1664, %v1765
          %v1767 = vpop.f32.mrf.mxu0
          %v1768 = vadd.f32 %v1668, %v1767
          %1769 = vdwg.mxu0
          %1770 = vmatprep.subr.mxu0 %v1657
          %1771 = vmatpush1.msra.mxu0 %v1656
          %1772 = vmatprep.subr.mxu0 %v1653
          %1773 = vmatpush1.msra.mxu0 %v1652
          %1774 = vmatprep.subr.mxu0 %v1649
          %1775 = vmatpush1.msra.mxu0 %v1648
          %1776 = vmatprep.subr.mxu0 %v1645
          %1777 = vmatpush1.msra.mxu0 %v1644
          %1778 = vmatprep.subr.mxu0 %v1641
          %1779 = vmatpush1.msra.mxu0 %v1640
          %1780 = vmatprep.subr.mxu0 %v1637
          %1781 = vmatpush1.msra.mxu0 %v1636
          %1782 = vmatprep.subr.mxu0 %v1633
          %1783 = vmatpush1.msra.mxu0 %v1632
          %1784 = vmatprep.subr.mxu0 %v1629
          %1785 = vmatpush1.msra.mxu0 %v1628
          %1786 = vmatprep.subr.mxu0 %v1625
          %1787 = vmatpush1.msra.mxu0 %v1624
          %1788 = vmatprep.subr.mxu0 %v1621
          %1789 = vmatpush1.msra.mxu0 %v1620
          %1790 = vmatprep.subr.mxu0 %v1617
          %1791 = vmatpush1.msra.mxu0 %v1616
          %1792 = vmatprep.subr.mxu0 %v1613
          %1793 = vmatpush1.msra.mxu0 %v1612
          %1794 = vmatprep.subr.mxu0 %v1609
          %1795 = vmatpush1.msra.mxu0 %v1608
          %1796 = vmatprep.subr.mxu0 %v1605
          %1797 = vmatpush1.msra.mxu0 %v1604
          %1798 = vmatprep.subr.mxu0 %v1601
          %1799 = vmatpush1.msra.mxu0 %v1600
          %1800 = vmatprep.subr.mxu0 %v1597
          %1801 = vmatpush1.msra.mxu0 %v1596
          %1802 = vmatprep.subr.mxu0 0.0
          %1803 = vmatpush2.msra.mxu0 0.0
          %1804 = vmatprep.subr.mxu0 0.0
          %1805 = vmatpush2.msra.mxu0 0.0
          %1806 = vmatprep.subr.mxu0 0.0
          %1807 = vmatpush2.msra.mxu0 0.0
          %1808 = vmatprep.subr.mxu0 0.0
          %1809 = vmatpush2.msra.mxu0 0.0
          %1810 = vmatprep.subr.mxu0 0.0
          %1811 = vmatpush2.msra.mxu0 0.0
          %1812 = vmatprep.subr.mxu0 0.0
          %1813 = vmatpush2.msra.mxu0 0.0
          %1814 = vmatprep.subr.mxu0 0.0
          %1815 = vmatpush2.msra.mxu0 0.0
          %1816 = vmatprep.subr.mxu0 0.0
          %1817 = vmatpush2.msra.mxu0 0.0
          %1818 = vmatprep.subr.mxu0 0.0
          %1819 = vmatpush2.msra.mxu0 0.0
          %1820 = vmatprep.subr.mxu0 0.0
          %1821 = vmatpush2.msra.mxu0 0.0
          %1822 = vmatprep.subr.mxu0 0.0
          %1823 = vmatpush2.msra.mxu0 0.0
          %1824 = vmatprep.subr.mxu0 0.0
          %1825 = vmatpush2.msra.mxu0 0.0
          %1826 = vmatprep.subr.mxu0 0.0
          %1827 = vmatpush2.msra.mxu0 0.0
          %1828 = vmatprep.subr.mxu0 0.0
          %1829 = vmatpush2.msra.mxu0 0.0
          %1830 = vmatprep.subr.mxu0 0.0
          %1831 = vmatpush2.msra.mxu0 0.0
          %1832 = vmatprep.subr.mxu0 0.0
          %1833 = vmatpush2.msra.mxu0 0.0
          %1834 = vmatprep.mubr.f32.mxu0 0.0
          %1835 = vmatmul.mubr.f32.gmra.mxu0 %v1590
          %v1836 = vpop.f32.mrf.mxu0
          %v1837 = vadd.f32 %v1672, %v1836
          %v1838 = vpop.f32.mrf.mxu0
          %v1839 = vadd.f32 %v1676, %v1838
          %1840 = vmatprep.mubr.f32.mxu0 0.0
          %1841 = vmatmul.mubr.f32.gmra.mxu0 %v1591
          %v1842 = vpop.f32.mrf.mxu0
          %v1843 = vadd.f32 %v1672, %v1842
          %v1844 = vpop.f32.mrf.mxu0
          %v1845 = vadd.f32 %v1676, %v1844
          %1846 = vmatprep.mubr.f32.mxu0 0.0
          %1847 = vmatmul.mubr.f32.gmra.mxu0 %v1592
          %v1848 = vpop.f32.mrf.mxu0
          %v1849 = vadd.f32 %v1672, %v1848
          %v1850 = vpop.f32.mrf.mxu0
          %v1851 = vadd.f32 %v1676, %v1850
          %1852 = vmatprep.mubr.f32.mxu0 0.0
          %1853 = vmatmul.mubr.f32.gmra.mxu0 %v1593
          %v1854 = vpop.f32.mrf.mxu0
          %v1855 = vadd.f32 %v1672, %v1854
          %v1856 = vpop.f32.mrf.mxu0
          %v1857 = vadd.f32 %v1676, %v1856
          %1858 = vdwg.mxu0
          %1859 = vst [vmem:[#allocation4] sm:$0xff] %v1748
          %1860 = vst [vmem:[#allocation4 + $0x8] sm:$0xff] %v1750
          %1861 = vst [vmem:[#allocation4 + $0x10] sm:$0xff] %v1837
          %1862 = vst [vmem:[#allocation4 + $0x18] sm:$0xff] %v1839
          %1863 = vst [vmem:[#allocation4 + $0x20] sm:$0xff] %v1754
          %1864 = vst [vmem:[#allocation4 + $0x28] sm:$0xff] %v1756
          %1865 = vst [vmem:[#allocation4 + $0x30] sm:$0xff] %v1843
          %1866 = vst [vmem:[#allocation4 + $0x38] sm:$0xff] %v1845
          %1867 = vst [vmem:[#allocation4 + $0x40] sm:$0xff] %v1760
          %1868 = vst [vmem:[#allocation4 + $0x48] sm:$0xff] %v1762
          %1869 = vst [vmem:[#allocation4 + $0x50] sm:$0xff] %v1849
          %1870 = vst [vmem:[#allocation4 + $0x58] sm:$0xff] %v1851
          %1871 = vst [vmem:[#allocation4 + $0x60] sm:$0xff] %v1766
          %1872 = vst [vmem:[#allocation4 + $0x68] sm:$0xff] %v1768
          %1873 = vst [vmem:[#allocation4 + $0x70] sm:$0xff] %v1855
          %1874 = vst [vmem:[#allocation4 + $0x78] sm:$0xff] %v1857
          %s1875 = scalar_lea.vmem [#allocation14], 512
          %v1876 = vld [vmem:[%s1875] sm:$0xff]
          %v1877 = vld [vmem:[%s1875 + $0x8] sm:$0xff]
          %v1878 = vld [vmem:[%s1875 + $0x10] sm:$0xff]
          %v1879 = vld [vmem:[%s1875 + $0x18] sm:$0xff]
          %v1880 = vld [vmem:[%s1875 + $0x20] sm:$0xff]
          %v1881 = vld [vmem:[%s1875 + $0x28] sm:$0xff]
          %v1882 = vld [vmem:[%s1875 + $0x30] sm:$0xff]
          %v1883 = vld [vmem:[%s1875 + $0x38] sm:$0xff]
          %v1884 = vld [vmem:[%s1875 + $0x40] sm:$0xff]
          %v1885 = vld [vmem:[%s1875 + $0x48] sm:$0xff]
          %v1886 = vld [vmem:[%s1875 + $0x50] sm:$0xff]
          %v1887 = vld [vmem:[%s1875 + $0x58] sm:$0xff]
          %v1888 = vld [vmem:[%s1875 + $0x60] sm:$0xff]
          %v1889 = vld [vmem:[%s1875 + $0x68] sm:$0xff]
          %v1890 = vld [vmem:[%s1875 + $0x70] sm:$0xff]
          %v1891 = vld [vmem:[%s1875 + $0x78] sm:$0xff]
          %v1892 = vld [vmem:[%s1875 + $0x80] sm:$0xff]
          %v1893 = vld [vmem:[%s1875 + $0x88] sm:$0xff]
          %v1894 = vld [vmem:[%s1875 + $0x90] sm:$0xff]
          %v1895 = vld [vmem:[%s1875 + $0x98] sm:$0xff]
          %v1896 = vld [vmem:[%s1875 + $0xa0] sm:$0xff]
          %v1897 = vld [vmem:[%s1875 + $0xa8] sm:$0xff]
          %v1898 = vld [vmem:[%s1875 + $0xb0] sm:$0xff]
          %v1899 = vld [vmem:[%s1875 + $0xb8] sm:$0xff]
          %v1900 = vld [vmem:[%s1875 + $0xc0] sm:$0xff]
          %v1901 = vld [vmem:[%s1875 + $0xc8] sm:$0xff]
          %v1902 = vld [vmem:[%s1875 + $0xd0] sm:$0xff]
          %v1903 = vld [vmem:[%s1875 + $0xd8] sm:$0xff]
          %v1904 = vld [vmem:[%s1875 + $0xe0] sm:$0xff]
          %v1905 = vld [vmem:[%s1875 + $0xe8] sm:$0xff]
          %v1906 = vld [vmem:[%s1875 + $0xf0] sm:$0xff]
          %v1907 = vld [vmem:[%s1875 + $0xf8] sm:$0xff]
          %v1908 = vld [vmem:[%s1875 + $0x100] sm:$0xff]
          %v1909 = vld [vmem:[%s1875 + $0x108] sm:$0xff]
          %v1910 = vld [vmem:[%s1875 + $0x110] sm:$0xff]
          %v1911 = vld [vmem:[%s1875 + $0x118] sm:$0xff]
          %v1912 = vld [vmem:[%s1875 + $0x120] sm:$0xff]
          %v1913 = vld [vmem:[%s1875 + $0x128] sm:$0xff]
          %v1914 = vld [vmem:[%s1875 + $0x130] sm:$0xff]
          %v1915 = vld [vmem:[%s1875 + $0x138] sm:$0xff]
          %v1916 = vld [vmem:[%s1875 + $0x140] sm:$0xff]
          %v1917 = vld [vmem:[%s1875 + $0x148] sm:$0xff]
          %v1918 = vld [vmem:[%s1875 + $0x150] sm:$0xff]
          %v1919 = vld [vmem:[%s1875 + $0x158] sm:$0xff]
          %v1920 = vld [vmem:[%s1875 + $0x160] sm:$0xff]
          %v1921 = vld [vmem:[%s1875 + $0x168] sm:$0xff]
          %v1922 = vld [vmem:[%s1875 + $0x170] sm:$0xff]
          %v1923 = vld [vmem:[%s1875 + $0x178] sm:$0xff]
          %v1924 = vld [vmem:[%s1875 + $0x180] sm:$0xff]
          %v1925 = vld [vmem:[%s1875 + $0x188] sm:$0xff]
          %v1926 = vld [vmem:[%s1875 + $0x190] sm:$0xff]
          %v1927 = vld [vmem:[%s1875 + $0x198] sm:$0xff]
          %v1928 = vld [vmem:[%s1875 + $0x1a0] sm:$0xff]
          %v1929 = vld [vmem:[%s1875 + $0x1a8] sm:$0xff]
          %v1930 = vld [vmem:[%s1875 + $0x1b0] sm:$0xff]
          %v1931 = vld [vmem:[%s1875 + $0x1b8] sm:$0xff]
          %v1932 = vld [vmem:[%s1875 + $0x1c0] sm:$0xff]
          %v1933 = vld [vmem:[%s1875 + $0x1c8] sm:$0xff]
          %v1934 = vld [vmem:[%s1875 + $0x1d0] sm:$0xff]
          %v1935 = vld [vmem:[%s1875 + $0x1d8] sm:$0xff]
          %v1936 = vld [vmem:[%s1875 + $0x1e0] sm:$0xff]
          %v1937 = vld [vmem:[%s1875 + $0x1e8] sm:$0xff]
          %v1938 = vld [vmem:[%s1875 + $0x1f0] sm:$0xff]
          %v1939 = vld [vmem:[%s1875 + $0x1f8] sm:$0xff]
          %s1940 = scalar_lea.vmem [#allocation2], 8
          %v1941 = vld [vmem:[%s1940] sm:$0xff]
          %s1942 = scalar_lea.vmem [#allocation3], 8
          %v1943 = vld [vmem:[%s1942] sm:$0xff]
          %v1944 = vld [vmem:[#allocation4] sm:$0xff]
          %v1945 = vld [vmem:[#allocation4 + $0x8] sm:$0xff]
          %v1946 = vld [vmem:[#allocation4 + $0x10] sm:$0xff]
          %v1947 = vld [vmem:[#allocation4 + $0x18] sm:$0xff]
          %1948 = vmatprep.subr.mxu0 %v1937
          %1949 = vmatpush1.msra.mxu0 %v1936
          %1950 = vmatprep.subr.mxu0 %v1933
          %1951 = vmatpush1.msra.mxu0 %v1932
          %1952 = vmatprep.subr.mxu0 %v1929
          %1953 = vmatpush1.msra.mxu0 %v1928
          %1954 = vmatprep.subr.mxu0 %v1925
          %1955 = vmatpush1.msra.mxu0 %v1924
          %1956 = vmatprep.subr.mxu0 %v1921
          %1957 = vmatpush1.msra.mxu0 %v1920
          %1958 = vmatprep.subr.mxu0 %v1917
          %1959 = vmatpush1.msra.mxu0 %v1916
          %1960 = vmatprep.subr.mxu0 %v1913
          %1961 = vmatpush1.msra.mxu0 %v1912
          %1962 = vmatprep.subr.mxu0 %v1909
          %1963 = vmatpush1.msra.mxu0 %v1908
          %1964 = vmatprep.subr.mxu0 %v1905
          %1965 = vmatpush1.msra.mxu0 %v1904
          %1966 = vmatprep.subr.mxu0 %v1901
          %1967 = vmatpush1.msra.mxu0 %v1900
          %1968 = vmatprep.subr.mxu0 %v1897
          %1969 = vmatpush1.msra.mxu0 %v1896
          %1970 = vmatprep.subr.mxu0 %v1893
          %1971 = vmatpush1.msra.mxu0 %v1892
          %1972 = vmatprep.subr.mxu0 %v1889
          %1973 = vmatpush1.msra.mxu0 %v1888
          %1974 = vmatprep.subr.mxu0 %v1885
          %1975 = vmatpush1.msra.mxu0 %v1884
          %1976 = vmatprep.subr.mxu0 %v1881
          %1977 = vmatpush1.msra.mxu0 %v1880
          %1978 = vmatprep.subr.mxu0 %v1877
          %1979 = vmatpush1.msra.mxu0 %v1876
          %1980 = vmatprep.subr.mxu0 0.0
          %1981 = vmatpush2.msra.mxu0 0.0
          %1982 = vmatprep.subr.mxu0 0.0
          %1983 = vmatpush2.msra.mxu0 0.0
          %1984 = vmatprep.subr.mxu0 0.0
          %1985 = vmatpush2.msra.mxu0 0.0
          %1986 = vmatprep.subr.mxu0 0.0
          %1987 = vmatpush2.msra.mxu0 0.0
          %1988 = vmatprep.subr.mxu0 0.0
          %1989 = vmatpush2.msra.mxu0 0.0
          %1990 = vmatprep.subr.mxu0 0.0
          %1991 = vmatpush2.msra.mxu0 0.0
          %1992 = vmatprep.subr.mxu0 0.0
          %1993 = vmatpush2.msra.mxu0 0.0
          %1994 = vmatprep.subr.mxu0 0.0
          %1995 = vmatpush2.msra.mxu0 0.0
          %1996 = vmatprep.subr.mxu0 0.0
          %1997 = vmatpush2.msra.mxu0 0.0
          %1998 = vmatprep.subr.mxu0 0.0
          %1999 = vmatpush2.msra.mxu0 0.0
          %2000 = vmatprep.subr.mxu0 0.0
          %2001 = vmatpush2.msra.mxu0 0.0
          %2002 = vmatprep.subr.mxu0 0.0
          %2003 = vmatpush2.msra.mxu0 0.0
          %2004 = vmatprep.subr.mxu0 0.0
          %2005 = vmatpush2.msra.mxu0 0.0
          %2006 = vmatprep.subr.mxu0 0.0
          %2007 = vmatpush2.msra.mxu0 0.0
          %2008 = vmatprep.subr.mxu0 0.0
          %2009 = vmatpush2.msra.mxu0 0.0
          %2010 = vmatprep.subr.mxu0 0.0
          %2011 = vmatpush2.msra.mxu0 0.0
          %2012 = vmatprep.mubr.f32.mxu0 0.0
          %2013 = vmatmul.mubr.f32.gmra.mxu0 %v1941
          %v2014 = vpop.f32.mrf.mxu0
          %v2015 = vadd.f32 0.0, %v2014
          %v2016 = vpop.f32.mrf.mxu0
          %v2017 = vadd.f32 0.0, %v2016
          %2018 = vdwg.mxu0
          %2019 = vmatprep.subr.mxu0 %v1939
          %2020 = vmatpush1.msra.mxu0 %v1938
          %2021 = vmatprep.subr.mxu0 %v1935
          %2022 = vmatpush1.msra.mxu0 %v1934
          %2023 = vmatprep.subr.mxu0 %v1931
          %2024 = vmatpush1.msra.mxu0 %v1930
          %2025 = vmatprep.subr.mxu0 %v1927
          %2026 = vmatpush1.msra.mxu0 %v1926
          %2027 = vmatprep.subr.mxu0 %v1923
          %2028 = vmatpush1.msra.mxu0 %v1922
          %2029 = vmatprep.subr.mxu0 %v1919
          %2030 = vmatpush1.msra.mxu0 %v1918
          %2031 = vmatprep.subr.mxu0 %v1915
          %2032 = vmatpush1.msra.mxu0 %v1914
          %2033 = vmatprep.subr.mxu0 %v1911
          %2034 = vmatpush1.msra.mxu0 %v1910
          %2035 = vmatprep.subr.mxu0 %v1907
          %2036 = vmatpush1.msra.mxu0 %v1906
          %2037 = vmatprep.subr.mxu0 %v1903
          %2038 = vmatpush1.msra.mxu0 %v1902
          %2039 = vmatprep.subr.mxu0 %v1899
          %2040 = vmatpush1.msra.mxu0 %v1898
          %2041 = vmatprep.subr.mxu0 %v1895
          %2042 = vmatpush1.msra.mxu0 %v1894
          %2043 = vmatprep.subr.mxu0 %v1891
          %2044 = vmatpush1.msra.mxu0 %v1890
          %2045 = vmatprep.subr.mxu0 %v1887
          %2046 = vmatpush1.msra.mxu0 %v1886
          %2047 = vmatprep.subr.mxu0 %v1883
          %2048 = vmatpush1.msra.mxu0 %v1882
          %2049 = vmatprep.subr.mxu0 %v1879
          %2050 = vmatpush1.msra.mxu0 %v1878
          %2051 = vmatprep.subr.mxu0 0.0
          %2052 = vmatpush2.msra.mxu0 0.0
          %2053 = vmatprep.subr.mxu0 0.0
          %2054 = vmatpush2.msra.mxu0 0.0
          %2055 = vmatprep.subr.mxu0 0.0
          %2056 = vmatpush2.msra.mxu0 0.0
          %2057 = vmatprep.subr.mxu0 0.0
          %2058 = vmatpush2.msra.mxu0 0.0
          %2059 = vmatprep.subr.mxu0 0.0
          %2060 = vmatpush2.msra.mxu0 0.0
          %2061 = vmatprep.subr.mxu0 0.0
          %2062 = vmatpush2.msra.mxu0 0.0
          %2063 = vmatprep.subr.mxu0 0.0
          %2064 = vmatpush2.msra.mxu0 0.0
          %2065 = vmatprep.subr.mxu0 0.0
          %2066 = vmatpush2.msra.mxu0 0.0
          %2067 = vmatprep.subr.mxu0 0.0
          %2068 = vmatpush2.msra.mxu0 0.0
          %2069 = vmatprep.subr.mxu0 0.0
          %2070 = vmatpush2.msra.mxu0 0.0
          %2071 = vmatprep.subr.mxu0 0.0
          %2072 = vmatpush2.msra.mxu0 0.0
          %2073 = vmatprep.subr.mxu0 0.0
          %2074 = vmatpush2.msra.mxu0 0.0
          %2075 = vmatprep.subr.mxu0 0.0
          %2076 = vmatpush2.msra.mxu0 0.0
          %2077 = vmatprep.subr.mxu0 0.0
          %2078 = vmatpush2.msra.mxu0 0.0
          %2079 = vmatprep.subr.mxu0 0.0
          %2080 = vmatpush2.msra.mxu0 0.0
          %2081 = vmatprep.subr.mxu0 0.0
          %2082 = vmatpush2.msra.mxu0 0.0
          %2083 = vmatprep.mubr.f32.mxu0 0.0
          %2084 = vmatmul.mubr.f32.gmra.mxu0 %v1941
          %v2085 = vpop.f32.mrf.mxu0
          %v2086 = vadd.f32 0.0, %v2085
          %v2087 = vpop.f32.mrf.mxu0
          %v2088 = vadd.f32 0.0, %v2087
          %2089 = vdwg.mxu0
          %v2090 = vadd.f32 %v1944, %v2015
          %v2091 = vadd.f32 %v1945, %v2017
          %v2092 = vadd.f32 %v1946, %v2086
          %v2093 = vadd.f32 %v1947, %v2088
          %v2094 = vxor.u32 %v2090, 2147483648
          %v2095 = vmul.f32 %v2094, 1.442695
          %v2096 = vpow.pop %v2095
          %v2097 = vadd.f32 %v2096, 1.0
          %v2098 = vrcp.pop %v2097
          %v2099 = vmul.f32 1.0, %v2098
          %v2100 = vxor.u32 %v2091, 2147483648
          %v2101 = vmul.f32 %v2100, 1.442695
          %v2102 = vpow.pop %v2101
          %v2103 = vadd.f32 %v2102, 1.0
          %v2104 = vrcp.pop %v2103
          %v2105 = vmul.f32 1.0, %v2104
          %v2106 = vtanh.pop %v2092
          %v2107 = vxor.u32 %v2093, 2147483648
          %v2108 = vmul.f32 %v2107, 1.442695
          %v2109 = vpow.pop %v2108
          %v2110 = vadd.f32 %v2109, 1.0
          %v2111 = vrcp.pop %v2110
          %v2112 = vmul.f32 1.0, %v2111
          %v2113 = vmul.f32 %v2105, %v1943
          %v2114 = vmul.f32 %v2099, %v2106
          %v2115 = vadd.f32 %v2113, %v2114
          %v2116 = vtanh.pop %v2115
          %v2117 = vmul.f32 %v2112, %v2116
          %v2118 = vld [vmem:[%s2] sm:$0xff]
          %vm2119 = vcmp.gt.s32.totalorder %v2118, %v998
          %v2120 = vsel %vm2119, 1, 0
          %2121 = vset.pattern.permute.xlu0 0
          %2122 = vperm.xlu0 %2121, %v2120
          %v2123 = vpop.permute.xlu0 %2122
          %vm2124 = vcmp.eq.s32.totalorder %v2123, 1
          %v2125 = vsel %vm2124, %v2117, %v1941
          %2126 = vst [vmem:[%s1940] sm:$0xff] %v2125
          %v2127 = vsel %vm2124, %v2115, %v1943
          %2128 = vst [vmem:[%s1942] sm:$0xff] %v2127
          %v2129 = vsel %vm2124, %v2117, 0.0
          %2130 = vst [vmem:[#allocation5] sm:$0xff] %v2129
          %v2131 = vld [vmem:[%s1940] sm:$0xff]
          %v2132 = vld [vmem:[%s1942] sm:$0xff]
          %v2133 = vld [vmem:[%s1013] sm:$0xff]
          %v2134 = vld [vmem:[%s1013 + $0x8] sm:$0xff]
          %v2135 = vld [vmem:[%s1013 + $0x10] sm:$0xff]
          %v2136 = vld [vmem:[%s1013 + $0x18] sm:$0xff]
          %2137 = vmatprep.subr.mxu0 %v1937
          %2138 = vmatpush1.msra.mxu0 %v1936
          %2139 = vmatprep.subr.mxu0 %v1933
          %2140 = vmatpush1.msra.mxu0 %v1932
          %2141 = vmatprep.subr.mxu0 %v1929
          %2142 = vmatpush1.msra.mxu0 %v1928
          %2143 = vmatprep.subr.mxu0 %v1925
          %2144 = vmatpush1.msra.mxu0 %v1924
          %2145 = vmatprep.subr.mxu0 %v1921
          %2146 = vmatpush1.msra.mxu0 %v1920
          %2147 = vmatprep.subr.mxu0 %v1917
          %2148 = vmatpush1.msra.mxu0 %v1916
          %2149 = vmatprep.subr.mxu0 %v1913
          %2150 = vmatpush1.msra.mxu0 %v1912
          %2151 = vmatprep.subr.mxu0 %v1909
          %2152 = vmatpush1.msra.mxu0 %v1908
          %2153 = vmatprep.subr.mxu0 %v1905
          %2154 = vmatpush1.msra.mxu0 %v1904
          %2155 = vmatprep.subr.mxu0 %v1901
          %2156 = vmatpush1.msra.mxu0 %v1900
          %2157 = vmatprep.subr.mxu0 %v1897
          %2158 = vmatpush1.msra.mxu0 %v1896
          %2159 = vmatprep.subr.mxu0 %v1893
          %2160 = vmatpush1.msra.mxu0 %v1892
          %2161 = vmatprep.subr.mxu0 %v1889
          %2162 = vmatpush1.msra.mxu0 %v1888
          %2163 = vmatprep.subr.mxu0 %v1885
          %2164 = vmatpush1.msra.mxu0 %v1884
          %2165 = vmatprep.subr.mxu0 %v1881
          %2166 = vmatpush1.msra.mxu0 %v1880
          %2167 = vmatprep.subr.mxu0 %v1877
          %2168 = vmatpush1.msra.mxu0 %v1876
          %2169 = vmatprep.subr.mxu0 0.0
          %2170 = vmatpush2.msra.mxu0 0.0
          %2171 = vmatprep.subr.mxu0 0.0
          %2172 = vmatpush2.msra.mxu0 0.0
          %2173 = vmatprep.subr.mxu0 0.0
          %2174 = vmatpush2.msra.mxu0 0.0
          %2175 = vmatprep.subr.mxu0 0.0
          %2176 = vmatpush2.msra.mxu0 0.0
          %2177 = vmatprep.subr.mxu0 0.0
          %2178 = vmatpush2.msra.mxu0 0.0
          %2179 = vmatprep.subr.mxu0 0.0
          %2180 = vmatpush2.msra.mxu0 0.0
          %2181 = vmatprep.subr.mxu0 0.0
          %2182 = vmatpush2.msra.mxu0 0.0
          %2183 = vmatprep.subr.mxu0 0.0
          %2184 = vmatpush2.msra.mxu0 0.0
          %2185 = vmatprep.subr.mxu0 0.0
          %2186 = vmatpush2.msra.mxu0 0.0
          %2187 = vmatprep.subr.mxu0 0.0
          %2188 = vmatpush2.msra.mxu0 0.0
          %2189 = vmatprep.subr.mxu0 0.0
          %2190 = vmatpush2.msra.mxu0 0.0
          %2191 = vmatprep.subr.mxu0 0.0
          %2192 = vmatpush2.msra.mxu0 0.0
          %2193 = vmatprep.subr.mxu0 0.0
          %2194 = vmatpush2.msra.mxu0 0.0
          %2195 = vmatprep.subr.mxu0 0.0
          %2196 = vmatpush2.msra.mxu0 0.0
          %2197 = vmatprep.subr.mxu0 0.0
          %2198 = vmatpush2.msra.mxu0 0.0
          %2199 = vmatprep.subr.mxu0 0.0
          %2200 = vmatpush2.msra.mxu0 0.0
          %2201 = vmatprep.mubr.f32.mxu0 0.0
          %2202 = vmatmul.mubr.f32.gmra.mxu0 %v2131
          %v2203 = vpop.f32.mrf.mxu0
          %v2204 = vadd.f32 0.0, %v2203
          %v2205 = vpop.f32.mrf.mxu0
          %v2206 = vadd.f32 0.0, %v2205
          %2207 = vdwg.mxu0
          %2208 = vmatprep.subr.mxu0 %v1939
          %2209 = vmatpush1.msra.mxu0 %v1938
          %2210 = vmatprep.subr.mxu0 %v1935
          %2211 = vmatpush1.msra.mxu0 %v1934
          %2212 = vmatprep.subr.mxu0 %v1931
          %2213 = vmatpush1.msra.mxu0 %v1930
          %2214 = vmatprep.subr.mxu0 %v1927
          %2215 = vmatpush1.msra.mxu0 %v1926
          %2216 = vmatprep.subr.mxu0 %v1923
          %2217 = vmatpush1.msra.mxu0 %v1922
          %2218 = vmatprep.subr.mxu0 %v1919
          %2219 = vmatpush1.msra.mxu0 %v1918
          %2220 = vmatprep.subr.mxu0 %v1915
          %2221 = vmatpush1.msra.mxu0 %v1914
          %2222 = vmatprep.subr.mxu0 %v1911
          %2223 = vmatpush1.msra.mxu0 %v1910
          %2224 = vmatprep.subr.mxu0 %v1907
          %2225 = vmatpush1.msra.mxu0 %v1906
          %2226 = vmatprep.subr.mxu0 %v1903
          %2227 = vmatpush1.msra.mxu0 %v1902
          %2228 = vmatprep.subr.mxu0 %v1899
          %2229 = vmatpush1.msra.mxu0 %v1898
          %2230 = vmatprep.subr.mxu0 %v1895
          %2231 = vmatpush1.msra.mxu0 %v1894
          %2232 = vmatprep.subr.mxu0 %v1891
          %2233 = vmatpush1.msra.mxu0 %v1890
          %2234 = vmatprep.subr.mxu0 %v1887
          %2235 = vmatpush1.msra.mxu0 %v1886
          %2236 = vmatprep.subr.mxu0 %v1883
          %2237 = vmatpush1.msra.mxu0 %v1882
          %2238 = vmatprep.subr.mxu0 %v1879
          %2239 = vmatpush1.msra.mxu0 %v1878
          %2240 = vmatprep.subr.mxu0 0.0
          %2241 = vmatpush2.msra.mxu0 0.0
          %2242 = vmatprep.subr.mxu0 0.0
          %2243 = vmatpush2.msra.mxu0 0.0
          %2244 = vmatprep.subr.mxu0 0.0
          %2245 = vmatpush2.msra.mxu0 0.0
          %2246 = vmatprep.subr.mxu0 0.0
          %2247 = vmatpush2.msra.mxu0 0.0
          %2248 = vmatprep.subr.mxu0 0.0
          %2249 = vmatpush2.msra.mxu0 0.0
          %2250 = vmatprep.subr.mxu0 0.0
          %2251 = vmatpush2.msra.mxu0 0.0
          %2252 = vmatprep.subr.mxu0 0.0
          %2253 = vmatpush2.msra.mxu0 0.0
          %2254 = vmatprep.subr.mxu0 0.0
          %2255 = vmatpush2.msra.mxu0 0.0
          %2256 = vmatprep.subr.mxu0 0.0
          %2257 = vmatpush2.msra.mxu0 0.0
          %2258 = vmatprep.subr.mxu0 0.0
          %2259 = vmatpush2.msra.mxu0 0.0
          %2260 = vmatprep.subr.mxu0 0.0
          %2261 = vmatpush2.msra.mxu0 0.0
          %2262 = vmatprep.subr.mxu0 0.0
          %2263 = vmatpush2.msra.mxu0 0.0
          %2264 = vmatprep.subr.mxu0 0.0
          %2265 = vmatpush2.msra.mxu0 0.0
          %2266 = vmatprep.subr.mxu0 0.0
          %2267 = vmatpush2.msra.mxu0 0.0
          %2268 = vmatprep.subr.mxu0 0.0
          %2269 = vmatpush2.msra.mxu0 0.0
          %2270 = vmatprep.subr.mxu0 0.0
          %2271 = vmatpush2.msra.mxu0 0.0
          %2272 = vmatprep.mubr.f32.mxu0 0.0
          %2273 = vmatmul.mubr.f32.gmra.mxu0 %v2131
          %v2274 = vpop.f32.mrf.mxu0
          %v2275 = vadd.f32 0.0, %v2274
          %v2276 = vpop.f32.mrf.mxu0
          %v2277 = vadd.f32 0.0, %v2276
          %2278 = vdwg.mxu0
          %v2279 = vadd.f32 %v2133, %v2204
          %v2280 = vadd.f32 %v2134, %v2206
          %v2281 = vadd.f32 %v2135, %v2275
          %v2282 = vadd.f32 %v2136, %v2277
          %v2283 = vxor.u32 %v2279, 2147483648
          %v2284 = vmul.f32 %v2283, 1.442695
          %v2285 = vpow.pop %v2284
          %v2286 = vadd.f32 %v2285, 1.0
          %v2287 = vrcp.pop %v2286
          %v2288 = vmul.f32 1.0, %v2287
          %v2289 = vxor.u32 %v2280, 2147483648
          %v2290 = vmul.f32 %v2289, 1.442695
          %v2291 = vpow.pop %v2290
          %v2292 = vadd.f32 %v2291, 1.0
          %v2293 = vrcp.pop %v2292
          %v2294 = vmul.f32 1.0, %v2293
          %v2295 = vtanh.pop %v2281
          %v2296 = vxor.u32 %v2282, 2147483648
          %v2297 = vmul.f32 %v2296, 1.442695
          %v2298 = vpow.pop %v2297
          %v2299 = vadd.f32 %v2298, 1.0
          %v2300 = vrcp.pop %v2299
          %v2301 = vmul.f32 1.0, %v2300
          %v2302 = vmul.f32 %v2294, %v2132
          %v2303 = vmul.f32 %v2288, %v2295
          %v2304 = vadd.f32 %v2302, %v2303
          %v2305 = vtanh.pop %v2304
          %v2306 = vmul.f32 %v2301, %v2305
          %v2307 = vld [vmem:[%s2] sm:$0xff]
          %vm2308 = vcmp.gt.s32.totalorder %v2307, %v1190
          %v2309 = vsel %vm2308, 1, 0
          %2310 = vset.pattern.permute.xlu0 0
          %2311 = vperm.xlu0 %2310, %v2309
          %v2312 = vpop.permute.xlu0 %2311
          %vm2313 = vcmp.eq.s32.totalorder %v2312, 1
          %v2314 = vsel %vm2313, %v2306, %v2131
          %2315 = vst [vmem:[%s1940] sm:$0xff] %v2314
          %v2316 = vsel %vm2313, %v2304, %v2132
          %2317 = vst [vmem:[%s1942] sm:$0xff] %v2316
          %v2318 = vsel %vm2313, %v2306, 0.0
          %2319 = vst [vmem:[%s1202] sm:$0xff] %v2318
          %v2320 = vld [vmem:[%s1940] sm:$0xff]
          %v2321 = vld [vmem:[%s1942] sm:$0xff]
          %v2322 = vld [vmem:[%s1206] sm:$0xff]
          %v2323 = vld [vmem:[%s1206 + $0x8] sm:$0xff]
          %v2324 = vld [vmem:[%s1206 + $0x10] sm:$0xff]
          %v2325 = vld [vmem:[%s1206 + $0x18] sm:$0xff]
          %2326 = vmatprep.subr.mxu0 %v1937
          %2327 = vmatpush1.msra.mxu0 %v1936
          %2328 = vmatprep.subr.mxu0 %v1933
          %2329 = vmatpush1.msra.mxu0 %v1932
          %2330 = vmatprep.subr.mxu0 %v1929
          %2331 = vmatpush1.msra.mxu0 %v1928
          %2332 = vmatprep.subr.mxu0 %v1925
          %2333 = vmatpush1.msra.mxu0 %v1924
          %2334 = vmatprep.subr.mxu0 %v1921
          %2335 = vmatpush1.msra.mxu0 %v1920
          %2336 = vmatprep.subr.mxu0 %v1917
          %2337 = vmatpush1.msra.mxu0 %v1916
          %2338 = vmatprep.subr.mxu0 %v1913
          %2339 = vmatpush1.msra.mxu0 %v1912
          %2340 = vmatprep.subr.mxu0 %v1909
          %2341 = vmatpush1.msra.mxu0 %v1908
          %2342 = vmatprep.subr.mxu0 %v1905
          %2343 = vmatpush1.msra.mxu0 %v1904
          %2344 = vmatprep.subr.mxu0 %v1901
          %2345 = vmatpush1.msra.mxu0 %v1900
          %2346 = vmatprep.subr.mxu0 %v1897
          %2347 = vmatpush1.msra.mxu0 %v1896
          %2348 = vmatprep.subr.mxu0 %v1893
          %2349 = vmatpush1.msra.mxu0 %v1892
          %2350 = vmatprep.subr.mxu0 %v1889
          %2351 = vmatpush1.msra.mxu0 %v1888
          %2352 = vmatprep.subr.mxu0 %v1885
          %2353 = vmatpush1.msra.mxu0 %v1884
          %2354 = vmatprep.subr.mxu0 %v1881
          %2355 = vmatpush1.msra.mxu0 %v1880
          %2356 = vmatprep.subr.mxu0 %v1877
          %2357 = vmatpush1.msra.mxu0 %v1876
          %2358 = vmatprep.subr.mxu0 0.0
          %2359 = vmatpush2.msra.mxu0 0.0
          %2360 = vmatprep.subr.mxu0 0.0
          %2361 = vmatpush2.msra.mxu0 0.0
          %2362 = vmatprep.subr.mxu0 0.0
          %2363 = vmatpush2.msra.mxu0 0.0
          %2364 = vmatprep.subr.mxu0 0.0
          %2365 = vmatpush2.msra.mxu0 0.0
          %2366 = vmatprep.subr.mxu0 0.0
          %2367 = vmatpush2.msra.mxu0 0.0
          %2368 = vmatprep.subr.mxu0 0.0
          %2369 = vmatpush2.msra.mxu0 0.0
          %2370 = vmatprep.subr.mxu0 0.0
          %2371 = vmatpush2.msra.mxu0 0.0
          %2372 = vmatprep.subr.mxu0 0.0
          %2373 = vmatpush2.msra.mxu0 0.0
          %2374 = vmatprep.subr.mxu0 0.0
          %2375 = vmatpush2.msra.mxu0 0.0
          %2376 = vmatprep.subr.mxu0 0.0
          %2377 = vmatpush2.msra.mxu0 0.0
          %2378 = vmatprep.subr.mxu0 0.0
          %2379 = vmatpush2.msra.mxu0 0.0
          %2380 = vmatprep.subr.mxu0 0.0
          %2381 = vmatpush2.msra.mxu0 0.0
          %2382 = vmatprep.subr.mxu0 0.0
          %2383 = vmatpush2.msra.mxu0 0.0
          %2384 = vmatprep.subr.mxu0 0.0
          %2385 = vmatpush2.msra.mxu0 0.0
          %2386 = vmatprep.subr.mxu0 0.0
          %2387 = vmatpush2.msra.mxu0 0.0
          %2388 = vmatprep.subr.mxu0 0.0
          %2389 = vmatpush2.msra.mxu0 0.0
          %2390 = vmatprep.mubr.f32.mxu0 0.0
          %2391 = vmatmul.mubr.f32.gmra.mxu0 %v2320
          %v2392 = vpop.f32.mrf.mxu0
          %v2393 = vadd.f32 0.0, %v2392
          %v2394 = vpop.f32.mrf.mxu0
          %v2395 = vadd.f32 0.0, %v2394
          %2396 = vdwg.mxu0
          %2397 = vmatprep.subr.mxu0 %v1939
          %2398 = vmatpush1.msra.mxu0 %v1938
          %2399 = vmatprep.subr.mxu0 %v1935
          %2400 = vmatpush1.msra.mxu0 %v1934
          %2401 = vmatprep.subr.mxu0 %v1931
          %2402 = vmatpush1.msra.mxu0 %v1930
          %2403 = vmatprep.subr.mxu0 %v1927
          %2404 = vmatpush1.msra.mxu0 %v1926
          %2405 = vmatprep.subr.mxu0 %v1923
          %2406 = vmatpush1.msra.mxu0 %v1922
          %2407 = vmatprep.subr.mxu0 %v1919
          %2408 = vmatpush1.msra.mxu0 %v1918
          %2409 = vmatprep.subr.mxu0 %v1915
          %2410 = vmatpush1.msra.mxu0 %v1914
          %2411 = vmatprep.subr.mxu0 %v1911
          %2412 = vmatpush1.msra.mxu0 %v1910
          %2413 = vmatprep.subr.mxu0 %v1907
          %2414 = vmatpush1.msra.mxu0 %v1906
          %2415 = vmatprep.subr.mxu0 %v1903
          %2416 = vmatpush1.msra.mxu0 %v1902
          %2417 = vmatprep.subr.mxu0 %v1899
          %2418 = vmatpush1.msra.mxu0 %v1898
          %2419 = vmatprep.subr.mxu0 %v1895
          %2420 = vmatpush1.msra.mxu0 %v1894
          %2421 = vmatprep.subr.mxu0 %v1891
          %2422 = vmatpush1.msra.mxu0 %v1890
          %2423 = vmatprep.subr.mxu0 %v1887
          %2424 = vmatpush1.msra.mxu0 %v1886
          %2425 = vmatprep.subr.mxu0 %v1883
          %2426 = vmatpush1.msra.mxu0 %v1882
          %2427 = vmatprep.subr.mxu0 %v1879
          %2428 = vmatpush1.msra.mxu0 %v1878
          %2429 = vmatprep.subr.mxu0 0.0
          %2430 = vmatpush2.msra.mxu0 0.0
          %2431 = vmatprep.subr.mxu0 0.0
          %2432 = vmatpush2.msra.mxu0 0.0
          %2433 = vmatprep.subr.mxu0 0.0
          %2434 = vmatpush2.msra.mxu0 0.0
          %2435 = vmatprep.subr.mxu0 0.0
          %2436 = vmatpush2.msra.mxu0 0.0
          %2437 = vmatprep.subr.mxu0 0.0
          %2438 = vmatpush2.msra.mxu0 0.0
          %2439 = vmatprep.subr.mxu0 0.0
          %2440 = vmatpush2.msra.mxu0 0.0
          %2441 = vmatprep.subr.mxu0 0.0
          %2442 = vmatpush2.msra.mxu0 0.0
          %2443 = vmatprep.subr.mxu0 0.0
          %2444 = vmatpush2.msra.mxu0 0.0
          %2445 = vmatprep.subr.mxu0 0.0
          %2446 = vmatpush2.msra.mxu0 0.0
          %2447 = vmatprep.subr.mxu0 0.0
          %2448 = vmatpush2.msra.mxu0 0.0
          %2449 = vmatprep.subr.mxu0 0.0
          %2450 = vmatpush2.msra.mxu0 0.0
          %2451 = vmatprep.subr.mxu0 0.0
          %2452 = vmatpush2.msra.mxu0 0.0
          %2453 = vmatprep.subr.mxu0 0.0
          %2454 = vmatpush2.msra.mxu0 0.0
          %2455 = vmatprep.subr.mxu0 0.0
          %2456 = vmatpush2.msra.mxu0 0.0
          %2457 = vmatprep.subr.mxu0 0.0
          %2458 = vmatpush2.msra.mxu0 0.0
          %2459 = vmatprep.subr.mxu0 0.0
          %2460 = vmatpush2.msra.mxu0 0.0
          %2461 = vmatprep.mubr.f32.mxu0 0.0
          %2462 = vmatmul.mubr.f32.gmra.mxu0 %v2320
          %v2463 = vpop.f32.mrf.mxu0
          %v2464 = vadd.f32 0.0, %v2463
          %v2465 = vpop.f32.mrf.mxu0
          %v2466 = vadd.f32 0.0, %v2465
          %2467 = vdwg.mxu0
          %v2468 = vadd.f32 %v2322, %v2393
          %v2469 = vadd.f32 %v2323, %v2395
          %v2470 = vadd.f32 %v2324, %v2464
          %v2471 = vadd.f32 %v2325, %v2466
          %v2472 = vxor.u32 %v2468, 2147483648
          %v2473 = vmul.f32 %v2472, 1.442695
          %v2474 = vpow.pop %v2473
          %v2475 = vadd.f32 %v2474, 1.0
          %v2476 = vrcp.pop %v2475
          %v2477 = vmul.f32 1.0, %v2476
          %v2478 = vxor.u32 %v2469, 2147483648
          %v2479 = vmul.f32 %v2478, 1.442695
          %v2480 = vpow.pop %v2479
          %v2481 = vadd.f32 %v2480, 1.0
          %v2482 = vrcp.pop %v2481
          %v2483 = vmul.f32 1.0, %v2482
          %v2484 = vtanh.pop %v2470
          %v2485 = vxor.u32 %v2471, 2147483648
          %v2486 = vmul.f32 %v2485, 1.442695
          %v2487 = vpow.pop %v2486
          %v2488 = vadd.f32 %v2487, 1.0
          %v2489 = vrcp.pop %v2488
          %v2490 = vmul.f32 1.0, %v2489
          %v2491 = vmul.f32 %v2483, %v2321
          %v2492 = vmul.f32 %v2477, %v2484
          %v2493 = vadd.f32 %v2491, %v2492
          %v2494 = vtanh.pop %v2493
          %v2495 = vmul.f32 %v2490, %v2494
          %v2496 = vld [vmem:[%s2] sm:$0xff]
          %vm2497 = vcmp.gt.s32.totalorder %v2496, %v1383
          %v2498 = vsel %vm2497, 1, 0
          %2499 = vset.pattern.permute.xlu0 0
          %2500 = vperm.xlu0 %2499, %v2498
          %v2501 = vpop.permute.xlu0 %2500
          %vm2502 = vcmp.eq.s32.totalorder %v2501, 1
          %v2503 = vsel %vm2502, %v2495, %v2320
          %2504 = vst [vmem:[%s1940] sm:$0xff] %v2503
          %v2505 = vsel %vm2502, %v2493, %v2321
          %2506 = vst [vmem:[%s1942] sm:$0xff] %v2505
          %v2507 = vsel %vm2502, %v2495, 0.0
          %2508 = vst [vmem:[%s1395] sm:$0xff] %v2507
          %v2509 = vld [vmem:[%s1940] sm:$0xff]
          %v2510 = vld [vmem:[%s1942] sm:$0xff]
          %v2511 = vld [vmem:[%s1399] sm:$0xff]
          %v2512 = vld [vmem:[%s1399 + $0x8] sm:$0xff]
          %v2513 = vld [vmem:[%s1399 + $0x10] sm:$0xff]
          %v2514 = vld [vmem:[%s1399 + $0x18] sm:$0xff]
          %2515 = vmatprep.subr.mxu0 %v1937
          %2516 = vmatpush1.msra.mxu0 %v1936
          %2517 = vmatprep.subr.mxu0 %v1933
          %2518 = vmatpush1.msra.mxu0 %v1932
          %2519 = vmatprep.subr.mxu0 %v1929
          %2520 = vmatpush1.msra.mxu0 %v1928
          %2521 = vmatprep.subr.mxu0 %v1925
          %2522 = vmatpush1.msra.mxu0 %v1924
          %2523 = vmatprep.subr.mxu0 %v1921
          %2524 = vmatpush1.msra.mxu0 %v1920
          %2525 = vmatprep.subr.mxu0 %v1917
          %2526 = vmatpush1.msra.mxu0 %v1916
          %2527 = vmatprep.subr.mxu0 %v1913
          %2528 = vmatpush1.msra.mxu0 %v1912
          %2529 = vmatprep.subr.mxu0 %v1909
          %2530 = vmatpush1.msra.mxu0 %v1908
          %2531 = vmatprep.subr.mxu0 %v1905
          %2532 = vmatpush1.msra.mxu0 %v1904
          %2533 = vmatprep.subr.mxu0 %v1901
          %2534 = vmatpush1.msra.mxu0 %v1900
          %2535 = vmatprep.subr.mxu0 %v1897
          %2536 = vmatpush1.msra.mxu0 %v1896
          %2537 = vmatprep.subr.mxu0 %v1893
          %2538 = vmatpush1.msra.mxu0 %v1892
          %2539 = vmatprep.subr.mxu0 %v1889
          %2540 = vmatpush1.msra.mxu0 %v1888
          %2541 = vmatprep.subr.mxu0 %v1885
          %2542 = vmatpush1.msra.mxu0 %v1884
          %2543 = vmatprep.subr.mxu0 %v1881
          %2544 = vmatpush1.msra.mxu0 %v1880
          %2545 = vmatprep.subr.mxu0 %v1877
          %2546 = vmatpush1.msra.mxu0 %v1876
          %2547 = vmatprep.subr.mxu0 0.0
          %2548 = vmatpush2.msra.mxu0 0.0
          %2549 = vmatprep.subr.mxu0 0.0
          %2550 = vmatpush2.msra.mxu0 0.0
          %2551 = vmatprep.subr.mxu0 0.0
          %2552 = vmatpush2.msra.mxu0 0.0
          %2553 = vmatprep.subr.mxu0 0.0
          %2554 = vmatpush2.msra.mxu0 0.0
          %2555 = vmatprep.subr.mxu0 0.0
          %2556 = vmatpush2.msra.mxu0 0.0
          %2557 = vmatprep.subr.mxu0 0.0
          %2558 = vmatpush2.msra.mxu0 0.0
          %2559 = vmatprep.subr.mxu0 0.0
          %2560 = vmatpush2.msra.mxu0 0.0
          %2561 = vmatprep.subr.mxu0 0.0
          %2562 = vmatpush2.msra.mxu0 0.0
          %2563 = vmatprep.subr.mxu0 0.0
          %2564 = vmatpush2.msra.mxu0 0.0
          %2565 = vmatprep.subr.mxu0 0.0
          %2566 = vmatpush2.msra.mxu0 0.0
          %2567 = vmatprep.subr.mxu0 0.0
          %2568 = vmatpush2.msra.mxu0 0.0
          %2569 = vmatprep.subr.mxu0 0.0
          %2570 = vmatpush2.msra.mxu0 0.0
          %2571 = vmatprep.subr.mxu0 0.0
          %2572 = vmatpush2.msra.mxu0 0.0
          %2573 = vmatprep.subr.mxu0 0.0
          %2574 = vmatpush2.msra.mxu0 0.0
          %2575 = vmatprep.subr.mxu0 0.0
          %2576 = vmatpush2.msra.mxu0 0.0
          %2577 = vmatprep.subr.mxu0 0.0
          %2578 = vmatpush2.msra.mxu0 0.0
          %2579 = vmatprep.mubr.f32.mxu0 0.0
          %2580 = vmatmul.mubr.f32.gmra.mxu0 %v2509
          %v2581 = vpop.f32.mrf.mxu0
          %v2582 = vadd.f32 0.0, %v2581
          %v2583 = vpop.f32.mrf.mxu0
          %v2584 = vadd.f32 0.0, %v2583
          %2585 = vdwg.mxu0
          %2586 = vmatprep.subr.mxu0 %v1939
          %2587 = vmatpush1.msra.mxu0 %v1938
          %2588 = vmatprep.subr.mxu0 %v1935
          %2589 = vmatpush1.msra.mxu0 %v1934
          %2590 = vmatprep.subr.mxu0 %v1931
          %2591 = vmatpush1.msra.mxu0 %v1930
          %2592 = vmatprep.subr.mxu0 %v1927
          %2593 = vmatpush1.msra.mxu0 %v1926
          %2594 = vmatprep.subr.mxu0 %v1923
          %2595 = vmatpush1.msra.mxu0 %v1922
          %2596 = vmatprep.subr.mxu0 %v1919
          %2597 = vmatpush1.msra.mxu0 %v1918
          %2598 = vmatprep.subr.mxu0 %v1915
          %2599 = vmatpush1.msra.mxu0 %v1914
          %2600 = vmatprep.subr.mxu0 %v1911
          %2601 = vmatpush1.msra.mxu0 %v1910
          %2602 = vmatprep.subr.mxu0 %v1907
          %2603 = vmatpush1.msra.mxu0 %v1906
          %2604 = vmatprep.subr.mxu0 %v1903
          %2605 = vmatpush1.msra.mxu0 %v1902
          %2606 = vmatprep.subr.mxu0 %v1899
          %2607 = vmatpush1.msra.mxu0 %v1898
          %2608 = vmatprep.subr.mxu0 %v1895
          %2609 = vmatpush1.msra.mxu0 %v1894
          %2610 = vmatprep.subr.mxu0 %v1891
          %2611 = vmatpush1.msra.mxu0 %v1890
          %2612 = vmatprep.subr.mxu0 %v1887
          %2613 = vmatpush1.msra.mxu0 %v1886
          %2614 = vmatprep.subr.mxu0 %v1883
          %2615 = vmatpush1.msra.mxu0 %v1882
          %2616 = vmatprep.subr.mxu0 %v1879
          %2617 = vmatpush1.msra.mxu0 %v1878
          %2618 = vmatprep.subr.mxu0 0.0
          %2619 = vmatpush2.msra.mxu0 0.0
          %2620 = vmatprep.subr.mxu0 0.0
          %2621 = vmatpush2.msra.mxu0 0.0
          %2622 = vmatprep.subr.mxu0 0.0
          %2623 = vmatpush2.msra.mxu0 0.0
          %2624 = vmatprep.subr.mxu0 0.0
          %2625 = vmatpush2.msra.mxu0 0.0
          %2626 = vmatprep.subr.mxu0 0.0
          %2627 = vmatpush2.msra.mxu0 0.0
          %2628 = vmatprep.subr.mxu0 0.0
          %2629 = vmatpush2.msra.mxu0 0.0
          %2630 = vmatprep.subr.mxu0 0.0
          %2631 = vmatpush2.msra.mxu0 0.0
          %2632 = vmatprep.subr.mxu0 0.0
          %2633 = vmatpush2.msra.mxu0 0.0
          %2634 = vmatprep.subr.mxu0 0.0
          %2635 = vmatpush2.msra.mxu0 0.0
          %2636 = vmatprep.subr.mxu0 0.0
          %2637 = vmatpush2.msra.mxu0 0.0
          %2638 = vmatprep.subr.mxu0 0.0
          %2639 = vmatpush2.msra.mxu0 0.0
          %2640 = vmatprep.subr.mxu0 0.0
          %2641 = vmatpush2.msra.mxu0 0.0
          %2642 = vmatprep.subr.mxu0 0.0
          %2643 = vmatpush2.msra.mxu0 0.0
          %2644 = vmatprep.subr.mxu0 0.0
          %2645 = vmatpush2.msra.mxu0 0.0
          %2646 = vmatprep.subr.mxu0 0.0
          %2647 = vmatpush2.msra.mxu0 0.0
          %2648 = vmatprep.subr.mxu0 0.0
          %2649 = vmatpush2.msra.mxu0 0.0
          %2650 = vmatprep.mubr.f32.mxu0 0.0
          %2651 = vmatmul.mubr.f32.gmra.mxu0 %v2509
          %v2652 = vpop.f32.mrf.mxu0
          %v2653 = vadd.f32 0.0, %v2652
          %v2654 = vpop.f32.mrf.mxu0
          %v2655 = vadd.f32 0.0, %v2654
          %2656 = vdwg.mxu0
          %v2657 = vadd.f32 %v2511, %v2582
          %v2658 = vadd.f32 %v2512, %v2584
          %v2659 = vadd.f32 %v2513, %v2653
          %v2660 = vadd.f32 %v2514, %v2655
          %v2661 = vxor.u32 %v2657, 2147483648
          %v2662 = vmul.f32 %v2661, 1.442695
          %v2663 = vpow.pop %v2662
          %v2664 = vadd.f32 %v2663, 1.0
          %v2665 = vrcp.pop %v2664
          %v2666 = vmul.f32 1.0, %v2665
          %v2667 = vxor.u32 %v2658, 2147483648
          %v2668 = vmul.f32 %v2667, 1.442695
          %v2669 = vpow.pop %v2668
          %v2670 = vadd.f32 %v2669, 1.0
          %v2671 = vrcp.pop %v2670
          %v2672 = vmul.f32 1.0, %v2671
          %v2673 = vtanh.pop %v2659
          %v2674 = vxor.u32 %v2660, 2147483648
          %v2675 = vmul.f32 %v2674, 1.442695
          %v2676 = vpow.pop %v2675
          %v2677 = vadd.f32 %v2676, 1.0
          %v2678 = vrcp.pop %v2677
          %v2679 = vmul.f32 1.0, %v2678
          %v2680 = vmul.f32 %v2672, %v2510
          %v2681 = vmul.f32 %v2666, %v2673
          %v2682 = vadd.f32 %v2680, %v2681
          %v2683 = vtanh.pop %v2682
          %v2684 = vmul.f32 %v2679, %v2683
          %v2685 = vld [vmem:[%s2] sm:$0xff]
          %vm2686 = vcmp.gt.s32.totalorder %v2685, %v1576
          %v2687 = vsel %vm2686, 1, 0
          %2688 = vset.pattern.permute.xlu0 0
          %2689 = vperm.xlu0 %2688, %v2687
          %v2690 = vpop.permute.xlu0 %2689
          %vm2691 = vcmp.eq.s32.totalorder %v2690, 1
          %v2692 = vsel %vm2691, %v2684, %v2509
          %2693 = vst [vmem:[%s1940] sm:$0xff] %v2692
          %v2694 = vsel %vm2691, %v2682, %v2510
          %2695 = vst [vmem:[%s1942] sm:$0xff] %v2694
          %v2696 = vsel %vm2691, %v2684, 0.0
          %2697 = vst [vmem:[%s1588] sm:$0xff] %v2696
          %v2698 = vld [vmem:[#allocation5] sm:$0xff]
          %v2699 = vld [vmem:[#allocation5 + $0x8] sm:$0xff]
          %v2700 = vld [vmem:[#allocation5 + $0x10] sm:$0xff]
          %v2701 = vld [vmem:[#allocation5 + $0x18] sm:$0xff]
          %s2702 = scalar_lea.vmem [#allocation13], 512
          %v2703 = vld [vmem:[%s2702] sm:$0xff]
          %v2704 = vld [vmem:[%s2702 + $0x8] sm:$0xff]
          %v2705 = vld [vmem:[%s2702 + $0x10] sm:$0xff]
          %v2706 = vld [vmem:[%s2702 + $0x18] sm:$0xff]
          %v2707 = vld [vmem:[%s2702 + $0x20] sm:$0xff]
          %v2708 = vld [vmem:[%s2702 + $0x28] sm:$0xff]
          %v2709 = vld [vmem:[%s2702 + $0x30] sm:$0xff]
          %v2710 = vld [vmem:[%s2702 + $0x38] sm:$0xff]
          %v2711 = vld [vmem:[%s2702 + $0x40] sm:$0xff]
          %v2712 = vld [vmem:[%s2702 + $0x48] sm:$0xff]
          %v2713 = vld [vmem:[%s2702 + $0x50] sm:$0xff]
          %v2714 = vld [vmem:[%s2702 + $0x58] sm:$0xff]
          %v2715 = vld [vmem:[%s2702 + $0x60] sm:$0xff]
          %v2716 = vld [vmem:[%s2702 + $0x68] sm:$0xff]
          %v2717 = vld [vmem:[%s2702 + $0x70] sm:$0xff]
          %v2718 = vld [vmem:[%s2702 + $0x78] sm:$0xff]
          %v2719 = vld [vmem:[%s2702 + $0x80] sm:$0xff]
          %v2720 = vld [vmem:[%s2702 + $0x88] sm:$0xff]
          %v2721 = vld [vmem:[%s2702 + $0x90] sm:$0xff]
          %v2722 = vld [vmem:[%s2702 + $0x98] sm:$0xff]
          %v2723 = vld [vmem:[%s2702 + $0xa0] sm:$0xff]
          %v2724 = vld [vmem:[%s2702 + $0xa8] sm:$0xff]
          %v2725 = vld [vmem:[%s2702 + $0xb0] sm:$0xff]
          %v2726 = vld [vmem:[%s2702 + $0xb8] sm:$0xff]
          %v2727 = vld [vmem:[%s2702 + $0xc0] sm:$0xff]
          %v2728 = vld [vmem:[%s2702 + $0xc8] sm:$0xff]
          %v2729 = vld [vmem:[%s2702 + $0xd0] sm:$0xff]
          %v2730 = vld [vmem:[%s2702 + $0xd8] sm:$0xff]
          %v2731 = vld [vmem:[%s2702 + $0xe0] sm:$0xff]
          %v2732 = vld [vmem:[%s2702 + $0xe8] sm:$0xff]
          %v2733 = vld [vmem:[%s2702 + $0xf0] sm:$0xff]
          %v2734 = vld [vmem:[%s2702 + $0xf8] sm:$0xff]
          %v2735 = vld [vmem:[%s2702 + $0x100] sm:$0xff]
          %v2736 = vld [vmem:[%s2702 + $0x108] sm:$0xff]
          %v2737 = vld [vmem:[%s2702 + $0x110] sm:$0xff]
          %v2738 = vld [vmem:[%s2702 + $0x118] sm:$0xff]
          %v2739 = vld [vmem:[%s2702 + $0x120] sm:$0xff]
          %v2740 = vld [vmem:[%s2702 + $0x128] sm:$0xff]
          %v2741 = vld [vmem:[%s2702 + $0x130] sm:$0xff]
          %v2742 = vld [vmem:[%s2702 + $0x138] sm:$0xff]
          %v2743 = vld [vmem:[%s2702 + $0x140] sm:$0xff]
          %v2744 = vld [vmem:[%s2702 + $0x148] sm:$0xff]
          %v2745 = vld [vmem:[%s2702 + $0x150] sm:$0xff]
          %v2746 = vld [vmem:[%s2702 + $0x158] sm:$0xff]
          %v2747 = vld [vmem:[%s2702 + $0x160] sm:$0xff]
          %v2748 = vld [vmem:[%s2702 + $0x168] sm:$0xff]
          %v2749 = vld [vmem:[%s2702 + $0x170] sm:$0xff]
          %v2750 = vld [vmem:[%s2702 + $0x178] sm:$0xff]
          %v2751 = vld [vmem:[%s2702 + $0x180] sm:$0xff]
          %v2752 = vld [vmem:[%s2702 + $0x188] sm:$0xff]
          %v2753 = vld [vmem:[%s2702 + $0x190] sm:$0xff]
          %v2754 = vld [vmem:[%s2702 + $0x198] sm:$0xff]
          %v2755 = vld [vmem:[%s2702 + $0x1a0] sm:$0xff]
          %v2756 = vld [vmem:[%s2702 + $0x1a8] sm:$0xff]
          %v2757 = vld [vmem:[%s2702 + $0x1b0] sm:$0xff]
          %v2758 = vld [vmem:[%s2702 + $0x1b8] sm:$0xff]
          %v2759 = vld [vmem:[%s2702 + $0x1c0] sm:$0xff]
          %v2760 = vld [vmem:[%s2702 + $0x1c8] sm:$0xff]
          %v2761 = vld [vmem:[%s2702 + $0x1d0] sm:$0xff]
          %v2762 = vld [vmem:[%s2702 + $0x1d8] sm:$0xff]
          %v2763 = vld [vmem:[%s2702 + $0x1e0] sm:$0xff]
          %v2764 = vld [vmem:[%s2702 + $0x1e8] sm:$0xff]
          %v2765 = vld [vmem:[%s2702 + $0x1f0] sm:$0xff]
          %v2766 = vld [vmem:[%s2702 + $0x1f8] sm:$0xff]
          %s2767 = scalar_lea.vmem %s6, 8
          %v2768 = vld [vmem:[%s2767] sm:$0xf]
          %v2770 = vlaneseq
          %v2771 = vshrl.u32 %v2770, 7
          %v2772 = vsub.s32 0, %v2771
          %v2773 = vrot.slane %v2768, %v2772
          %v2774 = vlaneseq
          %v2775 = vshrl.u32 %v2774, 7
          %v2776 = vsub.s32 1, %v2775
          %v2777 = vrot.slane %v2768, %v2776
          %v2778 = vlaneseq
          %v2779 = vshrl.u32 %v2778, 7
          %v2780 = vsub.s32 2, %v2779
          %v2781 = vrot.slane %v2768, %v2780
          %v2782 = vlaneseq
          %v2783 = vshrl.u32 %v2782, 7
          %v2784 = vsub.s32 3, %v2783
          %v2785 = vrot.slane %v2768, %v2784
          %2790 = vmatprep.subr.mxu0 %v2764
          %2791 = vmatpush1.msra.mxu0 %v2763
          %2792 = vmatprep.subr.mxu0 %v2760
          %2793 = vmatpush1.msra.mxu0 %v2759
          %2794 = vmatprep.subr.mxu0 %v2756
          %2795 = vmatpush1.msra.mxu0 %v2755
          %2796 = vmatprep.subr.mxu0 %v2752
          %2797 = vmatpush1.msra.mxu0 %v2751
          %2798 = vmatprep.subr.mxu0 %v2748
          %2799 = vmatpush1.msra.mxu0 %v2747
          %2800 = vmatprep.subr.mxu0 %v2744
          %2801 = vmatpush1.msra.mxu0 %v2743
          %2802 = vmatprep.subr.mxu0 %v2740
          %2803 = vmatpush1.msra.mxu0 %v2739
          %2804 = vmatprep.subr.mxu0 %v2736
          %2805 = vmatpush1.msra.mxu0 %v2735
          %2806 = vmatprep.subr.mxu0 %v2732
          %2807 = vmatpush1.msra.mxu0 %v2731
          %2808 = vmatprep.subr.mxu0 %v2728
          %2809 = vmatpush1.msra.mxu0 %v2727
          %2810 = vmatprep.subr.mxu0 %v2724
          %2811 = vmatpush1.msra.mxu0 %v2723
          %2812 = vmatprep.subr.mxu0 %v2720
          %2813 = vmatpush1.msra.mxu0 %v2719
          %2814 = vmatprep.subr.mxu0 %v2716
          %2815 = vmatpush1.msra.mxu0 %v2715
          %2816 = vmatprep.subr.mxu0 %v2712
          %2817 = vmatpush1.msra.mxu0 %v2711
          %2818 = vmatprep.subr.mxu0 %v2708
          %2819 = vmatpush1.msra.mxu0 %v2707
          %2820 = vmatprep.subr.mxu0 %v2704
          %2821 = vmatpush1.msra.mxu0 %v2703
          %2822 = vmatprep.subr.mxu0 0.0
          %2823 = vmatpush2.msra.mxu0 0.0
          %2824 = vmatprep.subr.mxu0 0.0
          %2825 = vmatpush2.msra.mxu0 0.0
          %2826 = vmatprep.subr.mxu0 0.0
          %2827 = vmatpush2.msra.mxu0 0.0
          %2828 = vmatprep.subr.mxu0 0.0
          %2829 = vmatpush2.msra.mxu0 0.0
          %2830 = vmatprep.subr.mxu0 0.0
          %2831 = vmatpush2.msra.mxu0 0.0
          %2832 = vmatprep.subr.mxu0 0.0
          %2833 = vmatpush2.msra.mxu0 0.0
          %2834 = vmatprep.subr.mxu0 0.0
          %2835 = vmatpush2.msra.mxu0 0.0
          %2836 = vmatprep.subr.mxu0 0.0
          %2837 = vmatpush2.msra.mxu0 0.0
          %2838 = vmatprep.subr.mxu0 0.0
          %2839 = vmatpush2.msra.mxu0 0.0
          %2840 = vmatprep.subr.mxu0 0.0
          %2841 = vmatpush2.msra.mxu0 0.0
          %2842 = vmatprep.subr.mxu0 0.0
          %2843 = vmatpush2.msra.mxu0 0.0
          %2844 = vmatprep.subr.mxu0 0.0
          %2845 = vmatpush2.msra.mxu0 0.0
          %2846 = vmatprep.subr.mxu0 0.0
          %2847 = vmatpush2.msra.mxu0 0.0
          %2848 = vmatprep.subr.mxu0 0.0
          %2849 = vmatpush2.msra.mxu0 0.0
          %2850 = vmatprep.subr.mxu0 0.0
          %2851 = vmatpush2.msra.mxu0 0.0
          %2852 = vmatprep.subr.mxu0 0.0
          %2853 = vmatpush2.msra.mxu0 0.0
          %2854 = vmatprep.mubr.f32.mxu0 0.0
          %2855 = vmatmul.mubr.f32.gmra.mxu0 %v2698
          %v2856 = vpop.f32.mrf.mxu0
          %v2857 = vadd.f32 %v2773, %v2856
          %v2858 = vpop.f32.mrf.mxu0
          %v2859 = vadd.f32 %v2777, %v2858
          %2860 = vmatprep.mubr.f32.mxu0 0.0
          %2861 = vmatmul.mubr.f32.gmra.mxu0 %v2699
          %v2862 = vpop.f32.mrf.mxu0
          %v2863 = vadd.f32 %v2773, %v2862
          %v2864 = vpop.f32.mrf.mxu0
          %v2865 = vadd.f32 %v2777, %v2864
          %2866 = vmatprep.mubr.f32.mxu0 0.0
          %2867 = vmatmul.mubr.f32.gmra.mxu0 %v2700
          %v2868 = vpop.f32.mrf.mxu0
          %v2869 = vadd.f32 %v2773, %v2868
          %v2870 = vpop.f32.mrf.mxu0
          %v2871 = vadd.f32 %v2777, %v2870
          %2872 = vmatprep.mubr.f32.mxu0 0.0
          %2873 = vmatmul.mubr.f32.gmra.mxu0 %v2701
          %v2874 = vpop.f32.mrf.mxu0
          %v2875 = vadd.f32 %v2773, %v2874
          %v2876 = vpop.f32.mrf.mxu0
          %v2877 = vadd.f32 %v2777, %v2876
          %2878 = vdwg.mxu0
          %2879 = vmatprep.subr.mxu0 %v2766
          %2880 = vmatpush1.msra.mxu0 %v2765
          %2881 = vmatprep.subr.mxu0 %v2762
          %2882 = vmatpush1.msra.mxu0 %v2761
          %2883 = vmatprep.subr.mxu0 %v2758
          %2884 = vmatpush1.msra.mxu0 %v2757
          %2885 = vmatprep.subr.mxu0 %v2754
          %2886 = vmatpush1.msra.mxu0 %v2753
          %2887 = vmatprep.subr.mxu0 %v2750
          %2888 = vmatpush1.msra.mxu0 %v2749
          %2889 = vmatprep.subr.mxu0 %v2746
          %2890 = vmatpush1.msra.mxu0 %v2745
          %2891 = vmatprep.subr.mxu0 %v2742
          %2892 = vmatpush1.msra.mxu0 %v2741
          %2893 = vmatprep.subr.mxu0 %v2738
          %2894 = vmatpush1.msra.mxu0 %v2737
          %2895 = vmatprep.subr.mxu0 %v2734
          %2896 = vmatpush1.msra.mxu0 %v2733
          %2897 = vmatprep.subr.mxu0 %v2730
          %2898 = vmatpush1.msra.mxu0 %v2729
          %2899 = vmatprep.subr.mxu0 %v2726
          %2900 = vmatpush1.msra.mxu0 %v2725
          %2901 = vmatprep.subr.mxu0 %v2722
          %2902 = vmatpush1.msra.mxu0 %v2721
          %2903 = vmatprep.subr.mxu0 %v2718
          %2904 = vmatpush1.msra.mxu0 %v2717
          %2905 = vmatprep.subr.mxu0 %v2714
          %2906 = vmatpush1.msra.mxu0 %v2713
          %2907 = vmatprep.subr.mxu0 %v2710
          %2908 = vmatpush1.msra.mxu0 %v2709
          %2909 = vmatprep.subr.mxu0 %v2706
          %2910 = vmatpush1.msra.mxu0 %v2705
          %2911 = vmatprep.subr.mxu0 0.0
          %2912 = vmatpush2.msra.mxu0 0.0
          %2913 = vmatprep.subr.mxu0 0.0
          %2914 = vmatpush2.msra.mxu0 0.0
          %2915 = vmatprep.subr.mxu0 0.0
          %2916 = vmatpush2.msra.mxu0 0.0
          %2917 = vmatprep.subr.mxu0 0.0
          %2918 = vmatpush2.msra.mxu0 0.0
          %2919 = vmatprep.subr.mxu0 0.0
          %2920 = vmatpush2.msra.mxu0 0.0
          %2921 = vmatprep.subr.mxu0 0.0
          %2922 = vmatpush2.msra.mxu0 0.0
          %2923 = vmatprep.subr.mxu0 0.0
          %2924 = vmatpush2.msra.mxu0 0.0
          %2925 = vmatprep.subr.mxu0 0.0
          %2926 = vmatpush2.msra.mxu0 0.0
          %2927 = vmatprep.subr.mxu0 0.0
          %2928 = vmatpush2.msra.mxu0 0.0
          %2929 = vmatprep.subr.mxu0 0.0
          %2930 = vmatpush2.msra.mxu0 0.0
          %2931 = vmatprep.subr.mxu0 0.0
          %2932 = vmatpush2.msra.mxu0 0.0
          %2933 = vmatprep.subr.mxu0 0.0
          %2934 = vmatpush2.msra.mxu0 0.0
          %2935 = vmatprep.subr.mxu0 0.0
          %2936 = vmatpush2.msra.mxu0 0.0
          %2937 = vmatprep.subr.mxu0 0.0
          %2938 = vmatpush2.msra.mxu0 0.0
          %2939 = vmatprep.subr.mxu0 0.0
          %2940 = vmatpush2.msra.mxu0 0.0
          %2941 = vmatprep.subr.mxu0 0.0
          %2942 = vmatpush2.msra.mxu0 0.0
          %2943 = vmatprep.mubr.f32.mxu0 0.0
          %2944 = vmatmul.mubr.f32.gmra.mxu0 %v2698
          %v2945 = vpop.f32.mrf.mxu0
          %v2946 = vadd.f32 %v2781, %v2945
          %v2947 = vpop.f32.mrf.mxu0
          %v2948 = vadd.f32 %v2785, %v2947
          %2949 = vmatprep.mubr.f32.mxu0 0.0
          %2950 = vmatmul.mubr.f32.gmra.mxu0 %v2699
          %v2951 = vpop.f32.mrf.mxu0
          %v2952 = vadd.f32 %v2781, %v2951
          %v2953 = vpop.f32.mrf.mxu0
          %v2954 = vadd.f32 %v2785, %v2953
          %2955 = vmatprep.mubr.f32.mxu0 0.0
          %2956 = vmatmul.mubr.f32.gmra.mxu0 %v2700
          %v2957 = vpop.f32.mrf.mxu0
          %v2958 = vadd.f32 %v2781, %v2957
          %v2959 = vpop.f32.mrf.mxu0
          %v2960 = vadd.f32 %v2785, %v2959
          %2961 = vmatprep.mubr.f32.mxu0 0.0
          %2962 = vmatmul.mubr.f32.gmra.mxu0 %v2701
          %v2963 = vpop.f32.mrf.mxu0
          %v2964 = vadd.f32 %v2781, %v2963
          %v2965 = vpop.f32.mrf.mxu0
          %v2966 = vadd.f32 %v2785, %v2965
          %2967 = vdwg.mxu0
          %2968 = vst [vmem:[#allocation4] sm:$0xff] %v2857
          %2969 = vst [vmem:[#allocation4 + $0x8] sm:$0xff] %v2859
          %2970 = vst [vmem:[#allocation4 + $0x10] sm:$0xff] %v2946
          %2971 = vst [vmem:[#allocation4 + $0x18] sm:$0xff] %v2948
          %2972 = vst [vmem:[#allocation4 + $0x20] sm:$0xff] %v2863
          %2973 = vst [vmem:[#allocation4 + $0x28] sm:$0xff] %v2865
          %2974 = vst [vmem:[#allocation4 + $0x30] sm:$0xff] %v2952
          %2975 = vst [vmem:[#allocation4 + $0x38] sm:$0xff] %v2954
          %2976 = vst [vmem:[#allocation4 + $0x40] sm:$0xff] %v2869
          %2977 = vst [vmem:[#allocation4 + $0x48] sm:$0xff] %v2871
          %2978 = vst [vmem:[#allocation4 + $0x50] sm:$0xff] %v2958
          %2979 = vst [vmem:[#allocation4 + $0x58] sm:$0xff] %v2960
          %2980 = vst [vmem:[#allocation4 + $0x60] sm:$0xff] %v2875
          %2981 = vst [vmem:[#allocation4 + $0x68] sm:$0xff] %v2877
          %2982 = vst [vmem:[#allocation4 + $0x70] sm:$0xff] %v2964
          %2983 = vst [vmem:[#allocation4 + $0x78] sm:$0xff] %v2966
          %s2984 = scalar_lea.vmem [#allocation14], 1024
          %v2985 = vld [vmem:[%s2984] sm:$0xff]
          %v2986 = vld [vmem:[%s2984 + $0x8] sm:$0xff]
          %v2987 = vld [vmem:[%s2984 + $0x10] sm:$0xff]
          %v2988 = vld [vmem:[%s2984 + $0x18] sm:$0xff]
          %v2989 = vld [vmem:[%s2984 + $0x20] sm:$0xff]
          %v2990 = vld [vmem:[%s2984 + $0x28] sm:$0xff]
          %v2991 = vld [vmem:[%s2984 + $0x30] sm:$0xff]
          %v2992 = vld [vmem:[%s2984 + $0x38] sm:$0xff]
          %v2993 = vld [vmem:[%s2984 + $0x40] sm:$0xff]
          %v2994 = vld [vmem:[%s2984 + $0x48] sm:$0xff]
          %v2995 = vld [vmem:[%s2984 + $0x50] sm:$0xff]
          %v2996 = vld [vmem:[%s2984 + $0x58] sm:$0xff]
          %v2997 = vld [vmem:[%s2984 + $0x60] sm:$0xff]
          %v2998 = vld [vmem:[%s2984 + $0x68] sm:$0xff]
          %v2999 = vld [vmem:[%s2984 + $0x70] sm:$0xff]
          %v3000 = vld [vmem:[%s2984 + $0x78] sm:$0xff]
          %v3001 = vld [vmem:[%s2984 + $0x80] sm:$0xff]
          %v3002 = vld [vmem:[%s2984 + $0x88] sm:$0xff]
          %v3003 = vld [vmem:[%s2984 + $0x90] sm:$0xff]
          %v3004 = vld [vmem:[%s2984 + $0x98] sm:$0xff]
          %v3005 = vld [vmem:[%s2984 + $0xa0] sm:$0xff]
          %v3006 = vld [vmem:[%s2984 + $0xa8] sm:$0xff]
          %v3007 = vld [vmem:[%s2984 + $0xb0] sm:$0xff]
          %v3008 = vld [vmem:[%s2984 + $0xb8] sm:$0xff]
          %v3009 = vld [vmem:[%s2984 + $0xc0] sm:$0xff]
          %v3010 = vld [vmem:[%s2984 + $0xc8] sm:$0xff]
          %v3011 = vld [vmem:[%s2984 + $0xd0] sm:$0xff]
          %v3012 = vld [vmem:[%s2984 + $0xd8] sm:$0xff]
          %v3013 = vld [vmem:[%s2984 + $0xe0] sm:$0xff]
          %v3014 = vld [vmem:[%s2984 + $0xe8] sm:$0xff]
          %v3015 = vld [vmem:[%s2984 + $0xf0] sm:$0xff]
          %v3016 = vld [vmem:[%s2984 + $0xf8] sm:$0xff]
          %v3017 = vld [vmem:[%s2984 + $0x100] sm:$0xff]
          %v3018 = vld [vmem:[%s2984 + $0x108] sm:$0xff]
          %v3019 = vld [vmem:[%s2984 + $0x110] sm:$0xff]
          %v3020 = vld [vmem:[%s2984 + $0x118] sm:$0xff]
          %v3021 = vld [vmem:[%s2984 + $0x120] sm:$0xff]
          %v3022 = vld [vmem:[%s2984 + $0x128] sm:$0xff]
          %v3023 = vld [vmem:[%s2984 + $0x130] sm:$0xff]
          %v3024 = vld [vmem:[%s2984 + $0x138] sm:$0xff]
          %v3025 = vld [vmem:[%s2984 + $0x140] sm:$0xff]
          %v3026 = vld [vmem:[%s2984 + $0x148] sm:$0xff]
          %v3027 = vld [vmem:[%s2984 + $0x150] sm:$0xff]
          %v3028 = vld [vmem:[%s2984 + $0x158] sm:$0xff]
          %v3029 = vld [vmem:[%s2984 + $0x160] sm:$0xff]
          %v3030 = vld [vmem:[%s2984 + $0x168] sm:$0xff]
          %v3031 = vld [vmem:[%s2984 + $0x170] sm:$0xff]
          %v3032 = vld [vmem:[%s2984 + $0x178] sm:$0xff]
          %v3033 = vld [vmem:[%s2984 + $0x180] sm:$0xff]
          %v3034 = vld [vmem:[%s2984 + $0x188] sm:$0xff]
          %v3035 = vld [vmem:[%s2984 + $0x190] sm:$0xff]
          %v3036 = vld [vmem:[%s2984 + $0x198] sm:$0xff]
          %v3037 = vld [vmem:[%s2984 + $0x1a0] sm:$0xff]
          %v3038 = vld [vmem:[%s2984 + $0x1a8] sm:$0xff]
          %v3039 = vld [vmem:[%s2984 + $0x1b0] sm:$0xff]
          %v3040 = vld [vmem:[%s2984 + $0x1b8] sm:$0xff]
          %v3041 = vld [vmem:[%s2984 + $0x1c0] sm:$0xff]
          %v3042 = vld [vmem:[%s2984 + $0x1c8] sm:$0xff]
          %v3043 = vld [vmem:[%s2984 + $0x1d0] sm:$0xff]
          %v3044 = vld [vmem:[%s2984 + $0x1d8] sm:$0xff]
          %v3045 = vld [vmem:[%s2984 + $0x1e0] sm:$0xff]
          %v3046 = vld [vmem:[%s2984 + $0x1e8] sm:$0xff]
          %v3047 = vld [vmem:[%s2984 + $0x1f0] sm:$0xff]
          %v3048 = vld [vmem:[%s2984 + $0x1f8] sm:$0xff]
          %s3049 = scalar_lea.vmem [#allocation2], 16
          %v3050 = vld [vmem:[%s3049] sm:$0xff]
          %s3051 = scalar_lea.vmem [#allocation3], 16
          %v3052 = vld [vmem:[%s3051] sm:$0xff]
          %v3053 = vld [vmem:[#allocation4] sm:$0xff]
          %v3054 = vld [vmem:[#allocation4 + $0x8] sm:$0xff]
          %v3055 = vld [vmem:[#allocation4 + $0x10] sm:$0xff]
          %v3056 = vld [vmem:[#allocation4 + $0x18] sm:$0xff]
          %3057 = vmatprep.subr.mxu0 %v3046
          %3058 = vmatpush1.msra.mxu0 %v3045
          %3059 = vmatprep.subr.mxu0 %v3042
          %3060 = vmatpush1.msra.mxu0 %v3041
          %3061 = vmatprep.subr.mxu0 %v3038
          %3062 = vmatpush1.msra.mxu0 %v3037
          %3063 = vmatprep.subr.mxu0 %v3034
          %3064 = vmatpush1.msra.mxu0 %v3033
          %3065 = vmatprep.subr.mxu0 %v3030
          %3066 = vmatpush1.msra.mxu0 %v3029
          %3067 = vmatprep.subr.mxu0 %v3026
          %3068 = vmatpush1.msra.mxu0 %v3025
          %3069 = vmatprep.subr.mxu0 %v3022
          %3070 = vmatpush1.msra.mxu0 %v3021
          %3071 = vmatprep.subr.mxu0 %v3018
          %3072 = vmatpush1.msra.mxu0 %v3017
          %3073 = vmatprep.subr.mxu0 %v3014
          %3074 = vmatpush1.msra.mxu0 %v3013
          %3075 = vmatprep.subr.mxu0 %v3010
          %3076 = vmatpush1.msra.mxu0 %v3009
          %3077 = vmatprep.subr.mxu0 %v3006
          %3078 = vmatpush1.msra.mxu0 %v3005
          %3079 = vmatprep.subr.mxu0 %v3002
          %3080 = vmatpush1.msra.mxu0 %v3001
          %3081 = vmatprep.subr.mxu0 %v2998
          %3082 = vmatpush1.msra.mxu0 %v2997
          %3083 = vmatprep.subr.mxu0 %v2994
          %3084 = vmatpush1.msra.mxu0 %v2993
          %3085 = vmatprep.subr.mxu0 %v2990
          %3086 = vmatpush1.msra.mxu0 %v2989
          %3087 = vmatprep.subr.mxu0 %v2986
          %3088 = vmatpush1.msra.mxu0 %v2985
          %3089 = vmatprep.subr.mxu0 0.0
          %3090 = vmatpush2.msra.mxu0 0.0
          %3091 = vmatprep.subr.mxu0 0.0
          %3092 = vmatpush2.msra.mxu0 0.0
          %3093 = vmatprep.subr.mxu0 0.0
          %3094 = vmatpush2.msra.mxu0 0.0
          %3095 = vmatprep.subr.mxu0 0.0
          %3096 = vmatpush2.msra.mxu0 0.0
          %3097 = vmatprep.subr.mxu0 0.0
          %3098 = vmatpush2.msra.mxu0 0.0
          %3099 = vmatprep.subr.mxu0 0.0
          %3100 = vmatpush2.msra.mxu0 0.0
          %3101 = vmatprep.subr.mxu0 0.0
          %3102 = vmatpush2.msra.mxu0 0.0
          %3103 = vmatprep.subr.mxu0 0.0
          %3104 = vmatpush2.msra.mxu0 0.0
          %3105 = vmatprep.subr.mxu0 0.0
          %3106 = vmatpush2.msra.mxu0 0.0
          %3107 = vmatprep.subr.mxu0 0.0
          %3108 = vmatpush2.msra.mxu0 0.0
          %3109 = vmatprep.subr.mxu0 0.0
          %3110 = vmatpush2.msra.mxu0 0.0
          %3111 = vmatprep.subr.mxu0 0.0
          %3112 = vmatpush2.msra.mxu0 0.0
          %3113 = vmatprep.subr.mxu0 0.0
          %3114 = vmatpush2.msra.mxu0 0.0
          %3115 = vmatprep.subr.mxu0 0.0
          %3116 = vmatpush2.msra.mxu0 0.0
          %3117 = vmatprep.subr.mxu0 0.0
          %3118 = vmatpush2.msra.mxu0 0.0
          %3119 = vmatprep.subr.mxu0 0.0
          %3120 = vmatpush2.msra.mxu0 0.0
          %3121 = vmatprep.mubr.f32.mxu0 0.0
          %3122 = vmatmul.mubr.f32.gmra.mxu0 %v3050
          %v3123 = vpop.f32.mrf.mxu0
          %v3124 = vadd.f32 0.0, %v3123
          %v3125 = vpop.f32.mrf.mxu0
          %v3126 = vadd.f32 0.0, %v3125
          %3127 = vdwg.mxu0
          %3128 = vmatprep.subr.mxu0 %v3048
          %3129 = vmatpush1.msra.mxu0 %v3047
          %3130 = vmatprep.subr.mxu0 %v3044
          %3131 = vmatpush1.msra.mxu0 %v3043
          %3132 = vmatprep.subr.mxu0 %v3040
          %3133 = vmatpush1.msra.mxu0 %v3039
          %3134 = vmatprep.subr.mxu0 %v3036
          %3135 = vmatpush1.msra.mxu0 %v3035
          %3136 = vmatprep.subr.mxu0 %v3032
          %3137 = vmatpush1.msra.mxu0 %v3031
          %3138 = vmatprep.subr.mxu0 %v3028
          %3139 = vmatpush1.msra.mxu0 %v3027
          %3140 = vmatprep.subr.mxu0 %v3024
          %3141 = vmatpush1.msra.mxu0 %v3023
          %3142 = vmatprep.subr.mxu0 %v3020
          %3143 = vmatpush1.msra.mxu0 %v3019
          %3144 = vmatprep.subr.mxu0 %v3016
          %3145 = vmatpush1.msra.mxu0 %v3015
          %3146 = vmatprep.subr.mxu0 %v3012
          %3147 = vmatpush1.msra.mxu0 %v3011
          %3148 = vmatprep.subr.mxu0 %v3008
          %3149 = vmatpush1.msra.mxu0 %v3007
          %3150 = vmatprep.subr.mxu0 %v3004
          %3151 = vmatpush1.msra.mxu0 %v3003
          %3152 = vmatprep.subr.mxu0 %v3000
          %3153 = vmatpush1.msra.mxu0 %v2999
          %3154 = vmatprep.subr.mxu0 %v2996
          %3155 = vmatpush1.msra.mxu0 %v2995
          %3156 = vmatprep.subr.mxu0 %v2992
          %3157 = vmatpush1.msra.mxu0 %v2991
          %3158 = vmatprep.subr.mxu0 %v2988
          %3159 = vmatpush1.msra.mxu0 %v2987
          %3160 = vmatprep.subr.mxu0 0.0
          %3161 = vmatpush2.msra.mxu0 0.0
          %3162 = vmatprep.subr.mxu0 0.0
          %3163 = vmatpush2.msra.mxu0 0.0
          %3164 = vmatprep.subr.mxu0 0.0
          %3165 = vmatpush2.msra.mxu0 0.0
          %3166 = vmatprep.subr.mxu0 0.0
          %3167 = vmatpush2.msra.mxu0 0.0
          %3168 = vmatprep.subr.mxu0 0.0
          %3169 = vmatpush2.msra.mxu0 0.0
          %3170 = vmatprep.subr.mxu0 0.0
          %3171 = vmatpush2.msra.mxu0 0.0
          %3172 = vmatprep.subr.mxu0 0.0
          %3173 = vmatpush2.msra.mxu0 0.0
          %3174 = vmatprep.subr.mxu0 0.0
          %3175 = vmatpush2.msra.mxu0 0.0
          %3176 = vmatprep.subr.mxu0 0.0
          %3177 = vmatpush2.msra.mxu0 0.0
          %3178 = vmatprep.subr.mxu0 0.0
          %3179 = vmatpush2.msra.mxu0 0.0
          %3180 = vmatprep.subr.mxu0 0.0
          %3181 = vmatpush2.msra.mxu0 0.0
          %3182 = vmatprep.subr.mxu0 0.0
          %3183 = vmatpush2.msra.mxu0 0.0
          %3184 = vmatprep.subr.mxu0 0.0
          %3185 = vmatpush2.msra.mxu0 0.0
          %3186 = vmatprep.subr.mxu0 0.0
          %3187 = vmatpush2.msra.mxu0 0.0
          %3188 = vmatprep.subr.mxu0 0.0
          %3189 = vmatpush2.msra.mxu0 0.0
          %3190 = vmatprep.subr.mxu0 0.0
          %3191 = vmatpush2.msra.mxu0 0.0
          %3192 = vmatprep.mubr.f32.mxu0 0.0
          %3193 = vmatmul.mubr.f32.gmra.mxu0 %v3050
          %v3194 = vpop.f32.mrf.mxu0
          %v3195 = vadd.f32 0.0, %v3194
          %v3196 = vpop.f32.mrf.mxu0
          %v3197 = vadd.f32 0.0, %v3196
          %3198 = vdwg.mxu0
          %v3199 = vadd.f32 %v3053, %v3124
          %v3200 = vadd.f32 %v3054, %v3126
          %v3201 = vadd.f32 %v3055, %v3195
          %v3202 = vadd.f32 %v3056, %v3197
          %v3203 = vxor.u32 %v3199, 2147483648
          %v3204 = vmul.f32 %v3203, 1.442695
          %v3205 = vpow.pop %v3204
          %v3206 = vadd.f32 %v3205, 1.0
          %v3207 = vrcp.pop %v3206
          %v3208 = vmul.f32 1.0, %v3207
          %v3209 = vxor.u32 %v3200, 2147483648
          %v3210 = vmul.f32 %v3209, 1.442695
          %v3211 = vpow.pop %v3210
          %v3212 = vadd.f32 %v3211, 1.0
          %v3213 = vrcp.pop %v3212
          %v3214 = vmul.f32 1.0, %v3213
          %v3215 = vtanh.pop %v3201
          %v3216 = vxor.u32 %v3202, 2147483648
          %v3217 = vmul.f32 %v3216, 1.442695
          %v3218 = vpow.pop %v3217
          %v3219 = vadd.f32 %v3218, 1.0
          %v3220 = vrcp.pop %v3219
          %v3221 = vmul.f32 1.0, %v3220
          %v3222 = vmul.f32 %v3214, %v3052
          %v3223 = vmul.f32 %v3208, %v3215
          %v3224 = vadd.f32 %v3222, %v3223
          %v3225 = vtanh.pop %v3224
          %v3226 = vmul.f32 %v3221, %v3225
          %v3227 = vld [vmem:[%s2] sm:$0xff]
          %vm3228 = vcmp.gt.s32.totalorder %v3227, %v998
          %v3229 = vsel %vm3228, 1, 0
          %3230 = vset.pattern.permute.xlu0 0
          %3231 = vperm.xlu0 %3230, %v3229
          %v3232 = vpop.permute.xlu0 %3231
          %vm3233 = vcmp.eq.s32.totalorder %v3232, 1
          %v3234 = vsel %vm3233, %v3226, %v3050
          %3235 = vst [vmem:[%s3049] sm:$0xff] %v3234
          %v3236 = vsel %vm3233, %v3224, %v3052
          %3237 = vst [vmem:[%s3051] sm:$0xff] %v3236
          %v3238 = vsel %vm3233, %v3226, 0.0
          %3239 = vst [vmem:[%s444] sm:$0xff] %v3238
          %v3240 = vld [vmem:[%s3049] sm:$0xff]
          %v3241 = vld [vmem:[%s3051] sm:$0xff]
          %v3242 = vld [vmem:[%s1013] sm:$0xff]
          %v3243 = vld [vmem:[%s1013 + $0x8] sm:$0xff]
          %v3244 = vld [vmem:[%s1013 + $0x10] sm:$0xff]
          %v3245 = vld [vmem:[%s1013 + $0x18] sm:$0xff]
          %3246 = vmatprep.subr.mxu0 %v3046
          %3247 = vmatpush1.msra.mxu0 %v3045
          %3248 = vmatprep.subr.mxu0 %v3042
          %3249 = vmatpush1.msra.mxu0 %v3041
          %3250 = vmatprep.subr.mxu0 %v3038
          %3251 = vmatpush1.msra.mxu0 %v3037
          %3252 = vmatprep.subr.mxu0 %v3034
          %3253 = vmatpush1.msra.mxu0 %v3033
          %3254 = vmatprep.subr.mxu0 %v3030
          %3255 = vmatpush1.msra.mxu0 %v3029
          %3256 = vmatprep.subr.mxu0 %v3026
          %3257 = vmatpush1.msra.mxu0 %v3025
          %3258 = vmatprep.subr.mxu0 %v3022
          %3259 = vmatpush1.msra.mxu0 %v3021
          %3260 = vmatprep.subr.mxu0 %v3018
          %3261 = vmatpush1.msra.mxu0 %v3017
          %3262 = vmatprep.subr.mxu0 %v3014
          %3263 = vmatpush1.msra.mxu0 %v3013
          %3264 = vmatprep.subr.mxu0 %v3010
          %3265 = vmatpush1.msra.mxu0 %v3009
          %3266 = vmatprep.subr.mxu0 %v3006
          %3267 = vmatpush1.msra.mxu0 %v3005
          %3268 = vmatprep.subr.mxu0 %v3002
          %3269 = vmatpush1.msra.mxu0 %v3001
          %3270 = vmatprep.subr.mxu0 %v2998
          %3271 = vmatpush1.msra.mxu0 %v2997
          %3272 = vmatprep.subr.mxu0 %v2994
          %3273 = vmatpush1.msra.mxu0 %v2993
          %3274 = vmatprep.subr.mxu0 %v2990
          %3275 = vmatpush1.msra.mxu0 %v2989
          %3276 = vmatprep.subr.mxu0 %v2986
          %3277 = vmatpush1.msra.mxu0 %v2985
          %3278 = vmatprep.subr.mxu0 0.0
          %3279 = vmatpush2.msra.mxu0 0.0
          %3280 = vmatprep.subr.mxu0 0.0
          %3281 = vmatpush2.msra.mxu0 0.0
          %3282 = vmatprep.subr.mxu0 0.0
          %3283 = vmatpush2.msra.mxu0 0.0
          %3284 = vmatprep.subr.mxu0 0.0
          %3285 = vmatpush2.msra.mxu0 0.0
          %3286 = vmatprep.subr.mxu0 0.0
          %3287 = vmatpush2.msra.mxu0 0.0
          %3288 = vmatprep.subr.mxu0 0.0
          %3289 = vmatpush2.msra.mxu0 0.0
          %3290 = vmatprep.subr.mxu0 0.0
          %3291 = vmatpush2.msra.mxu0 0.0
          %3292 = vmatprep.subr.mxu0 0.0
          %3293 = vmatpush2.msra.mxu0 0.0
          %3294 = vmatprep.subr.mxu0 0.0
          %3295 = vmatpush2.msra.mxu0 0.0
          %3296 = vmatprep.subr.mxu0 0.0
          %3297 = vmatpush2.msra.mxu0 0.0
          %3298 = vmatprep.subr.mxu0 0.0
          %3299 = vmatpush2.msra.mxu0 0.0
          %3300 = vmatprep.subr.mxu0 0.0
          %3301 = vmatpush2.msra.mxu0 0.0
          %3302 = vmatprep.subr.mxu0 0.0
          %3303 = vmatpush2.msra.mxu0 0.0
          %3304 = vmatprep.subr.mxu0 0.0
          %3305 = vmatpush2.msra.mxu0 0.0
          %3306 = vmatprep.subr.mxu0 0.0
          %3307 = vmatpush2.msra.mxu0 0.0
          %3308 = vmatprep.subr.mxu0 0.0
          %3309 = vmatpush2.msra.mxu0 0.0
          %3310 = vmatprep.mubr.f32.mxu0 0.0
          %3311 = vmatmul.mubr.f32.gmra.mxu0 %v3240
          %v3312 = vpop.f32.mrf.mxu0
          %v3313 = vadd.f32 0.0, %v3312
          %v3314 = vpop.f32.mrf.mxu0
          %v3315 = vadd.f32 0.0, %v3314
          %3316 = vdwg.mxu0
          %3317 = vmatprep.subr.mxu0 %v3048
          %3318 = vmatpush1.msra.mxu0 %v3047
          %3319 = vmatprep.subr.mxu0 %v3044
          %3320 = vmatpush1.msra.mxu0 %v3043
          %3321 = vmatprep.subr.mxu0 %v3040
          %3322 = vmatpush1.msra.mxu0 %v3039
          %3323 = vmatprep.subr.mxu0 %v3036
          %3324 = vmatpush1.msra.mxu0 %v3035
          %3325 = vmatprep.subr.mxu0 %v3032
          %3326 = vmatpush1.msra.mxu0 %v3031
          %3327 = vmatprep.subr.mxu0 %v3028
          %3328 = vmatpush1.msra.mxu0 %v3027
          %3329 = vmatprep.subr.mxu0 %v3024
          %3330 = vmatpush1.msra.mxu0 %v3023
          %3331 = vmatprep.subr.mxu0 %v3020
          %3332 = vmatpush1.msra.mxu0 %v3019
          %3333 = vmatprep.subr.mxu0 %v3016
          %3334 = vmatpush1.msra.mxu0 %v3015
          %3335 = vmatprep.subr.mxu0 %v3012
          %3336 = vmatpush1.msra.mxu0 %v3011
          %3337 = vmatprep.subr.mxu0 %v3008
          %3338 = vmatpush1.msra.mxu0 %v3007
          %3339 = vmatprep.subr.mxu0 %v3004
          %3340 = vmatpush1.msra.mxu0 %v3003
          %3341 = vmatprep.subr.mxu0 %v3000
          %3342 = vmatpush1.msra.mxu0 %v2999
          %3343 = vmatprep.subr.mxu0 %v2996
          %3344 = vmatpush1.msra.mxu0 %v2995
          %3345 = vmatprep.subr.mxu0 %v2992
          %3346 = vmatpush1.msra.mxu0 %v2991
          %3347 = vmatprep.subr.mxu0 %v2988
          %3348 = vmatpush1.msra.mxu0 %v2987
          %3349 = vmatprep.subr.mxu0 0.0
          %3350 = vmatpush2.msra.mxu0 0.0
          %3351 = vmatprep.subr.mxu0 0.0
          %3352 = vmatpush2.msra.mxu0 0.0
          %3353 = vmatprep.subr.mxu0 0.0
          %3354 = vmatpush2.msra.mxu0 0.0
          %3355 = vmatprep.subr.mxu0 0.0
          %3356 = vmatpush2.msra.mxu0 0.0
          %3357 = vmatprep.subr.mxu0 0.0
          %3358 = vmatpush2.msra.mxu0 0.0
          %3359 = vmatprep.subr.mxu0 0.0
          %3360 = vmatpush2.msra.mxu0 0.0
          %3361 = vmatprep.subr.mxu0 0.0
          %3362 = vmatpush2.msra.mxu0 0.0
          %3363 = vmatprep.subr.mxu0 0.0
          %3364 = vmatpush2.msra.mxu0 0.0
          %3365 = vmatprep.subr.mxu0 0.0
          %3366 = vmatpush2.msra.mxu0 0.0
          %3367 = vmatprep.subr.mxu0 0.0
          %3368 = vmatpush2.msra.mxu0 0.0
          %3369 = vmatprep.subr.mxu0 0.0
          %3370 = vmatpush2.msra.mxu0 0.0
          %3371 = vmatprep.subr.mxu0 0.0
          %3372 = vmatpush2.msra.mxu0 0.0
          %3373 = vmatprep.subr.mxu0 0.0
          %3374 = vmatpush2.msra.mxu0 0.0
          %3375 = vmatprep.subr.mxu0 0.0
          %3376 = vmatpush2.msra.mxu0 0.0
          %3377 = vmatprep.subr.mxu0 0.0
          %3378 = vmatpush2.msra.mxu0 0.0
          %3379 = vmatprep.subr.mxu0 0.0
          %3380 = vmatpush2.msra.mxu0 0.0
          %3381 = vmatprep.mubr.f32.mxu0 0.0
          %3382 = vmatmul.mubr.f32.gmra.mxu0 %v3240
          %v3383 = vpop.f32.mrf.mxu0
          %v3384 = vadd.f32 0.0, %v3383
          %v3385 = vpop.f32.mrf.mxu0
          %v3386 = vadd.f32 0.0, %v3385
          %3387 = vdwg.mxu0
          %v3388 = vadd.f32 %v3242, %v3313
          %v3389 = vadd.f32 %v3243, %v3315
          %v3390 = vadd.f32 %v3244, %v3384
          %v3391 = vadd.f32 %v3245, %v3386
          %v3392 = vxor.u32 %v3388, 2147483648
          %v3393 = vmul.f32 %v3392, 1.442695
          %v3394 = vpow.pop %v3393
          %v3395 = vadd.f32 %v3394, 1.0
          %v3396 = vrcp.pop %v3395
          %v3397 = vmul.f32 1.0, %v3396
          %v3398 = vxor.u32 %v3389, 2147483648
          %v3399 = vmul.f32 %v3398, 1.442695
          %v3400 = vpow.pop %v3399
          %v3401 = vadd.f32 %v3400, 1.0
          %v3402 = vrcp.pop %v3401
          %v3403 = vmul.f32 1.0, %v3402
          %v3404 = vtanh.pop %v3390
          %v3405 = vxor.u32 %v3391, 2147483648
          %v3406 = vmul.f32 %v3405, 1.442695
          %v3407 = vpow.pop %v3406
          %v3408 = vadd.f32 %v3407, 1.0
          %v3409 = vrcp.pop %v3408
          %v3410 = vmul.f32 1.0, %v3409
          %v3411 = vmul.f32 %v3403, %v3241
          %v3412 = vmul.f32 %v3397, %v3404
          %v3413 = vadd.f32 %v3411, %v3412
          %v3414 = vtanh.pop %v3413
          %v3415 = vmul.f32 %v3410, %v3414
          %v3416 = vld [vmem:[%s2] sm:$0xff]
          %vm3417 = vcmp.gt.s32.totalorder %v3416, %v1190
          %v3418 = vsel %vm3417, 1, 0
          %3419 = vset.pattern.permute.xlu0 0
          %3420 = vperm.xlu0 %3419, %v3418
          %v3421 = vpop.permute.xlu0 %3420
          %vm3422 = vcmp.eq.s32.totalorder %v3421, 1
          %v3423 = vsel %vm3422, %v3415, %v3240
          %3424 = vst [vmem:[%s3049] sm:$0xff] %v3423
          %v3425 = vsel %vm3422, %v3413, %v3241
          %3426 = vst [vmem:[%s3051] sm:$0xff] %v3425
          %v3427 = vsel %vm3422, %v3415, 0.0
          %s3428 = scalar_lea.vmem %s444, 8 [#allocation19]
          %3429 = vst [vmem:[%s3428] sm:$0xff] %v3427
          %v3430 = vld [vmem:[%s3049] sm:$0xff]
          %v3431 = vld [vmem:[%s3051] sm:$0xff]
          %v3432 = vld [vmem:[%s1206] sm:$0xff]
          %v3433 = vld [vmem:[%s1206 + $0x8] sm:$0xff]
          %v3434 = vld [vmem:[%s1206 + $0x10] sm:$0xff]
          %v3435 = vld [vmem:[%s1206 + $0x18] sm:$0xff]
          %3436 = vmatprep.subr.mxu0 %v3046
          %3437 = vmatpush1.msra.mxu0 %v3045
          %3438 = vmatprep.subr.mxu0 %v3042
          %3439 = vmatpush1.msra.mxu0 %v3041
          %3440 = vmatprep.subr.mxu0 %v3038
          %3441 = vmatpush1.msra.mxu0 %v3037
          %3442 = vmatprep.subr.mxu0 %v3034
          %3443 = vmatpush1.msra.mxu0 %v3033
          %3444 = vmatprep.subr.mxu0 %v3030
          %3445 = vmatpush1.msra.mxu0 %v3029
          %3446 = vmatprep.subr.mxu0 %v3026
          %3447 = vmatpush1.msra.mxu0 %v3025
          %3448 = vmatprep.subr.mxu0 %v3022
          %3449 = vmatpush1.msra.mxu0 %v3021
          %3450 = vmatprep.subr.mxu0 %v3018
          %3451 = vmatpush1.msra.mxu0 %v3017
          %3452 = vmatprep.subr.mxu0 %v3014
          %3453 = vmatpush1.msra.mxu0 %v3013
          %3454 = vmatprep.subr.mxu0 %v3010
          %3455 = vmatpush1.msra.mxu0 %v3009
          %3456 = vmatprep.subr.mxu0 %v3006
          %3457 = vmatpush1.msra.mxu0 %v3005
          %3458 = vmatprep.subr.mxu0 %v3002
          %3459 = vmatpush1.msra.mxu0 %v3001
          %3460 = vmatprep.subr.mxu0 %v2998
          %3461 = vmatpush1.msra.mxu0 %v2997
          %3462 = vmatprep.subr.mxu0 %v2994
          %3463 = vmatpush1.msra.mxu0 %v2993
          %3464 = vmatprep.subr.mxu0 %v2990
          %3465 = vmatpush1.msra.mxu0 %v2989
          %3466 = vmatprep.subr.mxu0 %v2986
          %3467 = vmatpush1.msra.mxu0 %v2985
          %3468 = vmatprep.subr.mxu0 0.0
          %3469 = vmatpush2.msra.mxu0 0.0
          %3470 = vmatprep.subr.mxu0 0.0
          %3471 = vmatpush2.msra.mxu0 0.0
          %3472 = vmatprep.subr.mxu0 0.0
          %3473 = vmatpush2.msra.mxu0 0.0
          %3474 = vmatprep.subr.mxu0 0.0
          %3475 = vmatpush2.msra.mxu0 0.0
          %3476 = vmatprep.subr.mxu0 0.0
          %3477 = vmatpush2.msra.mxu0 0.0
          %3478 = vmatprep.subr.mxu0 0.0
          %3479 = vmatpush2.msra.mxu0 0.0
          %3480 = vmatprep.subr.mxu0 0.0
          %3481 = vmatpush2.msra.mxu0 0.0
          %3482 = vmatprep.subr.mxu0 0.0
          %3483 = vmatpush2.msra.mxu0 0.0
          %3484 = vmatprep.subr.mxu0 0.0
          %3485 = vmatpush2.msra.mxu0 0.0
          %3486 = vmatprep.subr.mxu0 0.0
          %3487 = vmatpush2.msra.mxu0 0.0
          %3488 = vmatprep.subr.mxu0 0.0
          %3489 = vmatpush2.msra.mxu0 0.0
          %3490 = vmatprep.subr.mxu0 0.0
          %3491 = vmatpush2.msra.mxu0 0.0
          %3492 = vmatprep.subr.mxu0 0.0
          %3493 = vmatpush2.msra.mxu0 0.0
          %3494 = vmatprep.subr.mxu0 0.0
          %3495 = vmatpush2.msra.mxu0 0.0
          %3496 = vmatprep.subr.mxu0 0.0
          %3497 = vmatpush2.msra.mxu0 0.0
          %3498 = vmatprep.subr.mxu0 0.0
          %3499 = vmatpush2.msra.mxu0 0.0
          %3500 = vmatprep.mubr.f32.mxu0 0.0
          %3501 = vmatmul.mubr.f32.gmra.mxu0 %v3430
          %v3502 = vpop.f32.mrf.mxu0
          %v3503 = vadd.f32 0.0, %v3502
          %v3504 = vpop.f32.mrf.mxu0
          %v3505 = vadd.f32 0.0, %v3504
          %3506 = vdwg.mxu0
          %3507 = vmatprep.subr.mxu0 %v3048
          %3508 = vmatpush1.msra.mxu0 %v3047
          %3509 = vmatprep.subr.mxu0 %v3044
          %3510 = vmatpush1.msra.mxu0 %v3043
          %3511 = vmatprep.subr.mxu0 %v3040
          %3512 = vmatpush1.msra.mxu0 %v3039
          %3513 = vmatprep.subr.mxu0 %v3036
          %3514 = vmatpush1.msra.mxu0 %v3035
          %3515 = vmatprep.subr.mxu0 %v3032
          %3516 = vmatpush1.msra.mxu0 %v3031
          %3517 = vmatprep.subr.mxu0 %v3028
          %3518 = vmatpush1.msra.mxu0 %v3027
          %3519 = vmatprep.subr.mxu0 %v3024
          %3520 = vmatpush1.msra.mxu0 %v3023
          %3521 = vmatprep.subr.mxu0 %v3020
          %3522 = vmatpush1.msra.mxu0 %v3019
          %3523 = vmatprep.subr.mxu0 %v3016
          %3524 = vmatpush1.msra.mxu0 %v3015
          %3525 = vmatprep.subr.mxu0 %v3012
          %3526 = vmatpush1.msra.mxu0 %v3011
          %3527 = vmatprep.subr.mxu0 %v3008
          %3528 = vmatpush1.msra.mxu0 %v3007
          %3529 = vmatprep.subr.mxu0 %v3004
          %3530 = vmatpush1.msra.mxu0 %v3003
          %3531 = vmatprep.subr.mxu0 %v3000
          %3532 = vmatpush1.msra.mxu0 %v2999
          %3533 = vmatprep.subr.mxu0 %v2996
          %3534 = vmatpush1.msra.mxu0 %v2995
          %3535 = vmatprep.subr.mxu0 %v2992
          %3536 = vmatpush1.msra.mxu0 %v2991
          %3537 = vmatprep.subr.mxu0 %v2988
          %3538 = vmatpush1.msra.mxu0 %v2987
          %3539 = vmatprep.subr.mxu0 0.0
          %3540 = vmatpush2.msra.mxu0 0.0
          %3541 = vmatprep.subr.mxu0 0.0
          %3542 = vmatpush2.msra.mxu0 0.0
          %3543 = vmatprep.subr.mxu0 0.0
          %3544 = vmatpush2.msra.mxu0 0.0
          %3545 = vmatprep.subr.mxu0 0.0
          %3546 = vmatpush2.msra.mxu0 0.0
          %3547 = vmatprep.subr.mxu0 0.0
          %3548 = vmatpush2.msra.mxu0 0.0
          %3549 = vmatprep.subr.mxu0 0.0
          %3550 = vmatpush2.msra.mxu0 0.0
          %3551 = vmatprep.subr.mxu0 0.0
          %3552 = vmatpush2.msra.mxu0 0.0
          %3553 = vmatprep.subr.mxu0 0.0
          %3554 = vmatpush2.msra.mxu0 0.0
          %3555 = vmatprep.subr.mxu0 0.0
          %3556 = vmatpush2.msra.mxu0 0.0
          %3557 = vmatprep.subr.mxu0 0.0
          %3558 = vmatpush2.msra.mxu0 0.0
          %3559 = vmatprep.subr.mxu0 0.0
          %3560 = vmatpush2.msra.mxu0 0.0
          %3561 = vmatprep.subr.mxu0 0.0
          %3562 = vmatpush2.msra.mxu0 0.0
          %3563 = vmatprep.subr.mxu0 0.0
          %3564 = vmatpush2.msra.mxu0 0.0
          %3565 = vmatprep.subr.mxu0 0.0
          %3566 = vmatpush2.msra.mxu0 0.0
          %3567 = vmatprep.subr.mxu0 0.0
          %3568 = vmatpush2.msra.mxu0 0.0
          %3569 = vmatprep.subr.mxu0 0.0
          %3570 = vmatpush2.msra.mxu0 0.0
          %3571 = vmatprep.mubr.f32.mxu0 0.0
          %3572 = vmatmul.mubr.f32.gmra.mxu0 %v3430
          %v3573 = vpop.f32.mrf.mxu0
          %v3574 = vadd.f32 0.0, %v3573
          %v3575 = vpop.f32.mrf.mxu0
          %v3576 = vadd.f32 0.0, %v3575
          %3577 = vdwg.mxu0
          %v3578 = vadd.f32 %v3432, %v3503
          %v3579 = vadd.f32 %v3433, %v3505
          %v3580 = vadd.f32 %v3434, %v3574
          %v3581 = vadd.f32 %v3435, %v3576
          %v3582 = vxor.u32 %v3578, 2147483648
          %v3583 = vmul.f32 %v3582, 1.442695
          %v3584 = vpow.pop %v3583
          %v3585 = vadd.f32 %v3584, 1.0
          %v3586 = vrcp.pop %v3585
          %v3587 = vmul.f32 1.0, %v3586
          %v3588 = vxor.u32 %v3579, 2147483648
          %v3589 = vmul.f32 %v3588, 1.442695
          %v3590 = vpow.pop %v3589
          %v3591 = vadd.f32 %v3590, 1.0
          %v3592 = vrcp.pop %v3591
          %v3593 = vmul.f32 1.0, %v3592
          %v3594 = vtanh.pop %v3580
          %v3595 = vxor.u32 %v3581, 2147483648
          %v3596 = vmul.f32 %v3595, 1.442695
          %v3597 = vpow.pop %v3596
          %v3598 = vadd.f32 %v3597, 1.0
          %v3599 = vrcp.pop %v3598
          %v3600 = vmul.f32 1.0, %v3599
          %v3601 = vmul.f32 %v3593, %v3431
          %v3602 = vmul.f32 %v3587, %v3594
          %v3603 = vadd.f32 %v3601, %v3602
          %v3604 = vtanh.pop %v3603
          %v3605 = vmul.f32 %v3600, %v3604
          %v3606 = vld [vmem:[%s2] sm:$0xff]
          %vm3607 = vcmp.gt.s32.totalorder %v3606, %v1383
          %v3608 = vsel %vm3607, 1, 0
          %3609 = vset.pattern.permute.xlu0 0
          %3610 = vperm.xlu0 %3609, %v3608
          %v3611 = vpop.permute.xlu0 %3610
          %vm3612 = vcmp.eq.s32.totalorder %v3611, 1
          %v3613 = vsel %vm3612, %v3605, %v3430
          %3614 = vst [vmem:[%s3049] sm:$0xff] %v3613
          %v3615 = vsel %vm3612, %v3603, %v3431
          %3616 = vst [vmem:[%s3051] sm:$0xff] %v3615
          %v3617 = vsel %vm3612, %v3605, 0.0
          %s3618 = scalar_lea.vmem %s444, 16 [#allocation19]
          %3619 = vst [vmem:[%s3618] sm:$0xff] %v3617
          %v3620 = vld [vmem:[%s3049] sm:$0xff]
          %v3621 = vld [vmem:[%s3051] sm:$0xff]
          %v3622 = vld [vmem:[%s1399] sm:$0xff]
          %v3623 = vld [vmem:[%s1399 + $0x8] sm:$0xff]
          %v3624 = vld [vmem:[%s1399 + $0x10] sm:$0xff]
          %v3625 = vld [vmem:[%s1399 + $0x18] sm:$0xff]
          %3626 = vmatprep.subr.mxu0 %v3046
          %3627 = vmatpush1.msra.mxu0 %v3045
          %3628 = vmatprep.subr.mxu0 %v3042
          %3629 = vmatpush1.msra.mxu0 %v3041
          %3630 = vmatprep.subr.mxu0 %v3038
          %3631 = vmatpush1.msra.mxu0 %v3037
          %3632 = vmatprep.subr.mxu0 %v3034
          %3633 = vmatpush1.msra.mxu0 %v3033
          %3634 = vmatprep.subr.mxu0 %v3030
          %3635 = vmatpush1.msra.mxu0 %v3029
          %3636 = vmatprep.subr.mxu0 %v3026
          %3637 = vmatpush1.msra.mxu0 %v3025
          %3638 = vmatprep.subr.mxu0 %v3022
          %3639 = vmatpush1.msra.mxu0 %v3021
          %3640 = vmatprep.subr.mxu0 %v3018
          %3641 = vmatpush1.msra.mxu0 %v3017
          %3642 = vmatprep.subr.mxu0 %v3014
          %3643 = vmatpush1.msra.mxu0 %v3013
          %3644 = vmatprep.subr.mxu0 %v3010
          %3645 = vmatpush1.msra.mxu0 %v3009
          %3646 = vmatprep.subr.mxu0 %v3006
          %3647 = vmatpush1.msra.mxu0 %v3005
          %3648 = vmatprep.subr.mxu0 %v3002
          %3649 = vmatpush1.msra.mxu0 %v3001
          %3650 = vmatprep.subr.mxu0 %v2998
          %3651 = vmatpush1.msra.mxu0 %v2997
          %3652 = vmatprep.subr.mxu0 %v2994
          %3653 = vmatpush1.msra.mxu0 %v2993
          %3654 = vmatprep.subr.mxu0 %v2990
          %3655 = vmatpush1.msra.mxu0 %v2989
          %3656 = vmatprep.subr.mxu0 %v2986
          %3657 = vmatpush1.msra.mxu0 %v2985
          %3658 = vmatprep.subr.mxu0 0.0
          %3659 = vmatpush2.msra.mxu0 0.0
          %3660 = vmatprep.subr.mxu0 0.0
          %3661 = vmatpush2.msra.mxu0 0.0
          %3662 = vmatprep.subr.mxu0 0.0
          %3663 = vmatpush2.msra.mxu0 0.0
          %3664 = vmatprep.subr.mxu0 0.0
          %3665 = vmatpush2.msra.mxu0 0.0
          %3666 = vmatprep.subr.mxu0 0.0
          %3667 = vmatpush2.msra.mxu0 0.0
          %3668 = vmatprep.subr.mxu0 0.0
          %3669 = vmatpush2.msra.mxu0 0.0
          %3670 = vmatprep.subr.mxu0 0.0
          %3671 = vmatpush2.msra.mxu0 0.0
          %3672 = vmatprep.subr.mxu0 0.0
          %3673 = vmatpush2.msra.mxu0 0.0
          %3674 = vmatprep.subr.mxu0 0.0
          %3675 = vmatpush2.msra.mxu0 0.0
          %3676 = vmatprep.subr.mxu0 0.0
          %3677 = vmatpush2.msra.mxu0 0.0
          %3678 = vmatprep.subr.mxu0 0.0
          %3679 = vmatpush2.msra.mxu0 0.0
          %3680 = vmatprep.subr.mxu0 0.0
          %3681 = vmatpush2.msra.mxu0 0.0
          %3682 = vmatprep.subr.mxu0 0.0
          %3683 = vmatpush2.msra.mxu0 0.0
          %3684 = vmatprep.subr.mxu0 0.0
          %3685 = vmatpush2.msra.mxu0 0.0
          %3686 = vmatprep.subr.mxu0 0.0
          %3687 = vmatpush2.msra.mxu0 0.0
          %3688 = vmatprep.subr.mxu0 0.0
          %3689 = vmatpush2.msra.mxu0 0.0
          %3690 = vmatprep.mubr.f32.mxu0 0.0
          %3691 = vmatmul.mubr.f32.gmra.mxu0 %v3620
          %v3692 = vpop.f32.mrf.mxu0
          %v3693 = vadd.f32 0.0, %v3692
          %v3694 = vpop.f32.mrf.mxu0
          %v3695 = vadd.f32 0.0, %v3694
          %3696 = vdwg.mxu0
          %3697 = vmatprep.subr.mxu0 %v3048
          %3698 = vmatpush1.msra.mxu0 %v3047
          %3699 = vmatprep.subr.mxu0 %v3044
          %3700 = vmatpush1.msra.mxu0 %v3043
          %3701 = vmatprep.subr.mxu0 %v3040
          %3702 = vmatpush1.msra.mxu0 %v3039
          %3703 = vmatprep.subr.mxu0 %v3036
          %3704 = vmatpush1.msra.mxu0 %v3035
          %3705 = vmatprep.subr.mxu0 %v3032
          %3706 = vmatpush1.msra.mxu0 %v3031
          %3707 = vmatprep.subr.mxu0 %v3028
          %3708 = vmatpush1.msra.mxu0 %v3027
          %3709 = vmatprep.subr.mxu0 %v3024
          %3710 = vmatpush1.msra.mxu0 %v3023
          %3711 = vmatprep.subr.mxu0 %v3020
          %3712 = vmatpush1.msra.mxu0 %v3019
          %3713 = vmatprep.subr.mxu0 %v3016
          %3714 = vmatpush1.msra.mxu0 %v3015
          %3715 = vmatprep.subr.mxu0 %v3012
          %3716 = vmatpush1.msra.mxu0 %v3011
          %3717 = vmatprep.subr.mxu0 %v3008
          %3718 = vmatpush1.msra.mxu0 %v3007
          %3719 = vmatprep.subr.mxu0 %v3004
          %3720 = vmatpush1.msra.mxu0 %v3003
          %3721 = vmatprep.subr.mxu0 %v3000
          %3722 = vmatpush1.msra.mxu0 %v2999
          %3723 = vmatprep.subr.mxu0 %v2996
          %3724 = vmatpush1.msra.mxu0 %v2995
          %3725 = vmatprep.subr.mxu0 %v2992
          %3726 = vmatpush1.msra.mxu0 %v2991
          %3727 = vmatprep.subr.mxu0 %v2988
          %3728 = vmatpush1.msra.mxu0 %v2987
          %3729 = vmatprep.subr.mxu0 0.0
          %3730 = vmatpush2.msra.mxu0 0.0
          %3731 = vmatprep.subr.mxu0 0.0
          %3732 = vmatpush2.msra.mxu0 0.0
          %3733 = vmatprep.subr.mxu0 0.0
          %3734 = vmatpush2.msra.mxu0 0.0
          %3735 = vmatprep.subr.mxu0 0.0
          %3736 = vmatpush2.msra.mxu0 0.0
          %3737 = vmatprep.subr.mxu0 0.0
          %3738 = vmatpush2.msra.mxu0 0.0
          %3739 = vmatprep.subr.mxu0 0.0
          %3740 = vmatpush2.msra.mxu0 0.0
          %3741 = vmatprep.subr.mxu0 0.0
          %3742 = vmatpush2.msra.mxu0 0.0
          %3743 = vmatprep.subr.mxu0 0.0
          %3744 = vmatpush2.msra.mxu0 0.0
          %3745 = vmatprep.subr.mxu0 0.0
          %3746 = vmatpush2.msra.mxu0 0.0
          %3747 = vmatprep.subr.mxu0 0.0
          %3748 = vmatpush2.msra.mxu0 0.0
          %3749 = vmatprep.subr.mxu0 0.0
          %3750 = vmatpush2.msra.mxu0 0.0
          %3751 = vmatprep.subr.mxu0 0.0
          %3752 = vmatpush2.msra.mxu0 0.0
          %3753 = vmatprep.subr.mxu0 0.0
          %3754 = vmatpush2.msra.mxu0 0.0
          %3755 = vmatprep.subr.mxu0 0.0
          %3756 = vmatpush2.msra.mxu0 0.0
          %3757 = vmatprep.subr.mxu0 0.0
          %3758 = vmatpush2.msra.mxu0 0.0
          %3759 = vmatprep.subr.mxu0 0.0
          %3760 = vmatpush2.msra.mxu0 0.0
          %3761 = vmatprep.mubr.f32.mxu0 0.0
          %3762 = vmatmul.mubr.f32.gmra.mxu0 %v3620
          %v3763 = vpop.f32.mrf.mxu0
          %v3764 = vadd.f32 0.0, %v3763
          %v3765 = vpop.f32.mrf.mxu0
          %v3766 = vadd.f32 0.0, %v3765
          %3767 = vdwg.mxu0
          %v3768 = vadd.f32 %v3622, %v3693
          %v3769 = vadd.f32 %v3623, %v3695
          %v3770 = vadd.f32 %v3624, %v3764
          %v3771 = vadd.f32 %v3625, %v3766
          %v3772 = vxor.u32 %v3768, 2147483648
          %v3773 = vmul.f32 %v3772, 1.442695
          %v3774 = vpow.pop %v3773
          %v3775 = vadd.f32 %v3774, 1.0
          %v3776 = vrcp.pop %v3775
          %v3777 = vmul.f32 1.0, %v3776
          %v3778 = vxor.u32 %v3769, 2147483648
          %v3779 = vmul.f32 %v3778, 1.442695
          %v3780 = vpow.pop %v3779
          %v3781 = vadd.f32 %v3780, 1.0
          %v3782 = vrcp.pop %v3781
          %v3783 = vmul.f32 1.0, %v3782
          %v3784 = vtanh.pop %v3770
          %v3785 = vxor.u32 %v3771, 2147483648
          %v3786 = vmul.f32 %v3785, 1.442695
          %v3787 = vpow.pop %v3786
          %v3788 = vadd.f32 %v3787, 1.0
          %v3789 = vrcp.pop %v3788
          %v3790 = vmul.f32 1.0, %v3789
          %v3791 = vmul.f32 %v3783, %v3621
          %v3792 = vmul.f32 %v3777, %v3784
          %v3793 = vadd.f32 %v3791, %v3792
          %v3794 = vtanh.pop %v3793
          %v3795 = vmul.f32 %v3790, %v3794
          %v3796 = vld [vmem:[%s2] sm:$0xff]
          %vm3797 = vcmp.gt.s32.totalorder %v3796, %v1576
          %v3798 = vsel %vm3797, 1, 0
          %3799 = vset.pattern.permute.xlu0 0
          %3800 = vperm.xlu0 %3799, %v3798
          %v3801 = vpop.permute.xlu0 %3800
          %vm3802 = vcmp.eq.s32.totalorder %v3801, 1
          %v3803 = vsel %vm3802, %v3795, %v3620
          %3804 = vst [vmem:[%s3049] sm:$0xff] %v3803
          %v3805 = vsel %vm3802, %v3793, %v3621
          %3806 = vst [vmem:[%s3051] sm:$0xff] %v3805
          %v3807 = vsel %vm3802, %v3795, 0.0
          %s3808 = scalar_lea.vmem %s444, 24 [#allocation19]
          %3809 = vst [vmem:[%s3808] sm:$0xff] %v3807
        $region84: #{tpu_custom_call.1} parent=51 // pred_fallthru
          _
        %s3810 = sld [smem:[#allocation7]]
        %p3811 = scmp.ge.s32.totalorder %s451, %s3810
        // Predicated region
        $region85: #{tpu_custom_call.1} parent=51 // pred_check
          %p3812 = pneg %p3811
        $region86: #{tpu_custom_call.1} parent=51 // pred_check_branch
          %3814 = sbr.rel (%p3812) target = $region88
        $region87: #{tpu_custom_call.1} parent=51 // pred_region
          %3815 = vst [vmem:[%s444] sm:$0xff] 0.0
          %3816 = vst [vmem:[%s444 + $0x8] sm:$0xff] 0.0
          %3817 = vst [vmem:[%s444 + $0x10] sm:$0xff] 0.0
          %3818 = vst [vmem:[%s444 + $0x18] sm:$0xff] 0.0
        $region88: #{tpu_custom_call.1} parent=51 // pred_fallthru
          _
        %p3819 = scmp.eq.s32.totalorder %s34, 2
        // Predicated region
        $region89: #{tpu_custom_call.1} parent=51 // pred_check
          %p3820 = pneg %p3819
        $region90: #{tpu_custom_call.1} parent=51 // pred_check_branch
          %3822 = sbr.rel (%p3820) target = $region92
        $region91: #{tpu_custom_call.1} parent=51 // pred_region
          %v3823 = vld [vmem:[#allocation2] sm:$0xff]
          %v3824 = vld [vmem:[#allocation2 + $0x8] sm:$0xff]
          %v3825 = vld [vmem:[#allocation2 + $0x10] sm:$0xff]
          %3826 = vst [vmem:[#allocation20] sm:$0xff] %v3823
          %3827 = vst [vmem:[#allocation20 + $0x8] sm:$0xff] %v3824
          %3828 = vst [vmem:[#allocation20 + $0x10] sm:$0xff] %v3825
          %v3829 = vld [vmem:[#allocation3] sm:$0xff]
          %v3830 = vld [vmem:[#allocation3 + $0x8] sm:$0xff]
          %v3831 = vld [vmem:[#allocation3 + $0x10] sm:$0xff]
          %3832 = vst [vmem:[#allocation22] sm:$0xff] %v3829
          %3833 = vst [vmem:[#allocation22 + $0x8] sm:$0xff] %v3830
          %3834 = vst [vmem:[#allocation22 + $0x10] sm:$0xff] %v3831
        $region92: #{tpu_custom_call.1} parent=51 // pred_fallthru
          _
        %s3835 = sand.u32 %s215, 1
        %s3836 = scalar_lea.sflag [#allocation10], %s3835
        %s3837 = sand.u32 %s215, 1
        %s3838 = smul.addr %s3837, 32
        %s3839 = scalar_lea.vmem [#allocation19], %s3838
        // Predicated region
        $region93: #{tpu_custom_call.1} parent=51 // pred_check
          %p3840 = pneg %p225
        $region94: #{tpu_custom_call.1} parent=51 // pred_check_branch
          %3842 = sbr.rel (%p3840) target = $region96
        $region95: #{tpu_custom_call.1} parent=51 // pred_region
          %s3843 = smul.u32 4, %s34
          %s3845 = ssub.s32 512, 512
          %3846 = vsyncadd %s3836, %s3845
          %s3847 = smul.addr %s3843, 128
          %s3848 = scalar_lea.hbm %s9, %s3847
          %s3849 = sshll.u32 %s3839, 4
          %s3850 = int_to_ptr.vmem [resolvable:$true] %s3849
          %3855 = dma.vmem_to_hbm [thread:$0]  %s3850, 512, %s3848, %s3836, 128, 128, 8
        $region96: #{tpu_custom_call.1} parent=51 // pred_fallthru
          _
        // Predicated region
        $region97: #{tpu_custom_call.1} parent=51 // pred_check
          %p3856 = pneg %p246
        $region98: #{tpu_custom_call.1} parent=51 // pred_check_branch
          %3858 = sbr.rel (%p3856) target = $region100
        $region99: #{tpu_custom_call.1} parent=51 // pred_region
          %s3860 = ssub.s32 384, 384
          %3861 = vsyncadd [#allocation21], %s3860
          %s3862 = sshll.u32 [#allocation20], 4
          %s3863 = int_to_ptr.vmem [resolvable:$true] %s3862
          %3868 = dma.vmem_to_hbm [thread:$0]  %s3863, 384, %s10, [#allocation21], 128, 128, 8
        $region100: #{tpu_custom_call.1} parent=51 // pred_fallthru
          _
        // Predicated region
        $region101: #{tpu_custom_call.1} parent=51 // pred_check
          %p3869 = pneg %p267
        $region102: #{tpu_custom_call.1} parent=51 // pred_check_branch
          %3871 = sbr.rel (%p3869) target = $region104
        $region103: #{tpu_custom_call.1} parent=51 // pred_region
          %s3873 = ssub.s32 384, 384
          %3874 = vsyncadd [#allocation21], %s3873
          %s3875 = sshll.u32 [#allocation22], 4
          %s3876 = int_to_ptr.vmem [resolvable:$true] %s3875
          %3881 = dma.vmem_to_hbm [thread:$0]  %s3876, 384, %s11, [#allocation21], 128, 128, 8
        $region104: #{tpu_custom_call.1} parent=51 // pred_fallthru
          _
        // Predicated region
        $region105: #{tpu_custom_call.1} parent=51 // pred_check
          %p3882 = pneg %p246
        $region106: #{tpu_custom_call.1} parent=51 // pred_check_branch
          %3884 = sbr.rel (%p3882) target = $region108
        $region107: #{tpu_custom_call.1} parent=51 // pred_region
          %3885 = dma.done [#allocation21], 384
        $region108: #{tpu_custom_call.1} parent=51 // pred_fallthru
          _
        // Predicated region
        $region109: #{tpu_custom_call.1} parent=51 // pred_check
          %p3886 = pneg %p267
        $region110: #{tpu_custom_call.1} parent=51 // pred_check_branch
          %3888 = sbr.rel (%p3886) target = $region112
        $region111: #{tpu_custom_call.1} parent=51 // pred_region
          %3889 = dma.done [#allocation21], 384
        $region112: #{tpu_custom_call.1} parent=51 // pred_fallthru
          _
      $region52: #{tpu_custom_call.1} parent=5 // pred_fallthru
        _
      %p3890 = scmp.le.s32.totalorder 2, %s29
      // Predicated region
      $region113: #{tpu_custom_call.1} parent=5 // pred_check
        %p3891 = pneg %p3890
      $region114: #{tpu_custom_call.1} parent=5 // pred_check_branch
        %3893 = sbr.rel (%p3891) target = $region116
      $region115: #{tpu_custom_call.1} parent=5 // pred_region
        %s3894 = ssub.s32 %s29, 2
        // Predicated region
        $region117: #{tpu_custom_call.1} parent=115 // pred_check
          %p3895 = pneg %p231
        $region118: #{tpu_custom_call.1} parent=115 // pred_check_branch
          %3897 = sbr.rel (%p3895) target = $region120
        $region119: #{tpu_custom_call.1} parent=115 // pred_region
          %s3898 = sand.u32 %s216, 1
          %s3899 = scalar_lea.sflag [#allocation10], %s3898
          %s3900 = sand.u32 %s216, 1
          %s3901 = smul.addr %s3900, 32
          %s3902 = scalar_lea.vmem [#allocation19], %s3901
          %3903 = dma.done %s3899, 512
        $region120: #{tpu_custom_call.1} parent=115 // pred_fallthru
          _
      $region116: #{tpu_custom_call.1} parent=5 // pred_fallthru
        _
    $region6: #{tpu_custom_call.1} parent=1 // loop_footer
      %s33 = sadd.s32 1, %s29
    $region7: #{tpu_custom_call.1} parent=1 // loop_footer_branch
      %28 = sbr.rel target = $region3
    $region8: #{tpu_custom_call.1} parent=1 // loop_exit
      _
    %3904 = vsyncpa [#allocation9], 1
    %s3905 = scalar_lea.sflag [#allocation9], 1
    %3906 = vsyncpa %s3905, 1
    %3907 = vsyncpa [#allocation12], 1
    %3908 = vsyncpa [#allocation15], 1
    %3909 = vsyncpa [#allocation18], 1
    %3910 = vsyncpa [#allocation10], 1
    %s3911 = scalar_lea.sflag [#allocation10], 1
    %3912 = vsyncpa %s3911, 1
    %3913 = vsyncpa [#allocation21], 1

</llo_original>
